<compile_context>
chip_gen: v7x
topology: tpu7x:2x2x1
jax: 0.10.0
libtpu: 0.0.40
codegen_flags: <defaults>
</compile_context>

<pallas_src>
import jax
import jax.numpy as jnp
import numpy as np
from jax.experimental import pallas as pl
from jax.experimental.pallas import tpu as pltpu

BN_EPS = 1e-5


# ------------------------------- Pallas kernel ------------------------------ #

def _lane_shift(x, off):
    """result[..., i] = x[..., i + off] (cyclic) for a static Python int `off`.

    Implemented as two lane-window slices plus a lane concat (unambiguous
    semantics, pure register/XLU work).  Interior output positions always read
    in-range data, so the cyclic wrap never contaminates valid results.
    """
    L = x.shape[-1]
    k = off % L
    if k == 0:
        return x
    return jnp.concatenate([x[..., k:], x[..., :k]], axis=-1)


def _make_basic_block_kernel(N, H, W, C, rp_pad):
    Hp, Wp = H + 2, W + 2
    inv_r = 1.0 / float(N * H * W)

    def kernel(x_ref, m_ref, w1_ref, g1_ref, b1_ref, w2_ref, g2_ref, b2_ref,
               out_ref):
        """Fused BasicBlock forward, channels-major / R-on-lanes.

        x_ref  : (C, rp_pad) f32   zero-padded, channels-major, flattened NHW
        m_ref  : (1, rp_pad) f32   1.0 at interior (valid output) positions
        w*_ref : (9, C, C)   bf16  tap-major 3x3 weights, w[t][cout, cin]
        g*/b*  : (C, 1)      f32   BN scale / shift
        out_ref: (C, rp_pad) f32   padded-grid output (wrapper slices interior)
        """
        mask = m_ref[...]                       # (1, rp_pad) f32
        x = x_ref[...]                          # (C, rp_pad) f32 (residual stays f32)

        def conv3x3(inp_f32, w_ref):
            """3x3 'same' conv as 9 lane-shifted taps x tiny MXU matmuls."""
            xb = inp_f32.astype(jnp.bfloat16)   # bf16 conv operand (as in ref)
            acc = jnp.zeros((C, rp_pad), jnp.float32)
            for dy in range(3):
                for dx in range(3):
                    t = dy * 3 + dx
                    off = (dy - 1) * Wp + (dx - 1)
                    tap = _lane_shift(xb, off)           # (C, rp_pad) bf16
                    acc = acc + jnp.dot(w_ref[t], tap,   # (C,C) x (C,rp_pad)
                                        preferred_element_type=jnp.float32)
            return acc

        def bn(acc, gamma, beta):
            """Training-mode batch-norm, two-pass interior-masked statistics."""
            mean = jnp.sum(acc * mask, axis=-1, keepdims=True) * inv_r
            cen = (acc - mean) * mask
            var = jnp.sum(cen * cen, axis=-1, keepdims=True) * inv_r
            return (acc - mean) * jax.lax.rsqrt(var + BN_EPS) * gamma + beta

        # conv1 -> bn1 -> relu; masking zeroes the padded ring, so `h` is
        # directly the zero-padded input of conv2.
        h = jnp.maximum(bn(conv3x3(x, w1_ref), g1_ref[...], b1_ref[...]), 0.0)
        h = h * mask

        # conv2 -> bn2 -> +identity -> relu (border positions hold garbage;
        # the wrapper slices only the interior out of the padded grid).
        y = bn(conv3x3(h, w2_ref), g2_ref[...], b2_ref[...]) + x
        out_ref[...] = jnp.maximum(y, 0.0)

    return kernel


# ------------------------------ Pallas wrapper ------------------------------ #

def _full_spec(shape):
    # Whole-array block (last two dims equal full extents -> legal on TPU).
    return pl.BlockSpec(shape, lambda i, _n=len(shape): (0,) * _n)


def basic_block(x_nchw, w1_oihw, g1, b1, w2_oihw, g2, b2):
    """BasicBlock.forward with stride=1, downsample=None (identity skip)."""
    N, C, H, W = x_nchw.shape
    Cout = w1_oihw.shape[0]
    assert Cout == C, "identity skip requires in_channel == out_channel"
    Hp, Wp = H + 2, W + 2
    rp = N * Hp * Wp
    rp_pad = ((rp + 127) // 128) * 128          # lane-dense flat length

    # --- layout plumbing (tiny XLA ops) ------------------------------------ #
    x = x_nchw.astype(jnp.float32)
    xp = jnp.pad(x, ((0, 0), (0, 0), (1, 1), (1, 1)))            # (N,C,Hp,Wp)
    xpf = jnp.transpose(xp, (1, 0, 2, 3)).reshape(C, rp)         # channels-major
    xpf = jnp.pad(xpf, ((0, 0), (0, rp_pad - rp)))               # (C, rp_pad)

    # Interior mask: 1 at valid output positions, 0 on padded ring / tail.
    hp = (np.arange(rp) % (Hp * Wp)) // Wp
    wp = np.arange(rp) % Wp
    m = ((hp >= 1) & (hp <= H) & (wp >= 1) & (wp <= W)).astype(np.float32)
    mask = jnp.asarray(np.pad(m, (0, rp_pad - rp)).reshape(1, rp_pad))

    def wflat(w):  # OIHW -> (9, Cout, Cin), tap-major (dy, dx), bf16 for MXU
        return jnp.transpose(w, (2, 3, 0, 1)).reshape(9, C, C).astype(jnp.bfloat16)

    w1f, w2f = wflat(w1_oihw), wflat(w2_oihw)
    g1r = g1.reshape(C, 1).astype(jnp.float32)
    b1r = b1.reshape(C, 1).astype(jnp.float32)
    g2r = g2.reshape(C, 1).astype(jnp.float32)
    b2r = b2.reshape(C, 1).astype(jnp.float32)

    kernel = _make_basic_block_kernel(N, H, W, C, rp_pad)
    out_pf = pl.pallas_call(
        kernel,
        out_shape=jax.ShapeDtypeStruct((C, rp_pad), jnp.float32),
        grid=(1,),
        in_specs=[_full_spec(xpf.shape), _full_spec(mask.shape),
                  _full_spec(w1f.shape), _full_spec(g1r.shape),
                  _full_spec(b1r.shape), _full_spec(w2f.shape),
                  _full_spec(g2r.shape), _full_spec(b2r.shape)],
        out_specs=_full_spec((C, rp_pad)),
        compiler_params=pltpu.CompilerParams(
            dimension_semantics=("arbitrary",)),
    )(xpf, mask, w1f, g1r, b1r, w2f, g2r, b2r)

    # Padded-grid slab -> NCHW (slice the interior, drop the tail pad).
    out = out_pf[:, :rp].reshape(C, N, Hp, Wp)[:, :, 1:H + 1, 1:W + 1]
    return jnp.transpose(out, (1, 0, 2, 3))


# ---------------------------- pure-JAX reference ----------------------------- #

def _q_bf16(a):
    # Quantize conv operands to bf16 precision (MXU input format used by the
    # kernel) while keeping the reference accumulation in f32.
    return a.astype(jnp.bfloat16).astype(jnp.float32)


def _ref_bn(y_nhwc, gamma, beta):
    mean = jnp.mean(y_nhwc, axis=(0, 1, 2))
    var = jnp.mean((y_nhwc - mean) ** 2, axis=(0, 1, 2))
    return (y_nhwc - mean) * jax.lax.rsqrt(var + BN_EPS) * gamma + beta


def basic_block_ref(x_nchw, w1_oihw, g1, b1, w2_oihw, g2, b2):
    x = jnp.transpose(x_nchw, (0, 2, 3, 1)).astype(jnp.float32)
    w1 = jnp.transpose(w1_oihw, (2, 3, 1, 0)).astype(jnp.float32)
    w2 = jnp.transpose(w2_oihw, (2, 3, 1, 0)).astype(jnp.float32)
    dn = ("NHWC", "HWIO", "NHWC")
    h = jax.lax.conv_general_dilated(
        _q_bf16(x), _q_bf16(w1), (1, 1), ((1, 1), (1, 1)),
        dimension_numbers=dn, precision=jax.lax.Precision.HIGHEST)
    h = jnp.maximum(_ref_bn(h, g1, b1), 0.0)
    y = jax.lax.conv_general_dilated(
        _q_bf16(h), _q_bf16(w2), (1, 1), ((1, 1), (1, 1)),
        dimension_numbers=dn, precision=jax.lax.Precision.HIGHEST)
    y = _ref_bn(y, g2, b2) + x
    y = jnp.maximum(y, 0.0)
    return jnp.transpose(y, (0, 3, 1, 2))


# ----------------------------------- main ------------------------------------ #

if __name__ == "__main__":
    key = jax.random.PRNGKey(0)
    k = jax.random.split(key, 7)

    N, C, H, W = 2, 4, 16, 16                      # in_channel = out_channel = 4
    x = jax.random.normal(k[0], (N, C, H, W), jnp.float32)

    # Deterministic synthetic parameters (PyTorch shapes: conv OIHW, BN (C,)).
    w1 = 0.1 * jax.random.normal(k[1], (C, C, 3, 3), jnp.float32)
    w2 = 0.1 * jax.random.normal(k[2], (C, C, 3, 3), jnp.float32)
    g1 = 1.0 + 0.1 * jax.random.normal(k[3], (C,), jnp.float32)
    b1 = 0.1 * jax.random.normal(k[4], (C,), jnp.float32)
    g2 = 1.0 + 0.1 * jax.random.normal(k[5], (C,), jnp.float32)
    b2 = 0.1 * jax.random.normal(k[6], (C,), jnp.float32)

    out = jax.block_until_ready(basic_block(x, w1, g1, b1, w2, g2, b2))
    ref = jax.block_until_ready(basic_block_ref(x, w1, g1, b1, w2, g2, b2))

    assert out.shape == (N, C, H, W), out.shape
    np.testing.assert_allclose(np.asarray(out), np.asarray(ref),
                               rtol=5e-3, atol=5e-3)
    print("KERNEL_OK")
</pallas_src>

<mosaic_0001>
module attributes {stable_mosaic.version = 11 : i64} {
  func.func @kernel(%arg0: i32, %arg1: memref<4x768xf32, #tpu.memory_space<vmem>>, %arg2: memref<1x768xf32, #tpu.memory_space<vmem>>, %arg3: memref<9x4x4xbf16, #tpu.memory_space<vmem>>, %arg4: memref<4x1xf32, #tpu.memory_space<vmem>>, %arg5: memref<4x1xf32, #tpu.memory_space<vmem>>, %arg6: memref<9x4x4xbf16, #tpu.memory_space<vmem>>, %arg7: memref<4x1xf32, #tpu.memory_space<vmem>>, %arg8: memref<4x1xf32, #tpu.memory_space<vmem>>, %arg9: memref<4x768xf32, #tpu.memory_space<vmem>>) attributes {dimension_semantics = [#tpu.dimension_semantics<arbitrary>], iteration_bounds = array<i64: 1>, scalar_prefetch = 0 : i64, scratch_operands = 0 : i64, tpu.core_type = #tpu.core_type<tc>, window_params = [{pipeline_mode = #tpu.pipeline_mode<synchronous>, transform_indices = @transform_0, window_bounds = array<i64: 4, 768>}, {pipeline_mode = #tpu.pipeline_mode<synchronous>, transform_indices = @transform_1, window_bounds = array<i64: 1, 768>}, {pipeline_mode = #tpu.pipeline_mode<synchronous>, transform_indices = @transform_2, window_bounds = array<i64: 9, 4, 4>}, {pipeline_mode = #tpu.pipeline_mode<synchronous>, transform_indices = @transform_3, window_bounds = array<i64: 4, 1>}, {pipeline_mode = #tpu.pipeline_mode<synchronous>, transform_indices = @transform_4, window_bounds = array<i64: 4, 1>}, {pipeline_mode = #tpu.pipeline_mode<synchronous>, transform_indices = @transform_5, window_bounds = array<i64: 9, 4, 4>}, {pipeline_mode = #tpu.pipeline_mode<synchronous>, transform_indices = @transform_6, window_bounds = array<i64: 4, 1>}, {pipeline_mode = #tpu.pipeline_mode<synchronous>, transform_indices = @transform_7, window_bounds = array<i64: 4, 1>}, {pipeline_mode = #tpu.pipeline_mode<synchronous>, transform_indices = @transform_8, window_bounds = array<i64: 4, 768>}]} {
    %c0 = arith.constant 0 : index
    %c0_0 = arith.constant 0 : index
    %0 = vector.load %arg2[%c0, %c0_0] : memref<1x768xf32, #tpu.memory_space<vmem>>, vector<1x768xf32>
    %c0_1 = arith.constant 0 : index
    %c0_2 = arith.constant 0 : index
    %1 = vector.load %arg1[%c0_1, %c0_2] : memref<4x768xf32, #tpu.memory_space<vmem>>, vector<4x768xf32>
    %2 = arith.truncf %1 : vector<4x768xf32> to vector<4x768xbf16>
    %cst = arith.constant 0.000000e+00 : f32
    %3 = vector.broadcast %cst : f32 to vector<4x768xf32>
    %4 = vector.extract_strided_slice %2 {offsets = [0, 749], sizes = [4, 19], strides = [1, 1]} : vector<4x768xbf16> to vector<4x19xbf16>
    %5 = vector.extract_strided_slice %2 {offsets = [0, 0], sizes = [4, 749], strides = [1, 1]} : vector<4x768xbf16> to vector<4x749xbf16>
    %6 = tpu.concatenate %4, %5 in 1 : vector<4x19xbf16>, vector<4x749xbf16> -> vector<4x768xbf16>
    %c0_3 = arith.constant 0 : index
    %c0_4 = arith.constant 0 : index
    %c0_5 = arith.constant 0 : index
    %7 = vector.load %arg3[%c0_3, %c0_4, %c0_5] : memref<9x4x4xbf16, #tpu.memory_space<vmem>>, vector<1x4x4xbf16>
    %8 = vector.shape_cast %7 : vector<1x4x4xbf16> to vector<4x4xbf16>
    %cst_6 = arith.constant dense<0.000000e+00> : vector<4x768xf32>
    %9 = tpu.matmul %8, %6, %cst_6 {dimension_numbers = #tpu.dot_dimension_numbers<[1], [0], [0], [1], [0, 0, 1, 1], [], []>} : vector<4x4xbf16>, vector<4x768xbf16>, vector<4x768xf32> -> vector<4x768xf32>
    %10 = arith.addf %3, %9 : vector<4x768xf32>
    %11 = vector.extract_strided_slice %2 {offsets = [0, 750], sizes = [4, 18], strides = [1, 1]} : vector<4x768xbf16> to vector<4x18xbf16>
    %12 = vector.extract_strided_slice %2 {offsets = [0, 0], sizes = [4, 750], strides = [1, 1]} : vector<4x768xbf16> to vector<4x750xbf16>
    %13 = tpu.concatenate %11, %12 in 1 : vector<4x18xbf16>, vector<4x750xbf16> -> vector<4x768xbf16>
    %c1 = arith.constant 1 : index
    %c0_7 = arith.constant 0 : index
    %c0_8 = arith.constant 0 : index
    %14 = vector.load %arg3[%c1, %c0_7, %c0_8] : memref<9x4x4xbf16, #tpu.memory_space<vmem>>, vector<1x4x4xbf16>
    %15 = vector.shape_cast %14 : vector<1x4x4xbf16> to vector<4x4xbf16>
    %cst_9 = arith.constant dense<0.000000e+00> : vector<4x768xf32>
    %16 = tpu.matmul %15, %13, %cst_9 {dimension_numbers = #tpu.dot_dimension_numbers<[1], [0], [0], [1], [0, 0, 1, 1], [], []>} : vector<4x4xbf16>, vector<4x768xbf16>, vector<4x768xf32> -> vector<4x768xf32>
    %17 = arith.addf %10, %16 : vector<4x768xf32>
    %18 = vector.extract_strided_slice %2 {offsets = [0, 751], sizes = [4, 17], strides = [1, 1]} : vector<4x768xbf16> to vector<4x17xbf16>
    %19 = vector.extract_strided_slice %2 {offsets = [0, 0], sizes = [4, 751], strides = [1, 1]} : vector<4x768xbf16> to vector<4x751xbf16>
    %20 = tpu.concatenate %18, %19 in 1 : vector<4x17xbf16>, vector<4x751xbf16> -> vector<4x768xbf16>
    %c2 = arith.constant 2 : index
    %c0_10 = arith.constant 0 : index
    %c0_11 = arith.constant 0 : index
    %21 = vector.load %arg3[%c2, %c0_10, %c0_11] : memref<9x4x4xbf16, #tpu.memory_space<vmem>>, vector<1x4x4xbf16>
    %22 = vector.shape_cast %21 : vector<1x4x4xbf16> to vector<4x4xbf16>
    %cst_12 = arith.constant dense<0.000000e+00> : vector<4x768xf32>
    %23 = tpu.matmul %22, %20, %cst_12 {dimension_numbers = #tpu.dot_dimension_numbers<[1], [0], [0], [1], [0, 0, 1, 1], [], []>} : vector<4x4xbf16>, vector<4x768xbf16>, vector<4x768xf32> -> vector<4x768xf32>
    %24 = arith.addf %17, %23 : vector<4x768xf32>
    %25 = vector.extract_strided_slice %2 {offsets = [0, 767], sizes = [4, 1], strides = [1, 1]} : vector<4x768xbf16> to vector<4x1xbf16>
    %26 = vector.extract_strided_slice %2 {offsets = [0, 0], sizes = [4, 767], strides = [1, 1]} : vector<4x768xbf16> to vector<4x767xbf16>
    %27 = tpu.concatenate %25, %26 in 1 : vector<4x1xbf16>, vector<4x767xbf16> -> vector<4x768xbf16>
    %c3 = arith.constant 3 : index
    %c0_13 = arith.constant 0 : index
    %c0_14 = arith.constant 0 : index
    %28 = vector.load %arg3[%c3, %c0_13, %c0_14] : memref<9x4x4xbf16, #tpu.memory_space<vmem>>, vector<1x4x4xbf16>
    %29 = vector.shape_cast %28 : vector<1x4x4xbf16> to vector<4x4xbf16>
    %cst_15 = arith.constant dense<0.000000e+00> : vector<4x768xf32>
    %30 = tpu.matmul %29, %27, %cst_15 {dimension_numbers = #tpu.dot_dimension_numbers<[1], [0], [0], [1], [0, 0, 1, 1], [], []>} : vector<4x4xbf16>, vector<4x768xbf16>, vector<4x768xf32> -> vector<4x768xf32>
    %31 = arith.addf %24, %30 : vector<4x768xf32>
    %c4 = arith.constant 4 : index
    %c0_16 = arith.constant 0 : index
    %c0_17 = arith.constant 0 : index
    %32 = vector.load %arg3[%c4, %c0_16, %c0_17] : memref<9x4x4xbf16, #tpu.memory_space<vmem>>, vector<1x4x4xbf16>
    %33 = vector.shape_cast %32 : vector<1x4x4xbf16> to vector<4x4xbf16>
    %cst_18 = arith.constant dense<0.000000e+00> : vector<4x768xf32>
    %34 = tpu.matmul %33, %2, %cst_18 {dimension_numbers = #tpu.dot_dimension_numbers<[1], [0], [0], [1], [0, 0, 1, 1], [], []>} : vector<4x4xbf16>, vector<4x768xbf16>, vector<4x768xf32> -> vector<4x768xf32>
    %35 = arith.addf %31, %34 : vector<4x768xf32>
    %36 = vector.extract_strided_slice %2 {offsets = [0, 1], sizes = [4, 767], strides = [1, 1]} : vector<4x768xbf16> to vector<4x767xbf16>
    %37 = vector.extract_strided_slice %2 {offsets = [0, 0], sizes = [4, 1], strides = [1, 1]} : vector<4x768xbf16> to vector<4x1xbf16>
    %38 = tpu.concatenate %36, %37 in 1 : vector<4x767xbf16>, vector<4x1xbf16> -> vector<4x768xbf16>
    %c5 = arith.constant 5 : index
    %c0_19 = arith.constant 0 : index
    %c0_20 = arith.constant 0 : index
    %39 = vector.load %arg3[%c5, %c0_19, %c0_20] : memref<9x4x4xbf16, #tpu.memory_space<vmem>>, vector<1x4x4xbf16>
    %40 = vector.shape_cast %39 : vector<1x4x4xbf16> to vector<4x4xbf16>
    %cst_21 = arith.constant dense<0.000000e+00> : vector<4x768xf32>
    %41 = tpu.matmul %40, %38, %cst_21 {dimension_numbers = #tpu.dot_dimension_numbers<[1], [0], [0], [1], [0, 0, 1, 1], [], []>} : vector<4x4xbf16>, vector<4x768xbf16>, vector<4x768xf32> -> vector<4x768xf32>
    %42 = arith.addf %35, %41 : vector<4x768xf32>
    %43 = vector.extract_strided_slice %2 {offsets = [0, 17], sizes = [4, 751], strides = [1, 1]} : vector<4x768xbf16> to vector<4x751xbf16>
    %44 = vector.extract_strided_slice %2 {offsets = [0, 0], sizes = [4, 17], strides = [1, 1]} : vector<4x768xbf16> to vector<4x17xbf16>
    %45 = tpu.concatenate %43, %44 in 1 : vector<4x751xbf16>, vector<4x17xbf16> -> vector<4x768xbf16>
    %c6 = arith.constant 6 : index
    %c0_22 = arith.constant 0 : index
    %c0_23 = arith.constant 0 : index
    %46 = vector.load %arg3[%c6, %c0_22, %c0_23] : memref<9x4x4xbf16, #tpu.memory_space<vmem>>, vector<1x4x4xbf16>
    %47 = vector.shape_cast %46 : vector<1x4x4xbf16> to vector<4x4xbf16>
    %cst_24 = arith.constant dense<0.000000e+00> : vector<4x768xf32>
    %48 = tpu.matmul %47, %45, %cst_24 {dimension_numbers = #tpu.dot_dimension_numbers<[1], [0], [0], [1], [0, 0, 1, 1], [], []>} : vector<4x4xbf16>, vector<4x768xbf16>, vector<4x768xf32> -> vector<4x768xf32>
    %49 = arith.addf %42, %48 : vector<4x768xf32>
    %50 = vector.extract_strided_slice %2 {offsets = [0, 18], sizes = [4, 750], strides = [1, 1]} : vector<4x768xbf16> to vector<4x750xbf16>
    %51 = vector.extract_strided_slice %2 {offsets = [0, 0], sizes = [4, 18], strides = [1, 1]} : vector<4x768xbf16> to vector<4x18xbf16>
    %52 = tpu.concatenate %50, %51 in 1 : vector<4x750xbf16>, vector<4x18xbf16> -> vector<4x768xbf16>
    %c7 = arith.constant 7 : index
    %c0_25 = arith.constant 0 : index
    %c0_26 = arith.constant 0 : index
    %53 = vector.load %arg3[%c7, %c0_25, %c0_26] : memref<9x4x4xbf16, #tpu.memory_space<vmem>>, vector<1x4x4xbf16>
    %54 = vector.shape_cast %53 : vector<1x4x4xbf16> to vector<4x4xbf16>
    %cst_27 = arith.constant dense<0.000000e+00> : vector<4x768xf32>
    %55 = tpu.matmul %54, %52, %cst_27 {dimension_numbers = #tpu.dot_dimension_numbers<[1], [0], [0], [1], [0, 0, 1, 1], [], []>} : vector<4x4xbf16>, vector<4x768xbf16>, vector<4x768xf32> -> vector<4x768xf32>
    %56 = arith.addf %49, %55 : vector<4x768xf32>
    %57 = vector.extract_strided_slice %2 {offsets = [0, 19], sizes = [4, 749], strides = [1, 1]} : vector<4x768xbf16> to vector<4x749xbf16>
    %58 = vector.extract_strided_slice %2 {offsets = [0, 0], sizes = [4, 19], strides = [1, 1]} : vector<4x768xbf16> to vector<4x19xbf16>
    %59 = tpu.concatenate %57, %58 in 1 : vector<4x749xbf16>, vector<4x19xbf16> -> vector<4x768xbf16>
    %c8 = arith.constant 8 : index
    %c0_28 = arith.constant 0 : index
    %c0_29 = arith.constant 0 : index
    %60 = vector.load %arg3[%c8, %c0_28, %c0_29] : memref<9x4x4xbf16, #tpu.memory_space<vmem>>, vector<1x4x4xbf16>
    %61 = vector.shape_cast %60 : vector<1x4x4xbf16> to vector<4x4xbf16>
    %cst_30 = arith.constant dense<0.000000e+00> : vector<4x768xf32>
    %62 = tpu.matmul %61, %59, %cst_30 {dimension_numbers = #tpu.dot_dimension_numbers<[1], [0], [0], [1], [0, 0, 1, 1], [], []>} : vector<4x4xbf16>, vector<4x768xbf16>, vector<4x768xf32> -> vector<4x768xf32>
    %63 = arith.addf %56, %62 : vector<4x768xf32>
    %c0_31 = arith.constant 0 : index
    %c0_32 = arith.constant 0 : index
    %64 = vector.load %arg4[%c0_31, %c0_32] : memref<4x1xf32, #tpu.memory_space<vmem>>, vector<4x1xf32>
    %c0_33 = arith.constant 0 : index
    %c0_34 = arith.constant 0 : index
    %65 = vector.load %arg5[%c0_33, %c0_34] : memref<4x1xf32, #tpu.memory_space<vmem>>, vector<4x1xf32>
    %66 = vector.broadcast %0 : vector<1x768xf32> to vector<4x768xf32>
    %67 = arith.mulf %63, %66 : vector<4x768xf32>
    %cst_35 = arith.constant dense<0.000000e+00> : vector<4xf32>
    %68 = vector.multi_reduction <add>, %67, %cst_35 [1] : vector<4x768xf32> to vector<4xf32>
    %69 = vector.shape_cast %68 : vector<4xf32> to vector<4x1xf32>
    %cst_36 = arith.constant 0.001953125 : f32
    %70 = vector.broadcast %cst_36 : f32 to vector<4x1xf32>
    %71 = arith.mulf %69, %70 : vector<4x1xf32>
    %72 = vector.broadcast %71 : vector<4x1xf32> to vector<4x768xf32>
    %73 = arith.subf %63, %72 : vector<4x768xf32>
    %74 = vector.broadcast %0 : vector<1x768xf32> to vector<4x768xf32>
    %75 = arith.mulf %73, %74 : vector<4x768xf32>
    %76 = arith.mulf %75, %75 : vector<4x768xf32>
    %cst_37 = arith.constant dense<0.000000e+00> : vector<4xf32>
    %77 = vector.multi_reduction <add>, %76, %cst_37 [1] : vector<4x768xf32> to vector<4xf32>
    %78 = vector.shape_cast %77 : vector<4xf32> to vector<4x1xf32>
    %cst_38 = arith.constant 0.001953125 : f32
    %79 = vector.broadcast %cst_38 : f32 to vector<4x1xf32>
    %80 = arith.mulf %78, %79 : vector<4x1xf32>
    %81 = vector.broadcast %71 : vector<4x1xf32> to vector<4x768xf32>
    %82 = arith.subf %63, %81 : vector<4x768xf32>
    %cst_39 = arith.constant 9.99999974E-6 : f32
    %83 = vector.broadcast %cst_39 : f32 to vector<4x1xf32>
    %84 = arith.addf %80, %83 : vector<4x1xf32>
    %85 = math.rsqrt %84 : vector<4x1xf32>
    %86 = vector.broadcast %85 : vector<4x1xf32> to vector<4x768xf32>
    %87 = arith.mulf %82, %86 : vector<4x768xf32>
    %88 = vector.broadcast %64 : vector<4x1xf32> to vector<4x768xf32>
    %89 = arith.mulf %87, %88 : vector<4x768xf32>
    %90 = vector.broadcast %65 : vector<4x1xf32> to vector<4x768xf32>
    %91 = arith.addf %89, %90 : vector<4x768xf32>
    %cst_40 = arith.constant 0.000000e+00 : f32
    %92 = vector.broadcast %cst_40 : f32 to vector<4x768xf32>
    %93 = arith.maximumf %91, %92 : vector<4x768xf32>
    %94 = vector.broadcast %0 : vector<1x768xf32> to vector<4x768xf32>
    %95 = arith.mulf %93, %94 : vector<4x768xf32>
    %96 = arith.truncf %95 : vector<4x768xf32> to vector<4x768xbf16>
    %cst_41 = arith.constant 0.000000e+00 : f32
    %97 = vector.broadcast %cst_41 : f32 to vector<4x768xf32>
    %98 = vector.extract_strided_slice %96 {offsets = [0, 749], sizes = [4, 19], strides = [1, 1]} : vector<4x768xbf16> to vector<4x19xbf16>
    %99 = vector.extract_strided_slice %96 {offsets = [0, 0], sizes = [4, 749], strides = [1, 1]} : vector<4x768xbf16> to vector<4x749xbf16>
    %100 = tpu.concatenate %98, %99 in 1 : vector<4x19xbf16>, vector<4x749xbf16> -> vector<4x768xbf16>
    %c0_42 = arith.constant 0 : index
    %c0_43 = arith.constant 0 : index
    %c0_44 = arith.constant 0 : index
    %101 = vector.load %arg6[%c0_42, %c0_43, %c0_44] : memref<9x4x4xbf16, #tpu.memory_space<vmem>>, vector<1x4x4xbf16>
    %102 = vector.shape_cast %101 : vector<1x4x4xbf16> to vector<4x4xbf16>
    %cst_45 = arith.constant dense<0.000000e+00> : vector<4x768xf32>
    %103 = tpu.matmul %102, %100, %cst_45 {dimension_numbers = #tpu.dot_dimension_numbers<[1], [0], [0], [1], [0, 0, 1, 1], [], []>} : vector<4x4xbf16>, vector<4x768xbf16>, vector<4x768xf32> -> vector<4x768xf32>
    %104 = arith.addf %97, %103 : vector<4x768xf32>
    %105 = vector.extract_strided_slice %96 {offsets = [0, 750], sizes = [4, 18], strides = [1, 1]} : vector<4x768xbf16> to vector<4x18xbf16>
    %106 = vector.extract_strided_slice %96 {offsets = [0, 0], sizes = [4, 750], strides = [1, 1]} : vector<4x768xbf16> to vector<4x750xbf16>
    %107 = tpu.concatenate %105, %106 in 1 : vector<4x18xbf16>, vector<4x750xbf16> -> vector<4x768xbf16>
    %c1_46 = arith.constant 1 : index
    %c0_47 = arith.constant 0 : index
    %c0_48 = arith.constant 0 : index
    %108 = vector.load %arg6[%c1_46, %c0_47, %c0_48] : memref<9x4x4xbf16, #tpu.memory_space<vmem>>, vector<1x4x4xbf16>
    %109 = vector.shape_cast %108 : vector<1x4x4xbf16> to vector<4x4xbf16>
    %cst_49 = arith.constant dense<0.000000e+00> : vector<4x768xf32>
    %110 = tpu.matmul %109, %107, %cst_49 {dimension_numbers = #tpu.dot_dimension_numbers<[1], [0], [0], [1], [0, 0, 1, 1], [], []>} : vector<4x4xbf16>, vector<4x768xbf16>, vector<4x768xf32> -> vector<4x768xf32>
    %111 = arith.addf %104, %110 : vector<4x768xf32>
    %112 = vector.extract_strided_slice %96 {offsets = [0, 751], sizes = [4, 17], strides = [1, 1]} : vector<4x768xbf16> to vector<4x17xbf16>
    %113 = vector.extract_strided_slice %96 {offsets = [0, 0], sizes = [4, 751], strides = [1, 1]} : vector<4x768xbf16> to vector<4x751xbf16>
    %114 = tpu.concatenate %112, %113 in 1 : vector<4x17xbf16>, vector<4x751xbf16> -> vector<4x768xbf16>
    %c2_50 = arith.constant 2 : index
    %c0_51 = arith.constant 0 : index
    %c0_52 = arith.constant 0 : index
    %115 = vector.load %arg6[%c2_50, %c0_51, %c0_52] : memref<9x4x4xbf16, #tpu.memory_space<vmem>>, vector<1x4x4xbf16>
    %116 = vector.shape_cast %115 : vector<1x4x4xbf16> to vector<4x4xbf16>
    %cst_53 = arith.constant dense<0.000000e+00> : vector<4x768xf32>
    %117 = tpu.matmul %116, %114, %cst_53 {dimension_numbers = #tpu.dot_dimension_numbers<[1], [0], [0], [1], [0, 0, 1, 1], [], []>} : vector<4x4xbf16>, vector<4x768xbf16>, vector<4x768xf32> -> vector<4x768xf32>
    %118 = arith.addf %111, %117 : vector<4x768xf32>
    %119 = vector.extract_strided_slice %96 {offsets = [0, 767], sizes = [4, 1], strides = [1, 1]} : vector<4x768xbf16> to vector<4x1xbf16>
    %120 = vector.extract_strided_slice %96 {offsets = [0, 0], sizes = [4, 767], strides = [1, 1]} : vector<4x768xbf16> to vector<4x767xbf16>
    %121 = tpu.concatenate %119, %120 in 1 : vector<4x1xbf16>, vector<4x767xbf16> -> vector<4x768xbf16>
    %c3_54 = arith.constant 3 : index
    %c0_55 = arith.constant 0 : index
    %c0_56 = arith.constant 0 : index
    %122 = vector.load %arg6[%c3_54, %c0_55, %c0_56] : memref<9x4x4xbf16, #tpu.memory_space<vmem>>, vector<1x4x4xbf16>
    %123 = vector.shape_cast %122 : vector<1x4x4xbf16> to vector<4x4xbf16>
    %cst_57 = arith.constant dense<0.000000e+00> : vector<4x768xf32>
    %124 = tpu.matmul %123, %121, %cst_57 {dimension_numbers = #tpu.dot_dimension_numbers<[1], [0], [0], [1], [0, 0, 1, 1], [], []>} : vector<4x4xbf16>, vector<4x768xbf16>, vector<4x768xf32> -> vector<4x768xf32>
    %125 = arith.addf %118, %124 : vector<4x768xf32>
    %c4_58 = arith.constant 4 : index
    %c0_59 = arith.constant 0 : index
    %c0_60 = arith.constant 0 : index
    %126 = vector.load %arg6[%c4_58, %c0_59, %c0_60] : memref<9x4x4xbf16, #tpu.memory_space<vmem>>, vector<1x4x4xbf16>
    %127 = vector.shape_cast %126 : vector<1x4x4xbf16> to vector<4x4xbf16>
    %cst_61 = arith.constant dense<0.000000e+00> : vector<4x768xf32>
    %128 = tpu.matmul %127, %96, %cst_61 {dimension_numbers = #tpu.dot_dimension_numbers<[1], [0], [0], [1], [0, 0, 1, 1], [], []>} : vector<4x4xbf16>, vector<4x768xbf16>, vector<4x768xf32> -> vector<4x768xf32>
    %129 = arith.addf %125, %128 : vector<4x768xf32>
    %130 = vector.extract_strided_slice %96 {offsets = [0, 1], sizes = [4, 767], strides = [1, 1]} : vector<4x768xbf16> to vector<4x767xbf16>
    %131 = vector.extract_strided_slice %96 {offsets = [0, 0], sizes = [4, 1], strides = [1, 1]} : vector<4x768xbf16> to vector<4x1xbf16>
    %132 = tpu.concatenate %130, %131 in 1 : vector<4x767xbf16>, vector<4x1xbf16> -> vector<4x768xbf16>
    %c5_62 = arith.constant 5 : index
    %c0_63 = arith.constant 0 : index
    %c0_64 = arith.constant 0 : index
    %133 = vector.load %arg6[%c5_62, %c0_63, %c0_64] : memref<9x4x4xbf16, #tpu.memory_space<vmem>>, vector<1x4x4xbf16>
    %134 = vector.shape_cast %133 : vector<1x4x4xbf16> to vector<4x4xbf16>
    %cst_65 = arith.constant dense<0.000000e+00> : vector<4x768xf32>
    %135 = tpu.matmul %134, %132, %cst_65 {dimension_numbers = #tpu.dot_dimension_numbers<[1], [0], [0], [1], [0, 0, 1, 1], [], []>} : vector<4x4xbf16>, vector<4x768xbf16>, vector<4x768xf32> -> vector<4x768xf32>
    %136 = arith.addf %129, %135 : vector<4x768xf32>
    %137 = vector.extract_strided_slice %96 {offsets = [0, 17], sizes = [4, 751], strides = [1, 1]} : vector<4x768xbf16> to vector<4x751xbf16>
    %138 = vector.extract_strided_slice %96 {offsets = [0, 0], sizes = [4, 17], strides = [1, 1]} : vector<4x768xbf16> to vector<4x17xbf16>
    %139 = tpu.concatenate %137, %138 in 1 : vector<4x751xbf16>, vector<4x17xbf16> -> vector<4x768xbf16>
    %c6_66 = arith.constant 6 : index
    %c0_67 = arith.constant 0 : index
    %c0_68 = arith.constant 0 : index
    %140 = vector.load %arg6[%c6_66, %c0_67, %c0_68] : memref<9x4x4xbf16, #tpu.memory_space<vmem>>, vector<1x4x4xbf16>
    %141 = vector.shape_cast %140 : vector<1x4x4xbf16> to vector<4x4xbf16>
    %cst_69 = arith.constant dense<0.000000e+00> : vector<4x768xf32>
    %142 = tpu.matmul %141, %139, %cst_69 {dimension_numbers = #tpu.dot_dimension_numbers<[1], [0], [0], [1], [0, 0, 1, 1], [], []>} : vector<4x4xbf16>, vector<4x768xbf16>, vector<4x768xf32> -> vector<4x768xf32>
    %143 = arith.addf %136, %142 : vector<4x768xf32>
    %144 = vector.extract_strided_slice %96 {offsets = [0, 18], sizes = [4, 750], strides = [1, 1]} : vector<4x768xbf16> to vector<4x750xbf16>
    %145 = vector.extract_strided_slice %96 {offsets = [0, 0], sizes = [4, 18], strides = [1, 1]} : vector<4x768xbf16> to vector<4x18xbf16>
    %146 = tpu.concatenate %144, %145 in 1 : vector<4x750xbf16>, vector<4x18xbf16> -> vector<4x768xbf16>
    %c7_70 = arith.constant 7 : index
    %c0_71 = arith.constant 0 : index
    %c0_72 = arith.constant 0 : index
    %147 = vector.load %arg6[%c7_70, %c0_71, %c0_72] : memref<9x4x4xbf16, #tpu.memory_space<vmem>>, vector<1x4x4xbf16>
    %148 = vector.shape_cast %147 : vector<1x4x4xbf16> to vector<4x4xbf16>
    %cst_73 = arith.constant dense<0.000000e+00> : vector<4x768xf32>
    %149 = tpu.matmul %148, %146, %cst_73 {dimension_numbers = #tpu.dot_dimension_numbers<[1], [0], [0], [1], [0, 0, 1, 1], [], []>} : vector<4x4xbf16>, vector<4x768xbf16>, vector<4x768xf32> -> vector<4x768xf32>
    %150 = arith.addf %143, %149 : vector<4x768xf32>
    %151 = vector.extract_strided_slice %96 {offsets = [0, 19], sizes = [4, 749], strides = [1, 1]} : vector<4x768xbf16> to vector<4x749xbf16>
    %152 = vector.extract_strided_slice %96 {offsets = [0, 0], sizes = [4, 19], strides = [1, 1]} : vector<4x768xbf16> to vector<4x19xbf16>
    %153 = tpu.concatenate %151, %152 in 1 : vector<4x749xbf16>, vector<4x19xbf16> -> vector<4x768xbf16>
    %c8_74 = arith.constant 8 : index
    %c0_75 = arith.constant 0 : index
    %c0_76 = arith.constant 0 : index
    %154 = vector.load %arg6[%c8_74, %c0_75, %c0_76] : memref<9x4x4xbf16, #tpu.memory_space<vmem>>, vector<1x4x4xbf16>
    %155 = vector.shape_cast %154 : vector<1x4x4xbf16> to vector<4x4xbf16>
    %cst_77 = arith.constant dense<0.000000e+00> : vector<4x768xf32>
    %156 = tpu.matmul %155, %153, %cst_77 {dimension_numbers = #tpu.dot_dimension_numbers<[1], [0], [0], [1], [0, 0, 1, 1], [], []>} : vector<4x4xbf16>, vector<4x768xbf16>, vector<4x768xf32> -> vector<4x768xf32>
    %157 = arith.addf %150, %156 : vector<4x768xf32>
    %c0_78 = arith.constant 0 : index
    %c0_79 = arith.constant 0 : index
    %158 = vector.load %arg7[%c0_78, %c0_79] : memref<4x1xf32, #tpu.memory_space<vmem>>, vector<4x1xf32>
    %c0_80 = arith.constant 0 : index
    %c0_81 = arith.constant 0 : index
    %159 = vector.load %arg8[%c0_80, %c0_81] : memref<4x1xf32, #tpu.memory_space<vmem>>, vector<4x1xf32>
    %160 = vector.broadcast %0 : vector<1x768xf32> to vector<4x768xf32>
    %161 = arith.mulf %157, %160 : vector<4x768xf32>
    %cst_82 = arith.constant dense<0.000000e+00> : vector<4xf32>
    %162 = vector.multi_reduction <add>, %161, %cst_82 [1] : vector<4x768xf32> to vector<4xf32>
    %163 = vector.shape_cast %162 : vector<4xf32> to vector<4x1xf32>
    %cst_83 = arith.constant 0.001953125 : f32
    %164 = vector.broadcast %cst_83 : f32 to vector<4x1xf32>
    %165 = arith.mulf %163, %164 : vector<4x1xf32>
    %166 = vector.broadcast %165 : vector<4x1xf32> to vector<4x768xf32>
    %167 = arith.subf %157, %166 : vector<4x768xf32>
    %168 = vector.broadcast %0 : vector<1x768xf32> to vector<4x768xf32>
    %169 = arith.mulf %167, %168 : vector<4x768xf32>
    %170 = arith.mulf %169, %169 : vector<4x768xf32>
    %cst_84 = arith.constant dense<0.000000e+00> : vector<4xf32>
    %171 = vector.multi_reduction <add>, %170, %cst_84 [1] : vector<4x768xf32> to vector<4xf32>
    %172 = vector.shape_cast %171 : vector<4xf32> to vector<4x1xf32>
    %cst_85 = arith.constant 0.001953125 : f32
    %173 = vector.broadcast %cst_85 : f32 to vector<4x1xf32>
    %174 = arith.mulf %172, %173 : vector<4x1xf32>
    %175 = vector.broadcast %165 : vector<4x1xf32> to vector<4x768xf32>
    %176 = arith.subf %157, %175 : vector<4x768xf32>
    %cst_86 = arith.constant 9.99999974E-6 : f32
    %177 = vector.broadcast %cst_86 : f32 to vector<4x1xf32>
    %178 = arith.addf %174, %177 : vector<4x1xf32>
    %179 = math.rsqrt %178 : vector<4x1xf32>
    %180 = vector.broadcast %179 : vector<4x1xf32> to vector<4x768xf32>
    %181 = arith.mulf %176, %180 : vector<4x768xf32>
    %182 = vector.broadcast %158 : vector<4x1xf32> to vector<4x768xf32>
    %183 = arith.mulf %181, %182 : vector<4x768xf32>
    %184 = vector.broadcast %159 : vector<4x1xf32> to vector<4x768xf32>
    %185 = arith.addf %183, %184 : vector<4x768xf32>
    %186 = arith.addf %185, %1 : vector<4x768xf32>
    %cst_87 = arith.constant 0.000000e+00 : f32
    %187 = vector.broadcast %cst_87 : f32 to vector<4x768xf32>
    %188 = arith.maximumf %186, %187 : vector<4x768xf32>
    %c0_88 = arith.constant 0 : index
    %c0_89 = arith.constant 0 : index
    %189 = vector.load %arg9[%c0_88, %c0_89] : memref<4x768xf32, #tpu.memory_space<vmem>>, vector<4x768xf32>
    tpu.vector_store %arg9[%c0_88, %c0_89], %188 {strides = array<i32>} : memref<4x768xf32, #tpu.memory_space<vmem>>, vector<4x768xf32>,
    return
  }
  func.func @transform_0(%arg0: i32) -> (i32, i32) {
    %c0_i32 = arith.constant 0 : i32
    %c0_i32_0 = arith.constant 0 : i32
    %c0_i32_1 = arith.constant 0 : i32
    return %c0_i32, %c0_i32_0 : i32, i32
  }
  func.func @transform_1(%arg0: i32) -> (i32, i32) {
    %c0_i32 = arith.constant 0 : i32
    %c0_i32_0 = arith.constant 0 : i32
    %c0_i32_1 = arith.constant 0 : i32
    return %c0_i32, %c0_i32_0 : i32, i32
  }
  func.func @transform_2(%arg0: i32) -> (i32, i32, i32) {
    %c0_i32 = arith.constant 0 : i32
    %c0_i32_0 = arith.constant 0 : i32
    %c0_i32_1 = arith.constant 0 : i32
    %c0_i32_2 = arith.constant 0 : i32
    return %c0_i32, %c0_i32_0, %c0_i32_1 : i32, i32, i32
  }
  func.func @transform_3(%arg0: i32) -> (i32, i32) {
    %c0_i32 = arith.constant 0 : i32
    %c0_i32_0 = arith.constant 0 : i32
    %c0_i32_1 = arith.constant 0 : i32
    return %c0_i32, %c0_i32_0 : i32, i32
  }
  func.func @transform_4(%arg0: i32) -> (i32, i32) {
    %c0_i32 = arith.constant 0 : i32
    %c0_i32_0 = arith.constant 0 : i32
    %c0_i32_1 = arith.constant 0 : i32
    return %c0_i32, %c0_i32_0 : i32, i32
  }
  func.func @transform_5(%arg0: i32) -> (i32, i32, i32) {
    %c0_i32 = arith.constant 0 : i32
    %c0_i32_0 = arith.constant 0 : i32
    %c0_i32_1 = arith.constant 0 : i32
    %c0_i32_2 = arith.constant 0 : i32
    return %c0_i32, %c0_i32_0, %c0_i32_1 : i32, i32, i32
  }
  func.func @transform_6(%arg0: i32) -> (i32, i32) {
    %c0_i32 = arith.constant 0 : i32
    %c0_i32_0 = arith.constant 0 : i32
    %c0_i32_1 = arith.constant 0 : i32
    return %c0_i32, %c0_i32_0 : i32, i32
  }
  func.func @transform_7(%arg0: i32) -> (i32, i32) {
    %c0_i32 = arith.constant 0 : i32
    %c0_i32_0 = arith.constant 0 : i32
    %c0_i32_1 = arith.constant 0 : i32
    return %c0_i32, %c0_i32_0 : i32, i32
  }
  func.func @transform_8(%arg0: i32) -> (i32, i32) {
    %c0_i32 = arith.constant 0 : i32
    %c0_i32_0 = arith.constant 0 : i32
    %c0_i32_1 = arith.constant 0 : i32
    return %c0_i32, %c0_i32_0 : i32, i32
  }
}

</mosaic_0001>

<llo_original>
// kernel: tpu_custom_call.1
$region0: #{tpu_custom_call.1}
  #allocation0 [shape = 'u32[]', space=smem, size = 0x4, offset = 0x4, fixed_abs, tag = 'smem constant byte address 0x4 - core index']
  #allocation1 [shape = 'u32[144,128]{1,0:T(1,128)}', space=vmem, size = 0x12000, scoped, tag = 'internal scratch']
  %s0 = inlined_call_operand.vmem [shape: f32[4,768], index: 0, kind: input, shape index: {}]
  %s1 = inlined_call_operand.vmem [shape: f32[1,768], index: 1, kind: input, shape index: {}]
  %s2 = inlined_call_operand.vmem [shape: bf16[9,4,4], index: 2, kind: input, shape index: {}]
  %s3 = inlined_call_operand.vmem [shape: f32[4,1], index: 3, kind: input, shape index: {}]
  %s4 = inlined_call_operand.vmem [shape: f32[4,1], index: 4, kind: input, shape index: {}]
  %s5 = inlined_call_operand.vmem [shape: bf16[9,4,4], index: 5, kind: input, shape index: {}]
  %s6 = inlined_call_operand.vmem [shape: f32[4,1], index: 6, kind: input, shape index: {}]
  %s7 = inlined_call_operand.vmem [shape: f32[4,1], index: 7, kind: input, shape index: {}]
  %s8 = inlined_call_operand.hbm [shape: f32[4,768], index: 8, kind: output, shape index: {}]
  %s9 = sld [smem:[#allocation0]]
  $region42: #{tpu_custom_call.1} parent=0
    _
  %s11 = ssub.s32 1, %s9
  %s12 = scalar_select 0, %s11, %s9
  $region1: #{tpu_custom_call.1} parent=0
    #allocation2 [shape = 'u8[12288]{0}', space=vmem, size = 0x3000, scoped, tag = 'output window, operand 0, single buffered']
    #allocation3 [shape = 's32[1]{0}', space=sflag, size = 0x4, scoped, tag = 'scoped memory for tpu_custom_call.1']
    %13 = vsyncpa [#allocation3], 0
    // Predicated region
    $region2: #{tpu_custom_call.1} parent=1 // pred_check
      _
    $region3: #{tpu_custom_call.1} parent=1 // pred_check_branch
      %15 = sbr.rel (0) target = $region5
    $region4: #{tpu_custom_call.1} parent=1 // pred_region
      _
    $region5: #{tpu_custom_call.1} parent=1 // pred_fallthru
      _
    // Predicated region
    $region6: #{tpu_custom_call.1} parent=1 // pred_check
      _
    $region7: #{tpu_custom_call.1} parent=1 // pred_check_branch
      %17 = sbr.rel (0) target = $region9
    $region8: #{tpu_custom_call.1} parent=1 // pred_region
      _
    $region9: #{tpu_custom_call.1} parent=1 // pred_fallthru
      _
    // Predicated region
    $region10: #{tpu_custom_call.1} parent=1 // pred_check
      _
    $region11: #{tpu_custom_call.1} parent=1 // pred_check_branch
      %19 = sbr.rel (0) target = $region13
    $region12: #{tpu_custom_call.1} parent=1 // pred_region
      _
    $region13: #{tpu_custom_call.1} parent=1 // pred_fallthru
      _
    // Predicated region
    $region14: #{tpu_custom_call.1} parent=1 // pred_check
      _
    $region15: #{tpu_custom_call.1} parent=1 // pred_check_branch
      %21 = sbr.rel (0) target = $region17
    $region16: #{tpu_custom_call.1} parent=1 // pred_region
      _
    $region17: #{tpu_custom_call.1} parent=1 // pred_fallthru
      _
    // Predicated region
    $region18: #{tpu_custom_call.1} parent=1 // pred_check
      _
    $region19: #{tpu_custom_call.1} parent=1 // pred_check_branch
      %23 = sbr.rel (0) target = $region21
    $region20: #{tpu_custom_call.1} parent=1 // pred_region
      _
    $region21: #{tpu_custom_call.1} parent=1 // pred_fallthru
      _
    // Predicated region
    $region22: #{tpu_custom_call.1} parent=1 // pred_check
      _
    $region23: #{tpu_custom_call.1} parent=1 // pred_check_branch
      %25 = sbr.rel (0) target = $region25
    $region24: #{tpu_custom_call.1} parent=1 // pred_region
      _
    $region25: #{tpu_custom_call.1} parent=1 // pred_fallthru
      _
    // Predicated region
    $region26: #{tpu_custom_call.1} parent=1 // pred_check
      _
    $region27: #{tpu_custom_call.1} parent=1 // pred_check_branch
      %27 = sbr.rel (0) target = $region29
    $region28: #{tpu_custom_call.1} parent=1 // pred_region
      _
    $region29: #{tpu_custom_call.1} parent=1 // pred_fallthru
      _
    // Predicated region
    $region30: #{tpu_custom_call.1} parent=1 // pred_check
      _
    $region31: #{tpu_custom_call.1} parent=1 // pred_check_branch
      %29 = sbr.rel (0) target = $region33
    $region32: #{tpu_custom_call.1} parent=1 // pred_region
      _
    $region33: #{tpu_custom_call.1} parent=1 // pred_fallthru
      _
    %v31 = vld [vmem:[%s1] sm:$0x3f]
    %v32 = vld [vmem:[%s0] sm:$0xff]
    %v33 = vld [vmem:[%s0 + $0x8] sm:$0xff]
    %v34 = vld [vmem:[%s0 + $0x10] sm:$0xff]
    %v38 = vcombine.high %v32, %v32
    %v39 = vcombine.high %v33, %v33
    %v40 = vcombine.high %v34, %v34
    %v44 = vpack.c.bf16 %v32, %v32
    %v45 = vpack.c.bf16 %v38, %v38
    %v46 = vpack.c.bf16 %v33, %v33
    %v47 = vpack.c.bf16 %v39, %v39
    %v48 = vpack.c.bf16 %v34, %v34
    %v49 = vpack.c.bf16 %v40, %v40
    %51 = vrot.lane.b32.xlu0 %v49, 19
    %v52 = vpop.permute.xlu0 %51
    %58 = vrot.lane.b32.xlu0 %v44, 19
    %v59 = vpop.permute.xlu0 %58
    %60 = vrot.lane.b32.xlu0 %v45, 19
    %v61 = vpop.permute.xlu0 %60
    %62 = vrot.lane.b32.xlu0 %v46, 19
    %v63 = vpop.permute.xlu0 %62
    %64 = vrot.lane.b32.xlu0 %v47, 19
    %v65 = vpop.permute.xlu0 %64
    %66 = vrot.lane.b32.xlu0 %v48, 19
    %v67 = vpop.permute.xlu0 %66
    %vm68 = vcmask 154624
    %v69 = vsel %vm68, %v59, %v61
    %v70 = vsel %vm68, %v61, %v63
    %v71 = vsel %vm68, %v63, %v65
    %v72 = vsel %vm68, %v65, %v67
    %v73 = vsel %vm68, %v67, %v52
    %vm74 = vcmask 154624
    %v77 = vsel %vm74, %v52, %v59
    %v78 = vld [vmem:[%s2] sm:$0x3]
    %79 = vrot.lane.b32.xlu0 %v49, 18
    %v80 = vpop.permute.xlu0 %79
    %81 = vrot.lane.b32.xlu0 %v44, 18
    %v82 = vpop.permute.xlu0 %81
    %83 = vrot.lane.b32.xlu0 %v45, 18
    %v84 = vpop.permute.xlu0 %83
    %85 = vrot.lane.b32.xlu0 %v46, 18
    %v86 = vpop.permute.xlu0 %85
    %87 = vrot.lane.b32.xlu0 %v47, 18
    %v88 = vpop.permute.xlu0 %87
    %89 = vrot.lane.b32.xlu0 %v48, 18
    %v90 = vpop.permute.xlu0 %89
    %vm91 = vcmask 146432
    %v92 = vsel %vm91, %v82, %v84
    %v93 = vsel %vm91, %v84, %v86
    %v94 = vsel %vm91, %v86, %v88
    %v95 = vsel %vm91, %v88, %v90
    %v96 = vsel %vm91, %v90, %v80
    %vm97 = vcmask 146432
    %v100 = vsel %vm97, %v80, %v82
    %s101 = scalar_lea.vmem %s2, 2
    %v102 = vld [vmem:[%s101] sm:$0x3]
    %vm103 = vcmask 31744
    %v105 = vsel %vm103, %v102, 0
    %vm107 = vcmask 1041408
    %v108 = vsel %vm107, %v100, 0
    %v111 = vsel %vm107, %v92, 0
    %v114 = vsel %vm107, %v93, 0
    %v117 = vsel %vm107, %v94, 0
    %v120 = vsel %vm107, %v95, 0
    %v123 = vsel %vm107, %v96, 0
    %125 = vmatprep.subr.bf16.mxu0 %v111
    %126 = vmatpush1.bf16.msra.mxu0 %v108
    %127 = vmatprep.subr.bf16.mxu0 0
    %128 = vmatpush1.bf16.msra.mxu0 0
    %129 = vmatprep.subr.bf16.mxu0 0
    %130 = vmatpush1.bf16.msra.mxu0 0
    %131 = vmatprep.subr.bf16.mxu0 0
    %132 = vmatpush1.bf16.msra.mxu0 0
    %133 = vmatprep.subr.bf16.mxu0 0
    %134 = vmatpush1.bf16.msra.mxu0 0
    %135 = vmatprep.subr.bf16.mxu0 0
    %136 = vmatpush1.bf16.msra.mxu0 0
    %137 = vmatprep.subr.bf16.mxu0 0
    %138 = vmatpush1.bf16.msra.mxu0 0
    %139 = vmatprep.subr.bf16.mxu0 0
    %140 = vmatpush1.bf16.msra.mxu0 0
    %141 = vmatprep.subr.bf16.mxu0 0
    %142 = vmatpush1.bf16.msra.mxu0 0
    %143 = vmatprep.subr.bf16.mxu0 0
    %144 = vmatpush1.bf16.msra.mxu0 0
    %145 = vmatprep.subr.bf16.mxu0 0
    %146 = vmatpush1.bf16.msra.mxu0 0
    %147 = vmatprep.subr.bf16.mxu0 0
    %148 = vmatpush1.bf16.msra.mxu0 0
    %149 = vmatprep.subr.bf16.mxu0 0
    %150 = vmatpush1.bf16.msra.mxu0 0
    %151 = vmatprep.subr.bf16.mxu0 0
    %152 = vmatpush1.bf16.msra.mxu0 0
    %153 = vmatprep.subr.bf16.mxu0 0
    %154 = vmatpush1.bf16.msra.mxu0 0
    %155 = vmatprep.subr.bf16.mxu0 0
    %156 = vmatpush1.bf16.msra.mxu0 0
    %157 = vmatprep.mubr.bf16.mxu0 0
    %158 = vmatmul.mubr.bf16.gmra.mrb[0].mxu0 %v105
    %v159 = vpop.f32.mrb[0].mxu0
    %v160 = vadd.f32 0.0, %v159
    %v161 = vpop.f32.mrb[0].mxu0
    %v162 = vadd.f32 0.0, %v161
    %v163 = vpop.f32.mrb[0].mxu0
    %v164 = vpop.f32.mrb[0].mxu0
    %165 = vdwg.mxu0
    %166 = vmatprep.subr.bf16.mxu0 %v117
    %167 = vmatpush1.bf16.msra.mxu0 %v114
    %168 = vmatprep.subr.bf16.mxu0 0
    %169 = vmatpush1.bf16.msra.mxu0 0
    %170 = vmatprep.subr.bf16.mxu0 0
    %171 = vmatpush1.bf16.msra.mxu0 0
    %172 = vmatprep.subr.bf16.mxu0 0
    %173 = vmatpush1.bf16.msra.mxu0 0
    %174 = vmatprep.subr.bf16.mxu0 0
    %175 = vmatpush1.bf16.msra.mxu0 0
    %176 = vmatprep.subr.bf16.mxu0 0
    %177 = vmatpush1.bf16.msra.mxu0 0
    %178 = vmatprep.subr.bf16.mxu0 0
    %179 = vmatpush1.bf16.msra.mxu0 0
    %180 = vmatprep.subr.bf16.mxu0 0
    %181 = vmatpush1.bf16.msra.mxu0 0
    %182 = vmatprep.subr.bf16.mxu0 0
    %183 = vmatpush1.bf16.msra.mxu0 0
    %184 = vmatprep.subr.bf16.mxu0 0
    %185 = vmatpush1.bf16.msra.mxu0 0
    %186 = vmatprep.subr.bf16.mxu0 0
    %187 = vmatpush1.bf16.msra.mxu0 0
    %188 = vmatprep.subr.bf16.mxu0 0
    %189 = vmatpush1.bf16.msra.mxu0 0
    %190 = vmatprep.subr.bf16.mxu0 0
    %191 = vmatpush1.bf16.msra.mxu0 0
    %192 = vmatprep.subr.bf16.mxu0 0
    %193 = vmatpush1.bf16.msra.mxu0 0
    %194 = vmatprep.subr.bf16.mxu0 0
    %195 = vmatpush1.bf16.msra.mxu0 0
    %196 = vmatprep.subr.bf16.mxu0 0
    %197 = vmatpush1.bf16.msra.mxu0 0
    %198 = vmatprep.mubr.bf16.mxu0 0
    %199 = vmatmul.mubr.bf16.gmra.mrb[0].mxu0 %v105
    %v200 = vpop.f32.mrb[0].mxu0
    %v201 = vadd.f32 0.0, %v200
    %v202 = vpop.f32.mrb[0].mxu0
    %v203 = vadd.f32 0.0, %v202
    %v204 = vpop.f32.mrb[0].mxu0
    %v205 = vpop.f32.mrb[0].mxu0
    %206 = vdwg.mxu0
    %207 = vmatprep.subr.bf16.mxu0 %v123
    %208 = vmatpush1.bf16.msra.mxu0 %v120
    %209 = vmatprep.subr.bf16.mxu0 0
    %210 = vmatpush1.bf16.msra.mxu0 0
    %211 = vmatprep.subr.bf16.mxu0 0
    %212 = vmatpush1.bf16.msra.mxu0 0
    %213 = vmatprep.subr.bf16.mxu0 0
    %214 = vmatpush1.bf16.msra.mxu0 0
    %215 = vmatprep.subr.bf16.mxu0 0
    %216 = vmatpush1.bf16.msra.mxu0 0
    %217 = vmatprep.subr.bf16.mxu0 0
    %218 = vmatpush1.bf16.msra.mxu0 0
    %219 = vmatprep.subr.bf16.mxu0 0
    %220 = vmatpush1.bf16.msra.mxu0 0
    %221 = vmatprep.subr.bf16.mxu0 0
    %222 = vmatpush1.bf16.msra.mxu0 0
    %223 = vmatprep.subr.bf16.mxu0 0
    %224 = vmatpush1.bf16.msra.mxu0 0
    %225 = vmatprep.subr.bf16.mxu0 0
    %226 = vmatpush1.bf16.msra.mxu0 0
    %227 = vmatprep.subr.bf16.mxu0 0
    %228 = vmatpush1.bf16.msra.mxu0 0
    %229 = vmatprep.subr.bf16.mxu0 0
    %230 = vmatpush1.bf16.msra.mxu0 0
    %231 = vmatprep.subr.bf16.mxu0 0
    %232 = vmatpush1.bf16.msra.mxu0 0
    %233 = vmatprep.subr.bf16.mxu0 0
    %234 = vmatpush1.bf16.msra.mxu0 0
    %235 = vmatprep.subr.bf16.mxu0 0
    %236 = vmatpush1.bf16.msra.mxu0 0
    %237 = vmatprep.subr.bf16.mxu0 0
    %238 = vmatpush1.bf16.msra.mxu0 0
    %239 = vmatprep.mubr.bf16.mxu0 0
    %240 = vmatmul.mubr.bf16.gmra.mrb[0].mxu0 %v105
    %v241 = vpop.f32.mrb[0].mxu0
    %v242 = vadd.f32 0.0, %v241
    %v243 = vpop.f32.mrb[0].mxu0
    %v244 = vadd.f32 0.0, %v243
    %v245 = vpop.f32.mrb[0].mxu0
    %v246 = vpop.f32.mrb[0].mxu0
    %247 = vdwg.mxu0
    %v249 = vsel %vm103, %v78, 0
    %v251 = vsel %vm107, %v77, 0
    %v254 = vsel %vm107, %v69, 0
    %v257 = vsel %vm107, %v70, 0
    %v260 = vsel %vm107, %v71, 0
    %v263 = vsel %vm107, %v72, 0
    %v266 = vsel %vm107, %v73, 0
    %268 = vmatprep.subr.bf16.mxu0 %v254
    %269 = vmatpush1.bf16.msra.mxu0 %v251
    %270 = vmatprep.subr.bf16.mxu0 0
    %271 = vmatpush1.bf16.msra.mxu0 0
    %272 = vmatprep.subr.bf16.mxu0 0
    %273 = vmatpush1.bf16.msra.mxu0 0
    %274 = vmatprep.subr.bf16.mxu0 0
    %275 = vmatpush1.bf16.msra.mxu0 0
    %276 = vmatprep.subr.bf16.mxu0 0
    %277 = vmatpush1.bf16.msra.mxu0 0
    %278 = vmatprep.subr.bf16.mxu0 0
    %279 = vmatpush1.bf16.msra.mxu0 0
    %280 = vmatprep.subr.bf16.mxu0 0
    %281 = vmatpush1.bf16.msra.mxu0 0
    %282 = vmatprep.subr.bf16.mxu0 0
    %283 = vmatpush1.bf16.msra.mxu0 0
    %284 = vmatprep.subr.bf16.mxu0 0
    %285 = vmatpush1.bf16.msra.mxu0 0
    %286 = vmatprep.subr.bf16.mxu0 0
    %287 = vmatpush1.bf16.msra.mxu0 0
    %288 = vmatprep.subr.bf16.mxu0 0
    %289 = vmatpush1.bf16.msra.mxu0 0
    %290 = vmatprep.subr.bf16.mxu0 0
    %291 = vmatpush1.bf16.msra.mxu0 0
    %292 = vmatprep.subr.bf16.mxu0 0
    %293 = vmatpush1.bf16.msra.mxu0 0
    %294 = vmatprep.subr.bf16.mxu0 0
    %295 = vmatpush1.bf16.msra.mxu0 0
    %296 = vmatprep.subr.bf16.mxu0 0
    %297 = vmatpush1.bf16.msra.mxu0 0
    %298 = vmatprep.subr.bf16.mxu0 0
    %299 = vmatpush1.bf16.msra.mxu0 0
    %300 = vmatprep.mubr.bf16.mxu0 0
    %301 = vmatmul.mubr.bf16.gmra.mrb[0].mxu0 %v249
    %v302 = vpop.f32.mrb[0].mxu0
    %v303 = vadd.f32 %v160, %v302
    %v304 = vpop.f32.mrb[0].mxu0
    %v305 = vadd.f32 %v162, %v304
    %v306 = vpop.f32.mrb[0].mxu0
    %v307 = vpop.f32.mrb[0].mxu0
    %308 = vdwg.mxu0
    %309 = vmatprep.subr.bf16.mxu0 %v260
    %310 = vmatpush1.bf16.msra.mxu0 %v257
    %311 = vmatprep.subr.bf16.mxu0 0
    %312 = vmatpush1.bf16.msra.mxu0 0
    %313 = vmatprep.subr.bf16.mxu0 0
    %314 = vmatpush1.bf16.msra.mxu0 0
    %315 = vmatprep.subr.bf16.mxu0 0
    %316 = vmatpush1.bf16.msra.mxu0 0
    %317 = vmatprep.subr.bf16.mxu0 0
    %318 = vmatpush1.bf16.msra.mxu0 0
    %319 = vmatprep.subr.bf16.mxu0 0
    %320 = vmatpush1.bf16.msra.mxu0 0
    %321 = vmatprep.subr.bf16.mxu0 0
    %322 = vmatpush1.bf16.msra.mxu0 0
    %323 = vmatprep.subr.bf16.mxu0 0
    %324 = vmatpush1.bf16.msra.mxu0 0
    %325 = vmatprep.subr.bf16.mxu0 0
    %326 = vmatpush1.bf16.msra.mxu0 0
    %327 = vmatprep.subr.bf16.mxu0 0
    %328 = vmatpush1.bf16.msra.mxu0 0
    %329 = vmatprep.subr.bf16.mxu0 0
    %330 = vmatpush1.bf16.msra.mxu0 0
    %331 = vmatprep.subr.bf16.mxu0 0
    %332 = vmatpush1.bf16.msra.mxu0 0
    %333 = vmatprep.subr.bf16.mxu0 0
    %334 = vmatpush1.bf16.msra.mxu0 0
    %335 = vmatprep.subr.bf16.mxu0 0
    %336 = vmatpush1.bf16.msra.mxu0 0
    %337 = vmatprep.subr.bf16.mxu0 0
    %338 = vmatpush1.bf16.msra.mxu0 0
    %339 = vmatprep.subr.bf16.mxu0 0
    %340 = vmatpush1.bf16.msra.mxu0 0
    %341 = vmatprep.mubr.bf16.mxu0 0
    %342 = vmatmul.mubr.bf16.gmra.mrb[0].mxu0 %v249
    %v343 = vpop.f32.mrb[0].mxu0
    %v344 = vadd.f32 %v201, %v343
    %v345 = vpop.f32.mrb[0].mxu0
    %v346 = vadd.f32 %v203, %v345
    %v347 = vpop.f32.mrb[0].mxu0
    %v348 = vpop.f32.mrb[0].mxu0
    %349 = vdwg.mxu0
    %350 = vmatprep.subr.bf16.mxu0 %v266
    %351 = vmatpush1.bf16.msra.mxu0 %v263
    %352 = vmatprep.subr.bf16.mxu0 0
    %353 = vmatpush1.bf16.msra.mxu0 0
    %354 = vmatprep.subr.bf16.mxu0 0
    %355 = vmatpush1.bf16.msra.mxu0 0
    %356 = vmatprep.subr.bf16.mxu0 0
    %357 = vmatpush1.bf16.msra.mxu0 0
    %358 = vmatprep.subr.bf16.mxu0 0
    %359 = vmatpush1.bf16.msra.mxu0 0
    %360 = vmatprep.subr.bf16.mxu0 0
    %361 = vmatpush1.bf16.msra.mxu0 0
    %362 = vmatprep.subr.bf16.mxu0 0
    %363 = vmatpush1.bf16.msra.mxu0 0
    %364 = vmatprep.subr.bf16.mxu0 0
    %365 = vmatpush1.bf16.msra.mxu0 0
    %366 = vmatprep.subr.bf16.mxu0 0
    %367 = vmatpush1.bf16.msra.mxu0 0
    %368 = vmatprep.subr.bf16.mxu0 0
    %369 = vmatpush1.bf16.msra.mxu0 0
    %370 = vmatprep.subr.bf16.mxu0 0
    %371 = vmatpush1.bf16.msra.mxu0 0
    %372 = vmatprep.subr.bf16.mxu0 0
    %373 = vmatpush1.bf16.msra.mxu0 0
    %374 = vmatprep.subr.bf16.mxu0 0
    %375 = vmatpush1.bf16.msra.mxu0 0
    %376 = vmatprep.subr.bf16.mxu0 0
    %377 = vmatpush1.bf16.msra.mxu0 0
    %378 = vmatprep.subr.bf16.mxu0 0
    %379 = vmatpush1.bf16.msra.mxu0 0
    %380 = vmatprep.subr.bf16.mxu0 0
    %381 = vmatpush1.bf16.msra.mxu0 0
    %382 = vmatprep.mubr.bf16.mxu0 0
    %383 = vmatmul.mubr.bf16.gmra.mrb[0].mxu0 %v249
    %v384 = vpop.f32.mrb[0].mxu0
    %v385 = vadd.f32 %v242, %v384
    %v386 = vpop.f32.mrb[0].mxu0
    %v387 = vadd.f32 %v244, %v386
    %v388 = vpop.f32.mrb[0].mxu0
    %v389 = vpop.f32.mrb[0].mxu0
    %390 = vdwg.mxu0
    %391 = vrot.lane.b32.xlu0 %v49, 17
    %v392 = vpop.permute.xlu0 %391
    %393 = vrot.lane.b32.xlu0 %v44, 17
    %v394 = vpop.permute.xlu0 %393
    %395 = vrot.lane.b32.xlu0 %v45, 17
    %v396 = vpop.permute.xlu0 %395
    %397 = vrot.lane.b32.xlu0 %v46, 17
    %v398 = vpop.permute.xlu0 %397
    %399 = vrot.lane.b32.xlu0 %v47, 17
    %v400 = vpop.permute.xlu0 %399
    %401 = vrot.lane.b32.xlu0 %v48, 17
    %v402 = vpop.permute.xlu0 %401
    %vm403 = vcmask 138240
    %v404 = vsel %vm403, %v394, %v396
    %v405 = vsel %vm403, %v396, %v398
    %v406 = vsel %vm403, %v398, %v400
    %v407 = vsel %vm403, %v400, %v402
    %v408 = vsel %vm403, %v402, %v392
    %vm409 = vcmask 138240
    %v412 = vsel %vm409, %v392, %v394
    %s413 = scalar_lea.vmem %s2, 4
    %v414 = vld [vmem:[%s413] sm:$0x3]
    %v416 = vsel %vm103, %v414, 0
    %v418 = vsel %vm107, %v412, 0
    %v421 = vsel %vm107, %v404, 0
    %v424 = vsel %vm107, %v405, 0
    %v427 = vsel %vm107, %v406, 0
    %v430 = vsel %vm107, %v407, 0
    %v433 = vsel %vm107, %v408, 0
    %435 = vmatprep.subr.bf16.mxu0 %v421
    %436 = vmatpush1.bf16.msra.mxu0 %v418
    %437 = vmatprep.subr.bf16.mxu0 0
    %438 = vmatpush1.bf16.msra.mxu0 0
    %439 = vmatprep.subr.bf16.mxu0 0
    %440 = vmatpush1.bf16.msra.mxu0 0
    %441 = vmatprep.subr.bf16.mxu0 0
    %442 = vmatpush1.bf16.msra.mxu0 0
    %443 = vmatprep.subr.bf16.mxu0 0
    %444 = vmatpush1.bf16.msra.mxu0 0
    %445 = vmatprep.subr.bf16.mxu0 0
    %446 = vmatpush1.bf16.msra.mxu0 0
    %447 = vmatprep.subr.bf16.mxu0 0
    %448 = vmatpush1.bf16.msra.mxu0 0
    %449 = vmatprep.subr.bf16.mxu0 0
    %450 = vmatpush1.bf16.msra.mxu0 0
    %451 = vmatprep.subr.bf16.mxu0 0
    %452 = vmatpush1.bf16.msra.mxu0 0
    %453 = vmatprep.subr.bf16.mxu0 0
    %454 = vmatpush1.bf16.msra.mxu0 0
    %455 = vmatprep.subr.bf16.mxu0 0
    %456 = vmatpush1.bf16.msra.mxu0 0
    %457 = vmatprep.subr.bf16.mxu0 0
    %458 = vmatpush1.bf16.msra.mxu0 0
    %459 = vmatprep.subr.bf16.mxu0 0
    %460 = vmatpush1.bf16.msra.mxu0 0
    %461 = vmatprep.subr.bf16.mxu0 0
    %462 = vmatpush1.bf16.msra.mxu0 0
    %463 = vmatprep.subr.bf16.mxu0 0
    %464 = vmatpush1.bf16.msra.mxu0 0
    %465 = vmatprep.subr.bf16.mxu0 0
    %466 = vmatpush1.bf16.msra.mxu0 0
    %467 = vmatprep.mubr.bf16.mxu0 0
    %468 = vmatmul.mubr.bf16.gmra.mrb[0].mxu0 %v416
    %v469 = vpop.f32.mrb[0].mxu0
    %v470 = vadd.f32 0.0, %v469
    %v471 = vpop.f32.mrb[0].mxu0
    %v472 = vadd.f32 0.0, %v471
    %v473 = vpop.f32.mrb[0].mxu0
    %v474 = vpop.f32.mrb[0].mxu0
    %475 = vdwg.mxu0
    %476 = vmatprep.subr.bf16.mxu0 %v427
    %477 = vmatpush1.bf16.msra.mxu0 %v424
    %478 = vmatprep.subr.bf16.mxu0 0
    %479 = vmatpush1.bf16.msra.mxu0 0
    %480 = vmatprep.subr.bf16.mxu0 0
    %481 = vmatpush1.bf16.msra.mxu0 0
    %482 = vmatprep.subr.bf16.mxu0 0
    %483 = vmatpush1.bf16.msra.mxu0 0
    %484 = vmatprep.subr.bf16.mxu0 0
    %485 = vmatpush1.bf16.msra.mxu0 0
    %486 = vmatprep.subr.bf16.mxu0 0
    %487 = vmatpush1.bf16.msra.mxu0 0
    %488 = vmatprep.subr.bf16.mxu0 0
    %489 = vmatpush1.bf16.msra.mxu0 0
    %490 = vmatprep.subr.bf16.mxu0 0
    %491 = vmatpush1.bf16.msra.mxu0 0
    %492 = vmatprep.subr.bf16.mxu0 0
    %493 = vmatpush1.bf16.msra.mxu0 0
    %494 = vmatprep.subr.bf16.mxu0 0
    %495 = vmatpush1.bf16.msra.mxu0 0
    %496 = vmatprep.subr.bf16.mxu0 0
    %497 = vmatpush1.bf16.msra.mxu0 0
    %498 = vmatprep.subr.bf16.mxu0 0
    %499 = vmatpush1.bf16.msra.mxu0 0
    %500 = vmatprep.subr.bf16.mxu0 0
    %501 = vmatpush1.bf16.msra.mxu0 0
    %502 = vmatprep.subr.bf16.mxu0 0
    %503 = vmatpush1.bf16.msra.mxu0 0
    %504 = vmatprep.subr.bf16.mxu0 0
    %505 = vmatpush1.bf16.msra.mxu0 0
    %506 = vmatprep.subr.bf16.mxu0 0
    %507 = vmatpush1.bf16.msra.mxu0 0
    %508 = vmatprep.mubr.bf16.mxu0 0
    %509 = vmatmul.mubr.bf16.gmra.mrb[0].mxu0 %v416
    %v510 = vpop.f32.mrb[0].mxu0
    %v511 = vadd.f32 0.0, %v510
    %v512 = vpop.f32.mrb[0].mxu0
    %v513 = vadd.f32 0.0, %v512
    %v514 = vpop.f32.mrb[0].mxu0
    %v515 = vpop.f32.mrb[0].mxu0
    %516 = vdwg.mxu0
    %517 = vmatprep.subr.bf16.mxu0 %v433
    %518 = vmatpush1.bf16.msra.mxu0 %v430
    %519 = vmatprep.subr.bf16.mxu0 0
    %520 = vmatpush1.bf16.msra.mxu0 0
    %521 = vmatprep.subr.bf16.mxu0 0
    %522 = vmatpush1.bf16.msra.mxu0 0
    %523 = vmatprep.subr.bf16.mxu0 0
    %524 = vmatpush1.bf16.msra.mxu0 0
    %525 = vmatprep.subr.bf16.mxu0 0
    %526 = vmatpush1.bf16.msra.mxu0 0
    %527 = vmatprep.subr.bf16.mxu0 0
    %528 = vmatpush1.bf16.msra.mxu0 0
    %529 = vmatprep.subr.bf16.mxu0 0
    %530 = vmatpush1.bf16.msra.mxu0 0
    %531 = vmatprep.subr.bf16.mxu0 0
    %532 = vmatpush1.bf16.msra.mxu0 0
    %533 = vmatprep.subr.bf16.mxu0 0
    %534 = vmatpush1.bf16.msra.mxu0 0
    %535 = vmatprep.subr.bf16.mxu0 0
    %536 = vmatpush1.bf16.msra.mxu0 0
    %537 = vmatprep.subr.bf16.mxu0 0
    %538 = vmatpush1.bf16.msra.mxu0 0
    %539 = vmatprep.subr.bf16.mxu0 0
    %540 = vmatpush1.bf16.msra.mxu0 0
    %541 = vmatprep.subr.bf16.mxu0 0
    %542 = vmatpush1.bf16.msra.mxu0 0
    %543 = vmatprep.subr.bf16.mxu0 0
    %544 = vmatpush1.bf16.msra.mxu0 0
    %545 = vmatprep.subr.bf16.mxu0 0
    %546 = vmatpush1.bf16.msra.mxu0 0
    %547 = vmatprep.subr.bf16.mxu0 0
    %548 = vmatpush1.bf16.msra.mxu0 0
    %549 = vmatprep.mubr.bf16.mxu0 0
    %550 = vmatmul.mubr.bf16.gmra.mrb[0].mxu0 %v416
    %v551 = vpop.f32.mrb[0].mxu0
    %v552 = vadd.f32 0.0, %v551
    %v553 = vpop.f32.mrb[0].mxu0
    %v554 = vadd.f32 0.0, %v553
    %v555 = vpop.f32.mrb[0].mxu0
    %v556 = vpop.f32.mrb[0].mxu0
    %557 = vdwg.mxu0
    %v558 = vadd.f32 %v303, %v470
    %v559 = vadd.f32 %v305, %v472
    %v560 = vadd.f32 %v344, %v511
    %v561 = vadd.f32 %v346, %v513
    %v562 = vadd.f32 %v385, %v552
    %v563 = vadd.f32 %v387, %v554
    %564 = vrot.lane.b32.xlu0 %v49, 1
    %v565 = vpop.permute.xlu0 %564
    %566 = vrot.lane.b32.xlu0 %v44, 1
    %v567 = vpop.permute.xlu0 %566
    %568 = vrot.lane.b32.xlu0 %v45, 1
    %v569 = vpop.permute.xlu0 %568
    %570 = vrot.lane.b32.xlu0 %v46, 1
    %v571 = vpop.permute.xlu0 %570
    %572 = vrot.lane.b32.xlu0 %v47, 1
    %v573 = vpop.permute.xlu0 %572
    %574 = vrot.lane.b32.xlu0 %v48, 1
    %v575 = vpop.permute.xlu0 %574
    %vm576 = vcmask 7168
    %v577 = vsel %vm576, %v567, %v569
    %v578 = vsel %vm576, %v569, %v571
    %v579 = vsel %vm576, %v571, %v573
    %v580 = vsel %vm576, %v573, %v575
    %v581 = vsel %vm576, %v575, %v565
    %vm582 = vcmask 7168
    %v585 = vsel %vm582, %v565, %v567
    %s586 = scalar_lea.vmem %s2, 6
    %v587 = vld [vmem:[%s586] sm:$0x3]
    %v589 = vsel %vm103, %v587, 0
    %v591 = vsel %vm107, %v585, 0
    %v594 = vsel %vm107, %v577, 0
    %v597 = vsel %vm107, %v578, 0
    %v600 = vsel %vm107, %v579, 0
    %v603 = vsel %vm107, %v580, 0
    %v606 = vsel %vm107, %v581, 0
    %608 = vmatprep.subr.bf16.mxu0 %v594
    %609 = vmatpush1.bf16.msra.mxu0 %v591
    %610 = vmatprep.subr.bf16.mxu0 0
    %611 = vmatpush1.bf16.msra.mxu0 0
    %612 = vmatprep.subr.bf16.mxu0 0
    %613 = vmatpush1.bf16.msra.mxu0 0
    %614 = vmatprep.subr.bf16.mxu0 0
    %615 = vmatpush1.bf16.msra.mxu0 0
    %616 = vmatprep.subr.bf16.mxu0 0
    %617 = vmatpush1.bf16.msra.mxu0 0
    %618 = vmatprep.subr.bf16.mxu0 0
    %619 = vmatpush1.bf16.msra.mxu0 0
    %620 = vmatprep.subr.bf16.mxu0 0
    %621 = vmatpush1.bf16.msra.mxu0 0
    %622 = vmatprep.subr.bf16.mxu0 0
    %623 = vmatpush1.bf16.msra.mxu0 0
    %624 = vmatprep.subr.bf16.mxu0 0
    %625 = vmatpush1.bf16.msra.mxu0 0
    %626 = vmatprep.subr.bf16.mxu0 0
    %627 = vmatpush1.bf16.msra.mxu0 0
    %628 = vmatprep.subr.bf16.mxu0 0
    %629 = vmatpush1.bf16.msra.mxu0 0
    %630 = vmatprep.subr.bf16.mxu0 0
    %631 = vmatpush1.bf16.msra.mxu0 0
    %632 = vmatprep.subr.bf16.mxu0 0
    %633 = vmatpush1.bf16.msra.mxu0 0
    %634 = vmatprep.subr.bf16.mxu0 0
    %635 = vmatpush1.bf16.msra.mxu0 0
    %636 = vmatprep.subr.bf16.mxu0 0
    %637 = vmatpush1.bf16.msra.mxu0 0
    %638 = vmatprep.subr.bf16.mxu0 0
    %639 = vmatpush1.bf16.msra.mxu0 0
    %640 = vmatprep.mubr.bf16.mxu0 0
    %641 = vmatmul.mubr.bf16.gmra.mrb[0].mxu0 %v589
    %v642 = vpop.f32.mrb[0].mxu0
    %v643 = vadd.f32 0.0, %v642
    %v644 = vpop.f32.mrb[0].mxu0
    %v645 = vadd.f32 0.0, %v644
    %v646 = vpop.f32.mrb[0].mxu0
    %v647 = vpop.f32.mrb[0].mxu0
    %648 = vdwg.mxu0
    %649 = vmatprep.subr.bf16.mxu0 %v600
    %650 = vmatpush1.bf16.msra.mxu0 %v597
    %651 = vmatprep.subr.bf16.mxu0 0
    %652 = vmatpush1.bf16.msra.mxu0 0
    %653 = vmatprep.subr.bf16.mxu0 0
    %654 = vmatpush1.bf16.msra.mxu0 0
    %655 = vmatprep.subr.bf16.mxu0 0
    %656 = vmatpush1.bf16.msra.mxu0 0
    %657 = vmatprep.subr.bf16.mxu0 0
    %658 = vmatpush1.bf16.msra.mxu0 0
    %659 = vmatprep.subr.bf16.mxu0 0
    %660 = vmatpush1.bf16.msra.mxu0 0
    %661 = vmatprep.subr.bf16.mxu0 0
    %662 = vmatpush1.bf16.msra.mxu0 0
    %663 = vmatprep.subr.bf16.mxu0 0
    %664 = vmatpush1.bf16.msra.mxu0 0
    %665 = vmatprep.subr.bf16.mxu0 0
    %666 = vmatpush1.bf16.msra.mxu0 0
    %667 = vmatprep.subr.bf16.mxu0 0
    %668 = vmatpush1.bf16.msra.mxu0 0
    %669 = vmatprep.subr.bf16.mxu0 0
    %670 = vmatpush1.bf16.msra.mxu0 0
    %671 = vmatprep.subr.bf16.mxu0 0
    %672 = vmatpush1.bf16.msra.mxu0 0
    %673 = vmatprep.subr.bf16.mxu0 0
    %674 = vmatpush1.bf16.msra.mxu0 0
    %675 = vmatprep.subr.bf16.mxu0 0
    %676 = vmatpush1.bf16.msra.mxu0 0
    %677 = vmatprep.subr.bf16.mxu0 0
    %678 = vmatpush1.bf16.msra.mxu0 0
    %679 = vmatprep.subr.bf16.mxu0 0
    %680 = vmatpush1.bf16.msra.mxu0 0
    %681 = vmatprep.mubr.bf16.mxu0 0
    %682 = vmatmul.mubr.bf16.gmra.mrb[0].mxu0 %v589
    %v683 = vpop.f32.mrb[0].mxu0
    %v684 = vadd.f32 0.0, %v683
    %v685 = vpop.f32.mrb[0].mxu0
    %v686 = vadd.f32 0.0, %v685
    %v687 = vpop.f32.mrb[0].mxu0
    %v688 = vpop.f32.mrb[0].mxu0
    %689 = vdwg.mxu0
    %690 = vmatprep.subr.bf16.mxu0 %v606
    %691 = vmatpush1.bf16.msra.mxu0 %v603
    %692 = vmatprep.subr.bf16.mxu0 0
    %693 = vmatpush1.bf16.msra.mxu0 0
    %694 = vmatprep.subr.bf16.mxu0 0
    %695 = vmatpush1.bf16.msra.mxu0 0
    %696 = vmatprep.subr.bf16.mxu0 0
    %697 = vmatpush1.bf16.msra.mxu0 0
    %698 = vmatprep.subr.bf16.mxu0 0
    %699 = vmatpush1.bf16.msra.mxu0 0
    %700 = vmatprep.subr.bf16.mxu0 0
    %701 = vmatpush1.bf16.msra.mxu0 0
    %702 = vmatprep.subr.bf16.mxu0 0
    %703 = vmatpush1.bf16.msra.mxu0 0
    %704 = vmatprep.subr.bf16.mxu0 0
    %705 = vmatpush1.bf16.msra.mxu0 0
    %706 = vmatprep.subr.bf16.mxu0 0
    %707 = vmatpush1.bf16.msra.mxu0 0
    %708 = vmatprep.subr.bf16.mxu0 0
    %709 = vmatpush1.bf16.msra.mxu0 0
    %710 = vmatprep.subr.bf16.mxu0 0
    %711 = vmatpush1.bf16.msra.mxu0 0
    %712 = vmatprep.subr.bf16.mxu0 0
    %713 = vmatpush1.bf16.msra.mxu0 0
    %714 = vmatprep.subr.bf16.mxu0 0
    %715 = vmatpush1.bf16.msra.mxu0 0
    %716 = vmatprep.subr.bf16.mxu0 0
    %717 = vmatpush1.bf16.msra.mxu0 0
    %718 = vmatprep.subr.bf16.mxu0 0
    %719 = vmatpush1.bf16.msra.mxu0 0
    %720 = vmatprep.subr.bf16.mxu0 0
    %721 = vmatpush1.bf16.msra.mxu0 0
    %722 = vmatprep.mubr.bf16.mxu0 0
    %723 = vmatmul.mubr.bf16.gmra.mrb[0].mxu0 %v589
    %v724 = vpop.f32.mrb[0].mxu0
    %v725 = vadd.f32 0.0, %v724
    %v726 = vpop.f32.mrb[0].mxu0
    %v727 = vadd.f32 0.0, %v726
    %v728 = vpop.f32.mrb[0].mxu0
    %v729 = vpop.f32.mrb[0].mxu0
    %730 = vdwg.mxu0
    %v731 = vadd.f32 %v558, %v643
    %v732 = vadd.f32 %v559, %v645
    %v733 = vadd.f32 %v560, %v684
    %v734 = vadd.f32 %v561, %v686
    %v735 = vadd.f32 %v562, %v725
    %v736 = vadd.f32 %v563, %v727
    %s737 = scalar_lea.vmem %s2, 8
    %v738 = vld [vmem:[%s737] sm:$0x3]
    %v740 = vsel %vm103, %v738, 0
    %v743 = vsel %vm107, %v44, 0
    %v746 = vsel %vm107, %v45, 0
    %v749 = vsel %vm107, %v46, 0
    %v752 = vsel %vm107, %v47, 0
    %v755 = vsel %vm107, %v48, 0
    %v758 = vsel %vm107, %v49, 0
    %760 = vmatprep.subr.bf16.mxu0 %v746
    %761 = vmatpush1.bf16.msra.mxu0 %v743
    %762 = vmatprep.subr.bf16.mxu0 0
    %763 = vmatpush1.bf16.msra.mxu0 0
    %764 = vmatprep.subr.bf16.mxu0 0
    %765 = vmatpush1.bf16.msra.mxu0 0
    %766 = vmatprep.subr.bf16.mxu0 0
    %767 = vmatpush1.bf16.msra.mxu0 0
    %768 = vmatprep.subr.bf16.mxu0 0
    %769 = vmatpush1.bf16.msra.mxu0 0
    %770 = vmatprep.subr.bf16.mxu0 0
    %771 = vmatpush1.bf16.msra.mxu0 0
    %772 = vmatprep.subr.bf16.mxu0 0
    %773 = vmatpush1.bf16.msra.mxu0 0
    %774 = vmatprep.subr.bf16.mxu0 0
    %775 = vmatpush1.bf16.msra.mxu0 0
    %776 = vmatprep.subr.bf16.mxu0 0
    %777 = vmatpush1.bf16.msra.mxu0 0
    %778 = vmatprep.subr.bf16.mxu0 0
    %779 = vmatpush1.bf16.msra.mxu0 0
    %780 = vmatprep.subr.bf16.mxu0 0
    %781 = vmatpush1.bf16.msra.mxu0 0
    %782 = vmatprep.subr.bf16.mxu0 0
    %783 = vmatpush1.bf16.msra.mxu0 0
    %784 = vmatprep.subr.bf16.mxu0 0
    %785 = vmatpush1.bf16.msra.mxu0 0
    %786 = vmatprep.subr.bf16.mxu0 0
    %787 = vmatpush1.bf16.msra.mxu0 0
    %788 = vmatprep.subr.bf16.mxu0 0
    %789 = vmatpush1.bf16.msra.mxu0 0
    %790 = vmatprep.subr.bf16.mxu0 0
    %791 = vmatpush1.bf16.msra.mxu0 0
    %792 = vmatprep.mubr.bf16.mxu0 0
    %793 = vmatmul.mubr.bf16.gmra.mrb[0].mxu0 %v740
    %v794 = vpop.f32.mrb[0].mxu0
    %v795 = vadd.f32 0.0, %v794
    %v796 = vpop.f32.mrb[0].mxu0
    %v797 = vadd.f32 0.0, %v796
    %v798 = vpop.f32.mrb[0].mxu0
    %v799 = vpop.f32.mrb[0].mxu0
    %800 = vdwg.mxu0
    %801 = vmatprep.subr.bf16.mxu0 %v752
    %802 = vmatpush1.bf16.msra.mxu0 %v749
    %803 = vmatprep.subr.bf16.mxu0 0
    %804 = vmatpush1.bf16.msra.mxu0 0
    %805 = vmatprep.subr.bf16.mxu0 0
    %806 = vmatpush1.bf16.msra.mxu0 0
    %807 = vmatprep.subr.bf16.mxu0 0
    %808 = vmatpush1.bf16.msra.mxu0 0
    %809 = vmatprep.subr.bf16.mxu0 0
    %810 = vmatpush1.bf16.msra.mxu0 0
    %811 = vmatprep.subr.bf16.mxu0 0
    %812 = vmatpush1.bf16.msra.mxu0 0
    %813 = vmatprep.subr.bf16.mxu0 0
    %814 = vmatpush1.bf16.msra.mxu0 0
    %815 = vmatprep.subr.bf16.mxu0 0
    %816 = vmatpush1.bf16.msra.mxu0 0
    %817 = vmatprep.subr.bf16.mxu0 0
    %818 = vmatpush1.bf16.msra.mxu0 0
    %819 = vmatprep.subr.bf16.mxu0 0
    %820 = vmatpush1.bf16.msra.mxu0 0
    %821 = vmatprep.subr.bf16.mxu0 0
    %822 = vmatpush1.bf16.msra.mxu0 0
    %823 = vmatprep.subr.bf16.mxu0 0
    %824 = vmatpush1.bf16.msra.mxu0 0
    %825 = vmatprep.subr.bf16.mxu0 0
    %826 = vmatpush1.bf16.msra.mxu0 0
    %827 = vmatprep.subr.bf16.mxu0 0
    %828 = vmatpush1.bf16.msra.mxu0 0
    %829 = vmatprep.subr.bf16.mxu0 0
    %830 = vmatpush1.bf16.msra.mxu0 0
    %831 = vmatprep.subr.bf16.mxu0 0
    %832 = vmatpush1.bf16.msra.mxu0 0
    %833 = vmatprep.mubr.bf16.mxu0 0
    %834 = vmatmul.mubr.bf16.gmra.mrb[0].mxu0 %v740
    %v835 = vpop.f32.mrb[0].mxu0
    %v836 = vadd.f32 0.0, %v835
    %v837 = vpop.f32.mrb[0].mxu0
    %v838 = vadd.f32 0.0, %v837
    %v839 = vpop.f32.mrb[0].mxu0
    %v840 = vpop.f32.mrb[0].mxu0
    %841 = vdwg.mxu0
    %842 = vmatprep.subr.bf16.mxu0 %v758
    %843 = vmatpush1.bf16.msra.mxu0 %v755
    %844 = vmatprep.subr.bf16.mxu0 0
    %845 = vmatpush1.bf16.msra.mxu0 0
    %846 = vmatprep.subr.bf16.mxu0 0
    %847 = vmatpush1.bf16.msra.mxu0 0
    %848 = vmatprep.subr.bf16.mxu0 0
    %849 = vmatpush1.bf16.msra.mxu0 0
    %850 = vmatprep.subr.bf16.mxu0 0
    %851 = vmatpush1.bf16.msra.mxu0 0
    %852 = vmatprep.subr.bf16.mxu0 0
    %853 = vmatpush1.bf16.msra.mxu0 0
    %854 = vmatprep.subr.bf16.mxu0 0
    %855 = vmatpush1.bf16.msra.mxu0 0
    %856 = vmatprep.subr.bf16.mxu0 0
    %857 = vmatpush1.bf16.msra.mxu0 0
    %858 = vmatprep.subr.bf16.mxu0 0
    %859 = vmatpush1.bf16.msra.mxu0 0
    %860 = vmatprep.subr.bf16.mxu0 0
    %861 = vmatpush1.bf16.msra.mxu0 0
    %862 = vmatprep.subr.bf16.mxu0 0
    %863 = vmatpush1.bf16.msra.mxu0 0
    %864 = vmatprep.subr.bf16.mxu0 0
    %865 = vmatpush1.bf16.msra.mxu0 0
    %866 = vmatprep.subr.bf16.mxu0 0
    %867 = vmatpush1.bf16.msra.mxu0 0
    %868 = vmatprep.subr.bf16.mxu0 0
    %869 = vmatpush1.bf16.msra.mxu0 0
    %870 = vmatprep.subr.bf16.mxu0 0
    %871 = vmatpush1.bf16.msra.mxu0 0
    %872 = vmatprep.subr.bf16.mxu0 0
    %873 = vmatpush1.bf16.msra.mxu0 0
    %874 = vmatprep.mubr.bf16.mxu0 0
    %875 = vmatmul.mubr.bf16.gmra.mrb[0].mxu0 %v740
    %v876 = vpop.f32.mrb[0].mxu0
    %v877 = vadd.f32 0.0, %v876
    %v878 = vpop.f32.mrb[0].mxu0
    %v879 = vadd.f32 0.0, %v878
    %v880 = vpop.f32.mrb[0].mxu0
    %v881 = vpop.f32.mrb[0].mxu0
    %882 = vdwg.mxu0
    %v883 = vadd.f32 %v731, %v795
    %v884 = vadd.f32 %v732, %v797
    %v885 = vadd.f32 %v733, %v836
    %v886 = vadd.f32 %v734, %v838
    %v887 = vadd.f32 %v735, %v877
    %v888 = vadd.f32 %v736, %v879
    %889 = vrot.lane.b32.xlu0 %v44, 127
    %v890 = vpop.permute.xlu0 %889
    %891 = vrot.lane.b32.xlu0 %v45, 127
    %v892 = vpop.permute.xlu0 %891
    %893 = vrot.lane.b32.xlu0 %v46, 127
    %v894 = vpop.permute.xlu0 %893
    %895 = vrot.lane.b32.xlu0 %v47, 127
    %v896 = vpop.permute.xlu0 %895
    %897 = vrot.lane.b32.xlu0 %v48, 127
    %v898 = vpop.permute.xlu0 %897
    %899 = vrot.lane.b32.xlu0 %v49, 127
    %v900 = vpop.permute.xlu0 %899
    %vm901 = vcmask 1039360
    %v902 = vsel %vm901, %v890, %v892
    %v903 = vsel %vm901, %v892, %v894
    %v904 = vsel %vm901, %v894, %v896
    %v905 = vsel %vm901, %v896, %v898
    %v906 = vsel %vm901, %v898, %v900
    %vm907 = vcmask 1039360
    %v910 = vsel %vm907, %v900, %v890
    %s911 = scalar_lea.vmem %s2, 10
    %v912 = vld [vmem:[%s911] sm:$0x3]
    %v914 = vsel %vm103, %v912, 0
    %v917 = vsel %vm107, %v902, 0
    %v920 = vsel %vm107, %v903, 0
    %v923 = vsel %vm107, %v904, 0
    %v926 = vsel %vm107, %v905, 0
    %v929 = vsel %vm107, %v906, 0
    %v931 = vsel %vm107, %v910, 0
    %933 = vmatprep.subr.bf16.mxu0 %v920
    %934 = vmatpush1.bf16.msra.mxu0 %v917
    %935 = vmatprep.subr.bf16.mxu0 0
    %936 = vmatpush1.bf16.msra.mxu0 0
    %937 = vmatprep.subr.bf16.mxu0 0
    %938 = vmatpush1.bf16.msra.mxu0 0
    %939 = vmatprep.subr.bf16.mxu0 0
    %940 = vmatpush1.bf16.msra.mxu0 0
    %941 = vmatprep.subr.bf16.mxu0 0
    %942 = vmatpush1.bf16.msra.mxu0 0
    %943 = vmatprep.subr.bf16.mxu0 0
    %944 = vmatpush1.bf16.msra.mxu0 0
    %945 = vmatprep.subr.bf16.mxu0 0
    %946 = vmatpush1.bf16.msra.mxu0 0
    %947 = vmatprep.subr.bf16.mxu0 0
    %948 = vmatpush1.bf16.msra.mxu0 0
    %949 = vmatprep.subr.bf16.mxu0 0
    %950 = vmatpush1.bf16.msra.mxu0 0
    %951 = vmatprep.subr.bf16.mxu0 0
    %952 = vmatpush1.bf16.msra.mxu0 0
    %953 = vmatprep.subr.bf16.mxu0 0
    %954 = vmatpush1.bf16.msra.mxu0 0
    %955 = vmatprep.subr.bf16.mxu0 0
    %956 = vmatpush1.bf16.msra.mxu0 0
    %957 = vmatprep.subr.bf16.mxu0 0
    %958 = vmatpush1.bf16.msra.mxu0 0
    %959 = vmatprep.subr.bf16.mxu0 0
    %960 = vmatpush1.bf16.msra.mxu0 0
    %961 = vmatprep.subr.bf16.mxu0 0
    %962 = vmatpush1.bf16.msra.mxu0 0
    %963 = vmatprep.subr.bf16.mxu0 0
    %964 = vmatpush1.bf16.msra.mxu0 0
    %965 = vmatprep.mubr.bf16.mxu0 0
    %966 = vmatmul.mubr.bf16.gmra.mrb[0].mxu0 %v914
    %v967 = vpop.f32.mrb[0].mxu0
    %v968 = vadd.f32 0.0, %v967
    %v969 = vpop.f32.mrb[0].mxu0
    %v970 = vadd.f32 0.0, %v969
    %v971 = vpop.f32.mrb[0].mxu0
    %v972 = vpop.f32.mrb[0].mxu0
    %973 = vdwg.mxu0
    %974 = vmatprep.subr.bf16.mxu0 %v926
    %975 = vmatpush1.bf16.msra.mxu0 %v923
    %976 = vmatprep.subr.bf16.mxu0 0
    %977 = vmatpush1.bf16.msra.mxu0 0
    %978 = vmatprep.subr.bf16.mxu0 0
    %979 = vmatpush1.bf16.msra.mxu0 0
    %980 = vmatprep.subr.bf16.mxu0 0
    %981 = vmatpush1.bf16.msra.mxu0 0
    %982 = vmatprep.subr.bf16.mxu0 0
    %983 = vmatpush1.bf16.msra.mxu0 0
    %984 = vmatprep.subr.bf16.mxu0 0
    %985 = vmatpush1.bf16.msra.mxu0 0
    %986 = vmatprep.subr.bf16.mxu0 0
    %987 = vmatpush1.bf16.msra.mxu0 0
    %988 = vmatprep.subr.bf16.mxu0 0
    %989 = vmatpush1.bf16.msra.mxu0 0
    %990 = vmatprep.subr.bf16.mxu0 0
    %991 = vmatpush1.bf16.msra.mxu0 0
    %992 = vmatprep.subr.bf16.mxu0 0
    %993 = vmatpush1.bf16.msra.mxu0 0
    %994 = vmatprep.subr.bf16.mxu0 0
    %995 = vmatpush1.bf16.msra.mxu0 0
    %996 = vmatprep.subr.bf16.mxu0 0
    %997 = vmatpush1.bf16.msra.mxu0 0
    %998 = vmatprep.subr.bf16.mxu0 0
    %999 = vmatpush1.bf16.msra.mxu0 0
    %1000 = vmatprep.subr.bf16.mxu0 0
    %1001 = vmatpush1.bf16.msra.mxu0 0
    %1002 = vmatprep.subr.bf16.mxu0 0
    %1003 = vmatpush1.bf16.msra.mxu0 0
    %1004 = vmatprep.subr.bf16.mxu0 0
    %1005 = vmatpush1.bf16.msra.mxu0 0
    %1006 = vmatprep.mubr.bf16.mxu0 0
    %1007 = vmatmul.mubr.bf16.gmra.mrb[0].mxu0 %v914
    %v1008 = vpop.f32.mrb[0].mxu0
    %v1009 = vadd.f32 0.0, %v1008
    %v1010 = vpop.f32.mrb[0].mxu0
    %v1011 = vadd.f32 0.0, %v1010
    %v1012 = vpop.f32.mrb[0].mxu0
    %v1013 = vpop.f32.mrb[0].mxu0
    %1014 = vdwg.mxu0
    %1015 = vmatprep.subr.bf16.mxu0 %v931
    %1016 = vmatpush1.bf16.msra.mxu0 %v929
    %1017 = vmatprep.subr.bf16.mxu0 0
    %1018 = vmatpush1.bf16.msra.mxu0 0
    %1019 = vmatprep.subr.bf16.mxu0 0
    %1020 = vmatpush1.bf16.msra.mxu0 0
    %1021 = vmatprep.subr.bf16.mxu0 0
    %1022 = vmatpush1.bf16.msra.mxu0 0
    %1023 = vmatprep.subr.bf16.mxu0 0
    %1024 = vmatpush1.bf16.msra.mxu0 0
    %1025 = vmatprep.subr.bf16.mxu0 0
    %1026 = vmatpush1.bf16.msra.mxu0 0
    %1027 = vmatprep.subr.bf16.mxu0 0
    %1028 = vmatpush1.bf16.msra.mxu0 0
    %1029 = vmatprep.subr.bf16.mxu0 0
    %1030 = vmatpush1.bf16.msra.mxu0 0
    %1031 = vmatprep.subr.bf16.mxu0 0
    %1032 = vmatpush1.bf16.msra.mxu0 0
    %1033 = vmatprep.subr.bf16.mxu0 0
    %1034 = vmatpush1.bf16.msra.mxu0 0
    %1035 = vmatprep.subr.bf16.mxu0 0
    %1036 = vmatpush1.bf16.msra.mxu0 0
    %1037 = vmatprep.subr.bf16.mxu0 0
    %1038 = vmatpush1.bf16.msra.mxu0 0
    %1039 = vmatprep.subr.bf16.mxu0 0
    %1040 = vmatpush1.bf16.msra.mxu0 0
    %1041 = vmatprep.subr.bf16.mxu0 0
    %1042 = vmatpush1.bf16.msra.mxu0 0
    %1043 = vmatprep.subr.bf16.mxu0 0
    %1044 = vmatpush1.bf16.msra.mxu0 0
    %1045 = vmatprep.subr.bf16.mxu0 0
    %1046 = vmatpush1.bf16.msra.mxu0 0
    %1047 = vmatprep.mubr.bf16.mxu0 0
    %1048 = vmatmul.mubr.bf16.gmra.mrb[0].mxu0 %v914
    %v1049 = vpop.f32.mrb[0].mxu0
    %v1050 = vadd.f32 0.0, %v1049
    %v1051 = vpop.f32.mrb[0].mxu0
    %v1052 = vadd.f32 0.0, %v1051
    %v1053 = vpop.f32.mrb[0].mxu0
    %v1054 = vpop.f32.mrb[0].mxu0
    %1055 = vdwg.mxu0
    %v1056 = vadd.f32 %v883, %v968
    %v1057 = vadd.f32 %v884, %v970
    %v1058 = vadd.f32 %v885, %v1009
    %v1059 = vadd.f32 %v886, %v1011
    %v1060 = vadd.f32 %v887, %v1050
    %v1061 = vadd.f32 %v888, %v1052
    %1062 = vrot.lane.b32.xlu0 %v44, 111
    %v1063 = vpop.permute.xlu0 %1062
    %1064 = vrot.lane.b32.xlu0 %v45, 111
    %v1065 = vpop.permute.xlu0 %1064
    %1066 = vrot.lane.b32.xlu0 %v46, 111
    %v1067 = vpop.permute.xlu0 %1066
    %1068 = vrot.lane.b32.xlu0 %v47, 111
    %v1069 = vpop.permute.xlu0 %1068
    %1070 = vrot.lane.b32.xlu0 %v48, 111
    %v1071 = vpop.permute.xlu0 %1070
    %1072 = vrot.lane.b32.xlu0 %v49, 111
    %v1073 = vpop.permute.xlu0 %1072
    %vm1074 = vcmask 908288
    %v1075 = vsel %vm1074, %v1063, %v1065
    %v1076 = vsel %vm1074, %v1065, %v1067
    %v1077 = vsel %vm1074, %v1067, %v1069
    %v1078 = vsel %vm1074, %v1069, %v1071
    %v1079 = vsel %vm1074, %v1071, %v1073
    %vm1080 = vcmask 908288
    %v1083 = vsel %vm1080, %v1073, %v1063
    %s1084 = scalar_lea.vmem %s2, 12
    %v1085 = vld [vmem:[%s1084] sm:$0x3]
    %v1087 = vsel %vm103, %v1085, 0
    %v1090 = vsel %vm107, %v1075, 0
    %v1093 = vsel %vm107, %v1076, 0
    %v1096 = vsel %vm107, %v1077, 0
    %v1099 = vsel %vm107, %v1078, 0
    %v1102 = vsel %vm107, %v1079, 0
    %v1104 = vsel %vm107, %v1083, 0
    %1106 = vmatprep.subr.bf16.mxu0 %v1093
    %1107 = vmatpush1.bf16.msra.mxu0 %v1090
    %1108 = vmatprep.subr.bf16.mxu0 0
    %1109 = vmatpush1.bf16.msra.mxu0 0
    %1110 = vmatprep.subr.bf16.mxu0 0
    %1111 = vmatpush1.bf16.msra.mxu0 0
    %1112 = vmatprep.subr.bf16.mxu0 0
    %1113 = vmatpush1.bf16.msra.mxu0 0
    %1114 = vmatprep.subr.bf16.mxu0 0
    %1115 = vmatpush1.bf16.msra.mxu0 0
    %1116 = vmatprep.subr.bf16.mxu0 0
    %1117 = vmatpush1.bf16.msra.mxu0 0
    %1118 = vmatprep.subr.bf16.mxu0 0
    %1119 = vmatpush1.bf16.msra.mxu0 0
    %1120 = vmatprep.subr.bf16.mxu0 0
    %1121 = vmatpush1.bf16.msra.mxu0 0
    %1122 = vmatprep.subr.bf16.mxu0 0
    %1123 = vmatpush1.bf16.msra.mxu0 0
    %1124 = vmatprep.subr.bf16.mxu0 0
    %1125 = vmatpush1.bf16.msra.mxu0 0
    %1126 = vmatprep.subr.bf16.mxu0 0
    %1127 = vmatpush1.bf16.msra.mxu0 0
    %1128 = vmatprep.subr.bf16.mxu0 0
    %1129 = vmatpush1.bf16.msra.mxu0 0
    %1130 = vmatprep.subr.bf16.mxu0 0
    %1131 = vmatpush1.bf16.msra.mxu0 0
    %1132 = vmatprep.subr.bf16.mxu0 0
    %1133 = vmatpush1.bf16.msra.mxu0 0
    %1134 = vmatprep.subr.bf16.mxu0 0
    %1135 = vmatpush1.bf16.msra.mxu0 0
    %1136 = vmatprep.subr.bf16.mxu0 0
    %1137 = vmatpush1.bf16.msra.mxu0 0
    %1138 = vmatprep.mubr.bf16.mxu0 0
    %1139 = vmatmul.mubr.bf16.gmra.mrb[0].mxu0 %v1087
    %v1140 = vpop.f32.mrb[0].mxu0
    %v1141 = vadd.f32 0.0, %v1140
    %v1142 = vpop.f32.mrb[0].mxu0
    %v1143 = vadd.f32 0.0, %v1142
    %v1144 = vpop.f32.mrb[0].mxu0
    %v1145 = vpop.f32.mrb[0].mxu0
    %1146 = vdwg.mxu0
    %1147 = vmatprep.subr.bf16.mxu0 %v1099
    %1148 = vmatpush1.bf16.msra.mxu0 %v1096
    %1149 = vmatprep.subr.bf16.mxu0 0
    %1150 = vmatpush1.bf16.msra.mxu0 0
    %1151 = vmatprep.subr.bf16.mxu0 0
    %1152 = vmatpush1.bf16.msra.mxu0 0
    %1153 = vmatprep.subr.bf16.mxu0 0
    %1154 = vmatpush1.bf16.msra.mxu0 0
    %1155 = vmatprep.subr.bf16.mxu0 0
    %1156 = vmatpush1.bf16.msra.mxu0 0
    %1157 = vmatprep.subr.bf16.mxu0 0
    %1158 = vmatpush1.bf16.msra.mxu0 0
    %1159 = vmatprep.subr.bf16.mxu0 0
    %1160 = vmatpush1.bf16.msra.mxu0 0
    %1161 = vmatprep.subr.bf16.mxu0 0
    %1162 = vmatpush1.bf16.msra.mxu0 0
    %1163 = vmatprep.subr.bf16.mxu0 0
    %1164 = vmatpush1.bf16.msra.mxu0 0
    %1165 = vmatprep.subr.bf16.mxu0 0
    %1166 = vmatpush1.bf16.msra.mxu0 0
    %1167 = vmatprep.subr.bf16.mxu0 0
    %1168 = vmatpush1.bf16.msra.mxu0 0
    %1169 = vmatprep.subr.bf16.mxu0 0
    %1170 = vmatpush1.bf16.msra.mxu0 0
    %1171 = vmatprep.subr.bf16.mxu0 0
    %1172 = vmatpush1.bf16.msra.mxu0 0
    %1173 = vmatprep.subr.bf16.mxu0 0
    %1174 = vmatpush1.bf16.msra.mxu0 0
    %1175 = vmatprep.subr.bf16.mxu0 0
    %1176 = vmatpush1.bf16.msra.mxu0 0
    %1177 = vmatprep.subr.bf16.mxu0 0
    %1178 = vmatpush1.bf16.msra.mxu0 0
    %1179 = vmatprep.mubr.bf16.mxu0 0
    %1180 = vmatmul.mubr.bf16.gmra.mrb[0].mxu0 %v1087
    %v1181 = vpop.f32.mrb[0].mxu0
    %v1182 = vadd.f32 0.0, %v1181
    %v1183 = vpop.f32.mrb[0].mxu0
    %v1184 = vadd.f32 0.0, %v1183
    %v1185 = vpop.f32.mrb[0].mxu0
    %v1186 = vpop.f32.mrb[0].mxu0
    %1187 = vdwg.mxu0
    %1188 = vmatprep.subr.bf16.mxu0 %v1104
    %1189 = vmatpush1.bf16.msra.mxu0 %v1102
    %1190 = vmatprep.subr.bf16.mxu0 0
    %1191 = vmatpush1.bf16.msra.mxu0 0
    %1192 = vmatprep.subr.bf16.mxu0 0
    %1193 = vmatpush1.bf16.msra.mxu0 0
    %1194 = vmatprep.subr.bf16.mxu0 0
    %1195 = vmatpush1.bf16.msra.mxu0 0
    %1196 = vmatprep.subr.bf16.mxu0 0
    %1197 = vmatpush1.bf16.msra.mxu0 0
    %1198 = vmatprep.subr.bf16.mxu0 0
    %1199 = vmatpush1.bf16.msra.mxu0 0
    %1200 = vmatprep.subr.bf16.mxu0 0
    %1201 = vmatpush1.bf16.msra.mxu0 0
    %1202 = vmatprep.subr.bf16.mxu0 0
    %1203 = vmatpush1.bf16.msra.mxu0 0
    %1204 = vmatprep.subr.bf16.mxu0 0
    %1205 = vmatpush1.bf16.msra.mxu0 0
    %1206 = vmatprep.subr.bf16.mxu0 0
    %1207 = vmatpush1.bf16.msra.mxu0 0
    %1208 = vmatprep.subr.bf16.mxu0 0
    %1209 = vmatpush1.bf16.msra.mxu0 0
    %1210 = vmatprep.subr.bf16.mxu0 0
    %1211 = vmatpush1.bf16.msra.mxu0 0
    %1212 = vmatprep.subr.bf16.mxu0 0
    %1213 = vmatpush1.bf16.msra.mxu0 0
    %1214 = vmatprep.subr.bf16.mxu0 0
    %1215 = vmatpush1.bf16.msra.mxu0 0
    %1216 = vmatprep.subr.bf16.mxu0 0
    %1217 = vmatpush1.bf16.msra.mxu0 0
    %1218 = vmatprep.subr.bf16.mxu0 0
    %1219 = vmatpush1.bf16.msra.mxu0 0
    %1220 = vmatprep.mubr.bf16.mxu0 0
    %1221 = vmatmul.mubr.bf16.gmra.mrb[0].mxu0 %v1087
    %v1222 = vpop.f32.mrb[0].mxu0
    %v1223 = vadd.f32 0.0, %v1222
    %v1224 = vpop.f32.mrb[0].mxu0
    %v1225 = vadd.f32 0.0, %v1224
    %v1226 = vpop.f32.mrb[0].mxu0
    %v1227 = vpop.f32.mrb[0].mxu0
    %1228 = vdwg.mxu0
    %v1229 = vadd.f32 %v1056, %v1141
    %v1230 = vadd.f32 %v1057, %v1143
    %v1231 = vadd.f32 %v1058, %v1182
    %v1232 = vadd.f32 %v1059, %v1184
    %v1233 = vadd.f32 %v1060, %v1223
    %v1234 = vadd.f32 %v1061, %v1225
    %1235 = vrot.lane.b32.xlu0 %v44, 110
    %v1236 = vpop.permute.xlu0 %1235
    %1237 = vrot.lane.b32.xlu0 %v45, 110
    %v1238 = vpop.permute.xlu0 %1237
    %1239 = vrot.lane.b32.xlu0 %v46, 110
    %v1240 = vpop.permute.xlu0 %1239
    %1241 = vrot.lane.b32.xlu0 %v47, 110
    %v1242 = vpop.permute.xlu0 %1241
    %1243 = vrot.lane.b32.xlu0 %v48, 110
    %v1244 = vpop.permute.xlu0 %1243
    %1245 = vrot.lane.b32.xlu0 %v49, 110
    %v1246 = vpop.permute.xlu0 %1245
    %vm1247 = vcmask 900096
    %v1248 = vsel %vm1247, %v1236, %v1238
    %v1249 = vsel %vm1247, %v1238, %v1240
    %v1250 = vsel %vm1247, %v1240, %v1242
    %v1251 = vsel %vm1247, %v1242, %v1244
    %v1252 = vsel %vm1247, %v1244, %v1246
    %vm1253 = vcmask 900096
    %v1256 = vsel %vm1253, %v1246, %v1236
    %s1257 = scalar_lea.vmem %s2, 14
    %v1258 = vld [vmem:[%s1257] sm:$0x3]
    %v1260 = vsel %vm103, %v1258, 0
    %v1263 = vsel %vm107, %v1248, 0
    %v1266 = vsel %vm107, %v1249, 0
    %v1269 = vsel %vm107, %v1250, 0
    %v1272 = vsel %vm107, %v1251, 0
    %v1275 = vsel %vm107, %v1252, 0
    %v1277 = vsel %vm107, %v1256, 0
    %1279 = vmatprep.subr.bf16.mxu0 %v1266
    %1280 = vmatpush1.bf16.msra.mxu0 %v1263
    %1281 = vmatprep.subr.bf16.mxu0 0
    %1282 = vmatpush1.bf16.msra.mxu0 0
    %1283 = vmatprep.subr.bf16.mxu0 0
    %1284 = vmatpush1.bf16.msra.mxu0 0
    %1285 = vmatprep.subr.bf16.mxu0 0
    %1286 = vmatpush1.bf16.msra.mxu0 0
    %1287 = vmatprep.subr.bf16.mxu0 0
    %1288 = vmatpush1.bf16.msra.mxu0 0
    %1289 = vmatprep.subr.bf16.mxu0 0
    %1290 = vmatpush1.bf16.msra.mxu0 0
    %1291 = vmatprep.subr.bf16.mxu0 0
    %1292 = vmatpush1.bf16.msra.mxu0 0
    %1293 = vmatprep.subr.bf16.mxu0 0
    %1294 = vmatpush1.bf16.msra.mxu0 0
    %1295 = vmatprep.subr.bf16.mxu0 0
    %1296 = vmatpush1.bf16.msra.mxu0 0
    %1297 = vmatprep.subr.bf16.mxu0 0
    %1298 = vmatpush1.bf16.msra.mxu0 0
    %1299 = vmatprep.subr.bf16.mxu0 0
    %1300 = vmatpush1.bf16.msra.mxu0 0
    %1301 = vmatprep.subr.bf16.mxu0 0
    %1302 = vmatpush1.bf16.msra.mxu0 0
    %1303 = vmatprep.subr.bf16.mxu0 0
    %1304 = vmatpush1.bf16.msra.mxu0 0
    %1305 = vmatprep.subr.bf16.mxu0 0
    %1306 = vmatpush1.bf16.msra.mxu0 0
    %1307 = vmatprep.subr.bf16.mxu0 0
    %1308 = vmatpush1.bf16.msra.mxu0 0
    %1309 = vmatprep.subr.bf16.mxu0 0
    %1310 = vmatpush1.bf16.msra.mxu0 0
    %1311 = vmatprep.mubr.bf16.mxu0 0
    %1312 = vmatmul.mubr.bf16.gmra.mrb[0].mxu0 %v1260
    %v1313 = vpop.f32.mrb[0].mxu0
    %v1314 = vadd.f32 0.0, %v1313
    %v1315 = vpop.f32.mrb[0].mxu0
    %v1316 = vadd.f32 0.0, %v1315
    %v1317 = vpop.f32.mrb[0].mxu0
    %v1318 = vpop.f32.mrb[0].mxu0
    %1319 = vdwg.mxu0
    %1320 = vmatprep.subr.bf16.mxu0 %v1272
    %1321 = vmatpush1.bf16.msra.mxu0 %v1269
    %1322 = vmatprep.subr.bf16.mxu0 0
    %1323 = vmatpush1.bf16.msra.mxu0 0
    %1324 = vmatprep.subr.bf16.mxu0 0
    %1325 = vmatpush1.bf16.msra.mxu0 0
    %1326 = vmatprep.subr.bf16.mxu0 0
    %1327 = vmatpush1.bf16.msra.mxu0 0
    %1328 = vmatprep.subr.bf16.mxu0 0
    %1329 = vmatpush1.bf16.msra.mxu0 0
    %1330 = vmatprep.subr.bf16.mxu0 0
    %1331 = vmatpush1.bf16.msra.mxu0 0
    %1332 = vmatprep.subr.bf16.mxu0 0
    %1333 = vmatpush1.bf16.msra.mxu0 0
    %1334 = vmatprep.subr.bf16.mxu0 0
    %1335 = vmatpush1.bf16.msra.mxu0 0
    %1336 = vmatprep.subr.bf16.mxu0 0
    %1337 = vmatpush1.bf16.msra.mxu0 0
    %1338 = vmatprep.subr.bf16.mxu0 0
    %1339 = vmatpush1.bf16.msra.mxu0 0
    %1340 = vmatprep.subr.bf16.mxu0 0
    %1341 = vmatpush1.bf16.msra.mxu0 0
    %1342 = vmatprep.subr.bf16.mxu0 0
    %1343 = vmatpush1.bf16.msra.mxu0 0
    %1344 = vmatprep.subr.bf16.mxu0 0
    %1345 = vmatpush1.bf16.msra.mxu0 0
    %1346 = vmatprep.subr.bf16.mxu0 0
    %1347 = vmatpush1.bf16.msra.mxu0 0
    %1348 = vmatprep.subr.bf16.mxu0 0
    %1349 = vmatpush1.bf16.msra.mxu0 0
    %1350 = vmatprep.subr.bf16.mxu0 0
    %1351 = vmatpush1.bf16.msra.mxu0 0
    %1352 = vmatprep.mubr.bf16.mxu0 0
    %1353 = vmatmul.mubr.bf16.gmra.mrb[0].mxu0 %v1260
    %v1354 = vpop.f32.mrb[0].mxu0
    %v1355 = vadd.f32 0.0, %v1354
    %v1356 = vpop.f32.mrb[0].mxu0
    %v1357 = vadd.f32 0.0, %v1356
    %v1358 = vpop.f32.mrb[0].mxu0
    %v1359 = vpop.f32.mrb[0].mxu0
    %1360 = vdwg.mxu0
    %1361 = vmatprep.subr.bf16.mxu0 %v1277
    %1362 = vmatpush1.bf16.msra.mxu0 %v1275
    %1363 = vmatprep.subr.bf16.mxu0 0
    %1364 = vmatpush1.bf16.msra.mxu0 0
    %1365 = vmatprep.subr.bf16.mxu0 0
    %1366 = vmatpush1.bf16.msra.mxu0 0
    %1367 = vmatprep.subr.bf16.mxu0 0
    %1368 = vmatpush1.bf16.msra.mxu0 0
    %1369 = vmatprep.subr.bf16.mxu0 0
    %1370 = vmatpush1.bf16.msra.mxu0 0
    %1371 = vmatprep.subr.bf16.mxu0 0
    %1372 = vmatpush1.bf16.msra.mxu0 0
    %1373 = vmatprep.subr.bf16.mxu0 0
    %1374 = vmatpush1.bf16.msra.mxu0 0
    %1375 = vmatprep.subr.bf16.mxu0 0
    %1376 = vmatpush1.bf16.msra.mxu0 0
    %1377 = vmatprep.subr.bf16.mxu0 0
    %1378 = vmatpush1.bf16.msra.mxu0 0
    %1379 = vmatprep.subr.bf16.mxu0 0
    %1380 = vmatpush1.bf16.msra.mxu0 0
    %1381 = vmatprep.subr.bf16.mxu0 0
    %1382 = vmatpush1.bf16.msra.mxu0 0
    %1383 = vmatprep.subr.bf16.mxu0 0
    %1384 = vmatpush1.bf16.msra.mxu0 0
    %1385 = vmatprep.subr.bf16.mxu0 0
    %1386 = vmatpush1.bf16.msra.mxu0 0
    %1387 = vmatprep.subr.bf16.mxu0 0
    %1388 = vmatpush1.bf16.msra.mxu0 0
    %1389 = vmatprep.subr.bf16.mxu0 0
    %1390 = vmatpush1.bf16.msra.mxu0 0
    %1391 = vmatprep.subr.bf16.mxu0 0
    %1392 = vmatpush1.bf16.msra.mxu0 0
    %1393 = vmatprep.mubr.bf16.mxu0 0
    %1394 = vmatmul.mubr.bf16.gmra.mrb[0].mxu0 %v1260
    %v1395 = vpop.f32.mrb[0].mxu0
    %v1396 = vadd.f32 0.0, %v1395
    %v1397 = vpop.f32.mrb[0].mxu0
    %v1398 = vadd.f32 0.0, %v1397
    %v1399 = vpop.f32.mrb[0].mxu0
    %v1400 = vpop.f32.mrb[0].mxu0
    %1401 = vdwg.mxu0
    %v1402 = vadd.f32 %v1229, %v1314
    %v1403 = vadd.f32 %v1230, %v1316
    %v1404 = vadd.f32 %v1231, %v1355
    %v1405 = vadd.f32 %v1232, %v1357
    %v1406 = vadd.f32 %v1233, %v1396
    %v1407 = vadd.f32 %v1234, %v1398
    %1408 = vrot.lane.b32.xlu0 %v44, 109
    %v1409 = vpop.permute.xlu0 %1408
    %1410 = vrot.lane.b32.xlu0 %v45, 109
    %v1411 = vpop.permute.xlu0 %1410
    %1412 = vrot.lane.b32.xlu0 %v46, 109
    %v1413 = vpop.permute.xlu0 %1412
    %1414 = vrot.lane.b32.xlu0 %v47, 109
    %v1415 = vpop.permute.xlu0 %1414
    %1416 = vrot.lane.b32.xlu0 %v48, 109
    %v1417 = vpop.permute.xlu0 %1416
    %1418 = vrot.lane.b32.xlu0 %v49, 109
    %v1419 = vpop.permute.xlu0 %1418
    %vm1420 = vcmask 891904
    %v1421 = vsel %vm1420, %v1409, %v1411
    %v1422 = vsel %vm1420, %v1411, %v1413
    %v1423 = vsel %vm1420, %v1413, %v1415
    %v1424 = vsel %vm1420, %v1415, %v1417
    %v1425 = vsel %vm1420, %v1417, %v1419
    %vm1426 = vcmask 891904
    %v1429 = vsel %vm1426, %v1419, %v1409
    %s1430 = scalar_lea.vmem %s2, 16
    %v1431 = vld [vmem:[%s1430] sm:$0x3]
    %v1433 = vsel %vm103, %v1431, 0
    %v1436 = vsel %vm107, %v1421, 0
    %v1439 = vsel %vm107, %v1422, 0
    %v1442 = vsel %vm107, %v1423, 0
    %v1445 = vsel %vm107, %v1424, 0
    %v1448 = vsel %vm107, %v1425, 0
    %v1450 = vsel %vm107, %v1429, 0
    %1452 = vmatprep.subr.bf16.mxu0 %v1439
    %1453 = vmatpush1.bf16.msra.mxu0 %v1436
    %1454 = vmatprep.subr.bf16.mxu0 0
    %1455 = vmatpush1.bf16.msra.mxu0 0
    %1456 = vmatprep.subr.bf16.mxu0 0
    %1457 = vmatpush1.bf16.msra.mxu0 0
    %1458 = vmatprep.subr.bf16.mxu0 0
    %1459 = vmatpush1.bf16.msra.mxu0 0
    %1460 = vmatprep.subr.bf16.mxu0 0
    %1461 = vmatpush1.bf16.msra.mxu0 0
    %1462 = vmatprep.subr.bf16.mxu0 0
    %1463 = vmatpush1.bf16.msra.mxu0 0
    %1464 = vmatprep.subr.bf16.mxu0 0
    %1465 = vmatpush1.bf16.msra.mxu0 0
    %1466 = vmatprep.subr.bf16.mxu0 0
    %1467 = vmatpush1.bf16.msra.mxu0 0
    %1468 = vmatprep.subr.bf16.mxu0 0
    %1469 = vmatpush1.bf16.msra.mxu0 0
    %1470 = vmatprep.subr.bf16.mxu0 0
    %1471 = vmatpush1.bf16.msra.mxu0 0
    %1472 = vmatprep.subr.bf16.mxu0 0
    %1473 = vmatpush1.bf16.msra.mxu0 0
    %1474 = vmatprep.subr.bf16.mxu0 0
    %1475 = vmatpush1.bf16.msra.mxu0 0
    %1476 = vmatprep.subr.bf16.mxu0 0
    %1477 = vmatpush1.bf16.msra.mxu0 0
    %1478 = vmatprep.subr.bf16.mxu0 0
    %1479 = vmatpush1.bf16.msra.mxu0 0
    %1480 = vmatprep.subr.bf16.mxu0 0
    %1481 = vmatpush1.bf16.msra.mxu0 0
    %1482 = vmatprep.subr.bf16.mxu0 0
    %1483 = vmatpush1.bf16.msra.mxu0 0
    %1484 = vmatprep.mubr.bf16.mxu0 0
    %1485 = vmatmul.mubr.bf16.gmra.mrb[0].mxu0 %v1433
    %v1486 = vpop.f32.mrb[0].mxu0
    %v1487 = vadd.f32 0.0, %v1486
    %v1488 = vpop.f32.mrb[0].mxu0
    %v1489 = vadd.f32 0.0, %v1488
    %v1490 = vpop.f32.mrb[0].mxu0
    %v1491 = vpop.f32.mrb[0].mxu0
    %1492 = vdwg.mxu0
    %1493 = vmatprep.subr.bf16.mxu0 %v1445
    %1494 = vmatpush1.bf16.msra.mxu0 %v1442
    %1495 = vmatprep.subr.bf16.mxu0 0
    %1496 = vmatpush1.bf16.msra.mxu0 0
    %1497 = vmatprep.subr.bf16.mxu0 0
    %1498 = vmatpush1.bf16.msra.mxu0 0
    %1499 = vmatprep.subr.bf16.mxu0 0
    %1500 = vmatpush1.bf16.msra.mxu0 0
    %1501 = vmatprep.subr.bf16.mxu0 0
    %1502 = vmatpush1.bf16.msra.mxu0 0
    %1503 = vmatprep.subr.bf16.mxu0 0
    %1504 = vmatpush1.bf16.msra.mxu0 0
    %1505 = vmatprep.subr.bf16.mxu0 0
    %1506 = vmatpush1.bf16.msra.mxu0 0
    %1507 = vmatprep.subr.bf16.mxu0 0
    %1508 = vmatpush1.bf16.msra.mxu0 0
    %1509 = vmatprep.subr.bf16.mxu0 0
    %1510 = vmatpush1.bf16.msra.mxu0 0
    %1511 = vmatprep.subr.bf16.mxu0 0
    %1512 = vmatpush1.bf16.msra.mxu0 0
    %1513 = vmatprep.subr.bf16.mxu0 0
    %1514 = vmatpush1.bf16.msra.mxu0 0
    %1515 = vmatprep.subr.bf16.mxu0 0
    %1516 = vmatpush1.bf16.msra.mxu0 0
    %1517 = vmatprep.subr.bf16.mxu0 0
    %1518 = vmatpush1.bf16.msra.mxu0 0
    %1519 = vmatprep.subr.bf16.mxu0 0
    %1520 = vmatpush1.bf16.msra.mxu0 0
    %1521 = vmatprep.subr.bf16.mxu0 0
    %1522 = vmatpush1.bf16.msra.mxu0 0
    %1523 = vmatprep.subr.bf16.mxu0 0
    %1524 = vmatpush1.bf16.msra.mxu0 0
    %1525 = vmatprep.mubr.bf16.mxu0 0
    %1526 = vmatmul.mubr.bf16.gmra.mrb[0].mxu0 %v1433
    %v1527 = vpop.f32.mrb[0].mxu0
    %v1528 = vadd.f32 0.0, %v1527
    %v1529 = vpop.f32.mrb[0].mxu0
    %v1530 = vadd.f32 0.0, %v1529
    %v1531 = vpop.f32.mrb[0].mxu0
    %v1532 = vpop.f32.mrb[0].mxu0
    %1533 = vdwg.mxu0
    %1534 = vmatprep.subr.bf16.mxu0 %v1450
    %1535 = vmatpush1.bf16.msra.mxu0 %v1448
    %1536 = vmatprep.subr.bf16.mxu0 0
    %1537 = vmatpush1.bf16.msra.mxu0 0
    %1538 = vmatprep.subr.bf16.mxu0 0
    %1539 = vmatpush1.bf16.msra.mxu0 0
    %1540 = vmatprep.subr.bf16.mxu0 0
    %1541 = vmatpush1.bf16.msra.mxu0 0
    %1542 = vmatprep.subr.bf16.mxu0 0
    %1543 = vmatpush1.bf16.msra.mxu0 0
    %1544 = vmatprep.subr.bf16.mxu0 0
    %1545 = vmatpush1.bf16.msra.mxu0 0
    %1546 = vmatprep.subr.bf16.mxu0 0
    %1547 = vmatpush1.bf16.msra.mxu0 0
    %1548 = vmatprep.subr.bf16.mxu0 0
    %1549 = vmatpush1.bf16.msra.mxu0 0
    %1550 = vmatprep.subr.bf16.mxu0 0
    %1551 = vmatpush1.bf16.msra.mxu0 0
    %1552 = vmatprep.subr.bf16.mxu0 0
    %1553 = vmatpush1.bf16.msra.mxu0 0
    %1554 = vmatprep.subr.bf16.mxu0 0
    %1555 = vmatpush1.bf16.msra.mxu0 0
    %1556 = vmatprep.subr.bf16.mxu0 0
    %1557 = vmatpush1.bf16.msra.mxu0 0
    %1558 = vmatprep.subr.bf16.mxu0 0
    %1559 = vmatpush1.bf16.msra.mxu0 0
    %1560 = vmatprep.subr.bf16.mxu0 0
    %1561 = vmatpush1.bf16.msra.mxu0 0
    %1562 = vmatprep.subr.bf16.mxu0 0
    %1563 = vmatpush1.bf16.msra.mxu0 0
    %1564 = vmatprep.subr.bf16.mxu0 0
    %1565 = vmatpush1.bf16.msra.mxu0 0
    %1566 = vmatprep.mubr.bf16.mxu0 0
    %1567 = vmatmul.mubr.bf16.gmra.mrb[0].mxu0 %v1433
    %v1568 = vpop.f32.mrb[0].mxu0
    %v1569 = vadd.f32 0.0, %v1568
    %v1570 = vpop.f32.mrb[0].mxu0
    %v1571 = vadd.f32 0.0, %v1570
    %v1572 = vpop.f32.mrb[0].mxu0
    %v1573 = vpop.f32.mrb[0].mxu0
    %1574 = vdwg.mxu0
    %v1575 = vadd.f32 %v1402, %v1487
    %v1576 = vadd.f32 %v1403, %v1489
    %v1577 = vadd.f32 %v1404, %v1528
    %v1578 = vadd.f32 %v1405, %v1530
    %v1579 = vadd.f32 %v1406, %v1569
    %v1580 = vadd.f32 %v1407, %v1571
    %v1581 = vld [vmem:[%s3] sm:$0xf]
    %v1582 = vld [vmem:[%s4] sm:$0xf]
    %v1584 = vlaneseq
    %v1585 = vshrl.u32 %v1584, 7
    %v1586 = vsub.s32 0, %v1585
    %v1587 = vrot.slane %v31, %v1586
    %v1588 = vlaneseq
    %v1589 = vshrl.u32 %v1588, 7
    %v1590 = vsub.s32 1, %v1589
    %v1591 = vrot.slane %v31, %v1590
    %v1592 = vlaneseq
    %v1593 = vshrl.u32 %v1592, 7
    %v1594 = vsub.s32 2, %v1593
    %v1595 = vrot.slane %v31, %v1594
    %v1596 = vlaneseq
    %v1597 = vshrl.u32 %v1596, 7
    %v1598 = vsub.s32 3, %v1597
    %v1599 = vrot.slane %v31, %v1598
    %v1600 = vlaneseq
    %v1601 = vshrl.u32 %v1600, 7
    %v1602 = vsub.s32 4, %v1601
    %v1603 = vrot.slane %v31, %v1602
    %v1604 = vlaneseq
    %v1605 = vshrl.u32 %v1604, 7
    %v1606 = vsub.s32 5, %v1605
    %v1607 = vrot.slane %v31, %v1606
    %v1614 = vmul.f32 %v1575, %v1587
    %v1615 = vmul.f32 %v1576, %v1591
    %v1616 = vmul.f32 %v1577, %v1595
    %v1617 = vmul.f32 %v1578, %v1599
    %v1618 = vmul.f32 %v1579, %v1603
    %v1619 = vmul.f32 %v1580, %v1607
    %vm1620 = vcmask 1043456
    %v1621 = vsel %vm1620, %v1614, 0.0
    %v1622 = vsel %vm1620, %v1615, 0.0
    %v1623 = vadd.f32 %v1621, %v1622
    %v1624 = vsel %vm1620, %v1616, 0.0
    %v1625 = vadd.f32 %v1623, %v1624
    %v1626 = vsel %vm1620, %v1617, 0.0
    %v1627 = vadd.f32 %v1625, %v1626
    %v1628 = vsel %vm1620, %v1618, 0.0
    %v1629 = vadd.f32 %v1627, %v1628
    %v1630 = vsel %vm1620, %v1619, 0.0
    %v1631 = vadd.f32 %v1629, %v1630
    %1632 = vadd.xlane.f32.xlu0 %v1631
    %v1633 = vpop.xlane.xlu0 %1632
    %v1634 = vmul.f32 %v1633, 0.001953125
    %v1635 = vsub.f32 %v1575, %v1634
    %v1636 = vsub.f32 %v1576, %v1634
    %v1637 = vsub.f32 %v1577, %v1634
    %v1638 = vsub.f32 %v1578, %v1634
    %v1639 = vsub.f32 %v1579, %v1634
    %v1640 = vsub.f32 %v1580, %v1634
    %v1641 = vmul.f32 %v1635, %v1587
    %v1642 = vmul.f32 %v1636, %v1591
    %v1643 = vmul.f32 %v1637, %v1595
    %v1644 = vmul.f32 %v1638, %v1599
    %v1645 = vmul.f32 %v1639, %v1603
    %v1646 = vmul.f32 %v1640, %v1607
    %v1647 = vmul.f32 %v1641, %v1641
    %v1648 = vmul.f32 %v1642, %v1642
    %v1649 = vmul.f32 %v1643, %v1643
    %v1650 = vmul.f32 %v1644, %v1644
    %v1651 = vmul.f32 %v1645, %v1645
    %v1652 = vmul.f32 %v1646, %v1646
    %v1653 = vsel %vm1620, %v1647, 0.0
    %v1654 = vsel %vm1620, %v1648, 0.0
    %v1655 = vadd.f32 %v1653, %v1654
    %v1656 = vsel %vm1620, %v1649, 0.0
    %v1657 = vadd.f32 %v1655, %v1656
    %v1658 = vsel %vm1620, %v1650, 0.0
    %v1659 = vadd.f32 %v1657, %v1658
    %v1660 = vsel %vm1620, %v1651, 0.0
    %v1661 = vadd.f32 %v1659, %v1660
    %v1662 = vsel %vm1620, %v1652, 0.0
    %v1663 = vadd.f32 %v1661, %v1662
    %1664 = vadd.xlane.f32.xlu0 %v1663
    %v1665 = vpop.xlane.xlu0 %1664
    %v1666 = vmul.f32 %v1665, 0.001953125
    %v1667 = vadd.f32 %v1666, 1e-05
    %v1668 = vrsqrt.pop %v1667
    %v1669 = vmul.f32 %v1635, %v1668
    %v1670 = vmul.f32 %v1636, %v1668
    %v1671 = vmul.f32 %v1637, %v1668
    %v1672 = vmul.f32 %v1638, %v1668
    %v1673 = vmul.f32 %v1639, %v1668
    %v1674 = vmul.f32 %v1640, %v1668
    %1676 = vset.pattern.permute.xlu0 0
    %1677 = vperm.xlu0 %1676, %v1581
    %v1678 = vpop.permute.xlu0 %1677
    %v1680 = vmul.f32 %v1669, %v1678
    %v1681 = vmul.f32 %v1670, %v1678
    %v1682 = vmul.f32 %v1671, %v1678
    %v1683 = vmul.f32 %v1672, %v1678
    %v1684 = vmul.f32 %v1673, %v1678
    %v1685 = vmul.f32 %v1674, %v1678
    %1687 = vset.pattern.permute.xlu0 0
    %1688 = vperm.xlu0 %1687, %v1582
    %v1689 = vpop.permute.xlu0 %1688
    %v1691 = vadd.f32 %v1680, %v1689
    %v1692 = vadd.f32 %v1681, %v1689
    %v1693 = vadd.f32 %v1682, %v1689
    %v1694 = vadd.f32 %v1683, %v1689
    %v1695 = vadd.f32 %v1684, %v1689
    %v1696 = vadd.f32 %v1685, %v1689
    %v1697 = vmax.f32 %v1691, 0.0
    %v1698 = vmax.f32 %v1692, 0.0
    %v1699 = vmax.f32 %v1693, 0.0
    %v1700 = vmax.f32 %v1694, 0.0
    %v1701 = vmax.f32 %v1695, 0.0
    %v1702 = vmax.f32 %v1696, 0.0
    %v1703 = vmul.f32 %v1697, %v1587
    %v1704 = vmul.f32 %v1698, %v1591
    %v1705 = vmul.f32 %v1699, %v1595
    %v1706 = vmul.f32 %v1700, %v1599
    %v1707 = vmul.f32 %v1701, %v1603
    %v1708 = vmul.f32 %v1702, %v1607
    %v1709 = vpack.c.bf16 %v1703, %v1703
    %v1710 = vpack.c.bf16 %v1704, %v1704
    %v1711 = vpack.c.bf16 %v1705, %v1705
    %v1712 = vpack.c.bf16 %v1706, %v1706
    %v1713 = vpack.c.bf16 %v1707, %v1707
    %v1714 = vpack.c.bf16 %v1708, %v1708
    %1716 = vrot.lane.b32.xlu0 %v1714, 19
    %v1717 = vpop.permute.xlu0 %1716
    %1723 = vrot.lane.b32.xlu0 %v1709, 19
    %v1724 = vpop.permute.xlu0 %1723
    %1725 = vrot.lane.b32.xlu0 %v1710, 19
    %v1726 = vpop.permute.xlu0 %1725
    %1727 = vrot.lane.b32.xlu0 %v1711, 19
    %v1728 = vpop.permute.xlu0 %1727
    %1729 = vrot.lane.b32.xlu0 %v1712, 19
    %v1730 = vpop.permute.xlu0 %1729
    %1731 = vrot.lane.b32.xlu0 %v1713, 19
    %v1732 = vpop.permute.xlu0 %1731
    %v1733 = vsel %vm68, %v1724, %v1726
    %v1734 = vsel %vm68, %v1726, %v1728
    %v1735 = vsel %vm68, %v1728, %v1730
    %v1736 = vsel %vm68, %v1730, %v1732
    %v1737 = vsel %vm68, %v1732, %v1717
    %v1740 = vsel %vm74, %v1717, %v1724
    %v1741 = vld [vmem:[%s5] sm:$0x3]
    %1742 = vrot.lane.b32.xlu0 %v1714, 18
    %v1743 = vpop.permute.xlu0 %1742
    %1744 = vrot.lane.b32.xlu0 %v1709, 18
    %v1745 = vpop.permute.xlu0 %1744
    %1746 = vrot.lane.b32.xlu0 %v1710, 18
    %v1747 = vpop.permute.xlu0 %1746
    %1748 = vrot.lane.b32.xlu0 %v1711, 18
    %v1749 = vpop.permute.xlu0 %1748
    %1750 = vrot.lane.b32.xlu0 %v1712, 18
    %v1751 = vpop.permute.xlu0 %1750
    %1752 = vrot.lane.b32.xlu0 %v1713, 18
    %v1753 = vpop.permute.xlu0 %1752
    %v1754 = vsel %vm91, %v1745, %v1747
    %v1755 = vsel %vm91, %v1747, %v1749
    %v1756 = vsel %vm91, %v1749, %v1751
    %v1757 = vsel %vm91, %v1751, %v1753
    %v1758 = vsel %vm91, %v1753, %v1743
    %v1761 = vsel %vm97, %v1743, %v1745
    %s1762 = scalar_lea.vmem %s5, 2
    %v1763 = vld [vmem:[%s1762] sm:$0x3]
    %v1765 = vsel %vm103, %v1763, 0
    %v1767 = vsel %vm107, %v1761, 0
    %v1770 = vsel %vm107, %v1754, 0
    %v1773 = vsel %vm107, %v1755, 0
    %v1776 = vsel %vm107, %v1756, 0
    %v1779 = vsel %vm107, %v1757, 0
    %v1782 = vsel %vm107, %v1758, 0
    %1784 = vmatprep.subr.bf16.mxu0 %v1770
    %1785 = vmatpush1.bf16.msra.mxu0 %v1767
    %1786 = vmatprep.subr.bf16.mxu0 0
    %1787 = vmatpush1.bf16.msra.mxu0 0
    %1788 = vmatprep.subr.bf16.mxu0 0
    %1789 = vmatpush1.bf16.msra.mxu0 0
    %1790 = vmatprep.subr.bf16.mxu0 0
    %1791 = vmatpush1.bf16.msra.mxu0 0
    %1792 = vmatprep.subr.bf16.mxu0 0
    %1793 = vmatpush1.bf16.msra.mxu0 0
    %1794 = vmatprep.subr.bf16.mxu0 0
    %1795 = vmatpush1.bf16.msra.mxu0 0
    %1796 = vmatprep.subr.bf16.mxu0 0
    %1797 = vmatpush1.bf16.msra.mxu0 0
    %1798 = vmatprep.subr.bf16.mxu0 0
    %1799 = vmatpush1.bf16.msra.mxu0 0
    %1800 = vmatprep.subr.bf16.mxu0 0
    %1801 = vmatpush1.bf16.msra.mxu0 0
    %1802 = vmatprep.subr.bf16.mxu0 0
    %1803 = vmatpush1.bf16.msra.mxu0 0
    %1804 = vmatprep.subr.bf16.mxu0 0
    %1805 = vmatpush1.bf16.msra.mxu0 0
    %1806 = vmatprep.subr.bf16.mxu0 0
    %1807 = vmatpush1.bf16.msra.mxu0 0
    %1808 = vmatprep.subr.bf16.mxu0 0
    %1809 = vmatpush1.bf16.msra.mxu0 0
    %1810 = vmatprep.subr.bf16.mxu0 0
    %1811 = vmatpush1.bf16.msra.mxu0 0
    %1812 = vmatprep.subr.bf16.mxu0 0
    %1813 = vmatpush1.bf16.msra.mxu0 0
    %1814 = vmatprep.subr.bf16.mxu0 0
    %1815 = vmatpush1.bf16.msra.mxu0 0
    %1816 = vmatprep.mubr.bf16.mxu0 0
    %1817 = vmatmul.mubr.bf16.gmra.mrb[0].mxu0 %v1765
    %v1818 = vpop.f32.mrb[0].mxu0
    %v1819 = vadd.f32 0.0, %v1818
    %v1820 = vpop.f32.mrb[0].mxu0
    %v1821 = vadd.f32 0.0, %v1820
    %v1822 = vpop.f32.mrb[0].mxu0
    %v1823 = vpop.f32.mrb[0].mxu0
    %1824 = vdwg.mxu0
    %1825 = vmatprep.subr.bf16.mxu0 %v1776
    %1826 = vmatpush1.bf16.msra.mxu0 %v1773
    %1827 = vmatprep.subr.bf16.mxu0 0
    %1828 = vmatpush1.bf16.msra.mxu0 0
    %1829 = vmatprep.subr.bf16.mxu0 0
    %1830 = vmatpush1.bf16.msra.mxu0 0
    %1831 = vmatprep.subr.bf16.mxu0 0
    %1832 = vmatpush1.bf16.msra.mxu0 0
    %1833 = vmatprep.subr.bf16.mxu0 0
    %1834 = vmatpush1.bf16.msra.mxu0 0
    %1835 = vmatprep.subr.bf16.mxu0 0
    %1836 = vmatpush1.bf16.msra.mxu0 0
    %1837 = vmatprep.subr.bf16.mxu0 0
    %1838 = vmatpush1.bf16.msra.mxu0 0
    %1839 = vmatprep.subr.bf16.mxu0 0
    %1840 = vmatpush1.bf16.msra.mxu0 0
    %1841 = vmatprep.subr.bf16.mxu0 0
    %1842 = vmatpush1.bf16.msra.mxu0 0
    %1843 = vmatprep.subr.bf16.mxu0 0
    %1844 = vmatpush1.bf16.msra.mxu0 0
    %1845 = vmatprep.subr.bf16.mxu0 0
    %1846 = vmatpush1.bf16.msra.mxu0 0
    %1847 = vmatprep.subr.bf16.mxu0 0
    %1848 = vmatpush1.bf16.msra.mxu0 0
    %1849 = vmatprep.subr.bf16.mxu0 0
    %1850 = vmatpush1.bf16.msra.mxu0 0
    %1851 = vmatprep.subr.bf16.mxu0 0
    %1852 = vmatpush1.bf16.msra.mxu0 0
    %1853 = vmatprep.subr.bf16.mxu0 0
    %1854 = vmatpush1.bf16.msra.mxu0 0
    %1855 = vmatprep.subr.bf16.mxu0 0
    %1856 = vmatpush1.bf16.msra.mxu0 0
    %1857 = vmatprep.mubr.bf16.mxu0 0
    %1858 = vmatmul.mubr.bf16.gmra.mrb[0].mxu0 %v1765
    %v1859 = vpop.f32.mrb[0].mxu0
    %v1860 = vadd.f32 0.0, %v1859
    %v1861 = vpop.f32.mrb[0].mxu0
    %v1862 = vadd.f32 0.0, %v1861
    %v1863 = vpop.f32.mrb[0].mxu0
    %v1864 = vpop.f32.mrb[0].mxu0
    %1865 = vdwg.mxu0
    %1866 = vmatprep.subr.bf16.mxu0 %v1782
    %1867 = vmatpush1.bf16.msra.mxu0 %v1779
    %1868 = vmatprep.subr.bf16.mxu0 0
    %1869 = vmatpush1.bf16.msra.mxu0 0
    %1870 = vmatprep.subr.bf16.mxu0 0
    %1871 = vmatpush1.bf16.msra.mxu0 0
    %1872 = vmatprep.subr.bf16.mxu0 0
    %1873 = vmatpush1.bf16.msra.mxu0 0
    %1874 = vmatprep.subr.bf16.mxu0 0
    %1875 = vmatpush1.bf16.msra.mxu0 0
    %1876 = vmatprep.subr.bf16.mxu0 0
    %1877 = vmatpush1.bf16.msra.mxu0 0
    %1878 = vmatprep.subr.bf16.mxu0 0
    %1879 = vmatpush1.bf16.msra.mxu0 0
    %1880 = vmatprep.subr.bf16.mxu0 0
    %1881 = vmatpush1.bf16.msra.mxu0 0
    %1882 = vmatprep.subr.bf16.mxu0 0
    %1883 = vmatpush1.bf16.msra.mxu0 0
    %1884 = vmatprep.subr.bf16.mxu0 0
    %1885 = vmatpush1.bf16.msra.mxu0 0
    %1886 = vmatprep.subr.bf16.mxu0 0
    %1887 = vmatpush1.bf16.msra.mxu0 0
    %1888 = vmatprep.subr.bf16.mxu0 0
    %1889 = vmatpush1.bf16.msra.mxu0 0
    %1890 = vmatprep.subr.bf16.mxu0 0
    %1891 = vmatpush1.bf16.msra.mxu0 0
    %1892 = vmatprep.subr.bf16.mxu0 0
    %1893 = vmatpush1.bf16.msra.mxu0 0
    %1894 = vmatprep.subr.bf16.mxu0 0
    %1895 = vmatpush1.bf16.msra.mxu0 0
    %1896 = vmatprep.subr.bf16.mxu0 0
    %1897 = vmatpush1.bf16.msra.mxu0 0
    %1898 = vmatprep.mubr.bf16.mxu0 0
    %1899 = vmatmul.mubr.bf16.gmra.mrb[0].mxu0 %v1765
    %v1900 = vpop.f32.mrb[0].mxu0
    %v1901 = vadd.f32 0.0, %v1900
    %v1902 = vpop.f32.mrb[0].mxu0
    %v1903 = vadd.f32 0.0, %v1902
    %v1904 = vpop.f32.mrb[0].mxu0
    %v1905 = vpop.f32.mrb[0].mxu0
    %1906 = vdwg.mxu0
    %v1908 = vsel %vm103, %v1741, 0
    %v1910 = vsel %vm107, %v1740, 0
    %v1913 = vsel %vm107, %v1733, 0
    %v1916 = vsel %vm107, %v1734, 0
    %v1919 = vsel %vm107, %v1735, 0
    %v1922 = vsel %vm107, %v1736, 0
    %v1925 = vsel %vm107, %v1737, 0
    %1927 = vmatprep.subr.bf16.mxu0 %v1913
    %1928 = vmatpush1.bf16.msra.mxu0 %v1910
    %1929 = vmatprep.subr.bf16.mxu0 0
    %1930 = vmatpush1.bf16.msra.mxu0 0
    %1931 = vmatprep.subr.bf16.mxu0 0
    %1932 = vmatpush1.bf16.msra.mxu0 0
    %1933 = vmatprep.subr.bf16.mxu0 0
    %1934 = vmatpush1.bf16.msra.mxu0 0
    %1935 = vmatprep.subr.bf16.mxu0 0
    %1936 = vmatpush1.bf16.msra.mxu0 0
    %1937 = vmatprep.subr.bf16.mxu0 0
    %1938 = vmatpush1.bf16.msra.mxu0 0
    %1939 = vmatprep.subr.bf16.mxu0 0
    %1940 = vmatpush1.bf16.msra.mxu0 0
    %1941 = vmatprep.subr.bf16.mxu0 0
    %1942 = vmatpush1.bf16.msra.mxu0 0
    %1943 = vmatprep.subr.bf16.mxu0 0
    %1944 = vmatpush1.bf16.msra.mxu0 0
    %1945 = vmatprep.subr.bf16.mxu0 0
    %1946 = vmatpush1.bf16.msra.mxu0 0
    %1947 = vmatprep.subr.bf16.mxu0 0
    %1948 = vmatpush1.bf16.msra.mxu0 0
    %1949 = vmatprep.subr.bf16.mxu0 0
    %1950 = vmatpush1.bf16.msra.mxu0 0
    %1951 = vmatprep.subr.bf16.mxu0 0
    %1952 = vmatpush1.bf16.msra.mxu0 0
    %1953 = vmatprep.subr.bf16.mxu0 0
    %1954 = vmatpush1.bf16.msra.mxu0 0
    %1955 = vmatprep.subr.bf16.mxu0 0
    %1956 = vmatpush1.bf16.msra.mxu0 0
    %1957 = vmatprep.subr.bf16.mxu0 0
    %1958 = vmatpush1.bf16.msra.mxu0 0
    %1959 = vmatprep.mubr.bf16.mxu0 0
    %1960 = vmatmul.mubr.bf16.gmra.mrb[0].mxu0 %v1908
    %v1961 = vpop.f32.mrb[0].mxu0
    %v1962 = vadd.f32 %v1819, %v1961
    %v1963 = vpop.f32.mrb[0].mxu0
    %v1964 = vadd.f32 %v1821, %v1963
    %v1965 = vpop.f32.mrb[0].mxu0
    %v1966 = vpop.f32.mrb[0].mxu0
    %1967 = vdwg.mxu0
    %1968 = vmatprep.subr.bf16.mxu0 %v1919
    %1969 = vmatpush1.bf16.msra.mxu0 %v1916
    %1970 = vmatprep.subr.bf16.mxu0 0
    %1971 = vmatpush1.bf16.msra.mxu0 0
    %1972 = vmatprep.subr.bf16.mxu0 0
    %1973 = vmatpush1.bf16.msra.mxu0 0
    %1974 = vmatprep.subr.bf16.mxu0 0
    %1975 = vmatpush1.bf16.msra.mxu0 0
    %1976 = vmatprep.subr.bf16.mxu0 0
    %1977 = vmatpush1.bf16.msra.mxu0 0
    %1978 = vmatprep.subr.bf16.mxu0 0
    %1979 = vmatpush1.bf16.msra.mxu0 0
    %1980 = vmatprep.subr.bf16.mxu0 0
    %1981 = vmatpush1.bf16.msra.mxu0 0
    %1982 = vmatprep.subr.bf16.mxu0 0
    %1983 = vmatpush1.bf16.msra.mxu0 0
    %1984 = vmatprep.subr.bf16.mxu0 0
    %1985 = vmatpush1.bf16.msra.mxu0 0
    %1986 = vmatprep.subr.bf16.mxu0 0
    %1987 = vmatpush1.bf16.msra.mxu0 0
    %1988 = vmatprep.subr.bf16.mxu0 0
    %1989 = vmatpush1.bf16.msra.mxu0 0
    %1990 = vmatprep.subr.bf16.mxu0 0
    %1991 = vmatpush1.bf16.msra.mxu0 0
    %1992 = vmatprep.subr.bf16.mxu0 0
    %1993 = vmatpush1.bf16.msra.mxu0 0
    %1994 = vmatprep.subr.bf16.mxu0 0
    %1995 = vmatpush1.bf16.msra.mxu0 0
    %1996 = vmatprep.subr.bf16.mxu0 0
    %1997 = vmatpush1.bf16.msra.mxu0 0
    %1998 = vmatprep.subr.bf16.mxu0 0
    %1999 = vmatpush1.bf16.msra.mxu0 0
    %2000 = vmatprep.mubr.bf16.mxu0 0
    %2001 = vmatmul.mubr.bf16.gmra.mrb[0].mxu0 %v1908
    %v2002 = vpop.f32.mrb[0].mxu0
    %v2003 = vadd.f32 %v1860, %v2002
    %v2004 = vpop.f32.mrb[0].mxu0
    %v2005 = vadd.f32 %v1862, %v2004
    %v2006 = vpop.f32.mrb[0].mxu0
    %v2007 = vpop.f32.mrb[0].mxu0
    %2008 = vdwg.mxu0
    %2009 = vmatprep.subr.bf16.mxu0 %v1925
    %2010 = vmatpush1.bf16.msra.mxu0 %v1922
    %2011 = vmatprep.subr.bf16.mxu0 0
    %2012 = vmatpush1.bf16.msra.mxu0 0
    %2013 = vmatprep.subr.bf16.mxu0 0
    %2014 = vmatpush1.bf16.msra.mxu0 0
    %2015 = vmatprep.subr.bf16.mxu0 0
    %2016 = vmatpush1.bf16.msra.mxu0 0
    %2017 = vmatprep.subr.bf16.mxu0 0
    %2018 = vmatpush1.bf16.msra.mxu0 0
    %2019 = vmatprep.subr.bf16.mxu0 0
    %2020 = vmatpush1.bf16.msra.mxu0 0
    %2021 = vmatprep.subr.bf16.mxu0 0
    %2022 = vmatpush1.bf16.msra.mxu0 0
    %2023 = vmatprep.subr.bf16.mxu0 0
    %2024 = vmatpush1.bf16.msra.mxu0 0
    %2025 = vmatprep.subr.bf16.mxu0 0
    %2026 = vmatpush1.bf16.msra.mxu0 0
    %2027 = vmatprep.subr.bf16.mxu0 0
    %2028 = vmatpush1.bf16.msra.mxu0 0
    %2029 = vmatprep.subr.bf16.mxu0 0
    %2030 = vmatpush1.bf16.msra.mxu0 0
    %2031 = vmatprep.subr.bf16.mxu0 0
    %2032 = vmatpush1.bf16.msra.mxu0 0
    %2033 = vmatprep.subr.bf16.mxu0 0
    %2034 = vmatpush1.bf16.msra.mxu0 0
    %2035 = vmatprep.subr.bf16.mxu0 0
    %2036 = vmatpush1.bf16.msra.mxu0 0
    %2037 = vmatprep.subr.bf16.mxu0 0
    %2038 = vmatpush1.bf16.msra.mxu0 0
    %2039 = vmatprep.subr.bf16.mxu0 0
    %2040 = vmatpush1.bf16.msra.mxu0 0
    %2041 = vmatprep.mubr.bf16.mxu0 0
    %2042 = vmatmul.mubr.bf16.gmra.mrb[0].mxu0 %v1908
    %v2043 = vpop.f32.mrb[0].mxu0
    %v2044 = vadd.f32 %v1901, %v2043
    %v2045 = vpop.f32.mrb[0].mxu0
    %v2046 = vadd.f32 %v1903, %v2045
    %v2047 = vpop.f32.mrb[0].mxu0
    %v2048 = vpop.f32.mrb[0].mxu0
    %2049 = vdwg.mxu0
    %2050 = vrot.lane.b32.xlu0 %v1714, 17
    %v2051 = vpop.permute.xlu0 %2050
    %2052 = vrot.lane.b32.xlu0 %v1709, 17
    %v2053 = vpop.permute.xlu0 %2052
    %2054 = vrot.lane.b32.xlu0 %v1710, 17
    %v2055 = vpop.permute.xlu0 %2054
    %2056 = vrot.lane.b32.xlu0 %v1711, 17
    %v2057 = vpop.permute.xlu0 %2056
    %2058 = vrot.lane.b32.xlu0 %v1712, 17
    %v2059 = vpop.permute.xlu0 %2058
    %2060 = vrot.lane.b32.xlu0 %v1713, 17
    %v2061 = vpop.permute.xlu0 %2060
    %v2062 = vsel %vm403, %v2053, %v2055
    %v2063 = vsel %vm403, %v2055, %v2057
    %v2064 = vsel %vm403, %v2057, %v2059
    %v2065 = vsel %vm403, %v2059, %v2061
    %v2066 = vsel %vm403, %v2061, %v2051
    %v2069 = vsel %vm409, %v2051, %v2053
    %s2070 = scalar_lea.vmem %s5, 4
    %v2071 = vld [vmem:[%s2070] sm:$0x3]
    %v2073 = vsel %vm103, %v2071, 0
    %v2075 = vsel %vm107, %v2069, 0
    %v2078 = vsel %vm107, %v2062, 0
    %v2081 = vsel %vm107, %v2063, 0
    %v2084 = vsel %vm107, %v2064, 0
    %v2087 = vsel %vm107, %v2065, 0
    %v2090 = vsel %vm107, %v2066, 0
    %2092 = vmatprep.subr.bf16.mxu0 %v2078
    %2093 = vmatpush1.bf16.msra.mxu0 %v2075
    %2094 = vmatprep.subr.bf16.mxu0 0
    %2095 = vmatpush1.bf16.msra.mxu0 0
    %2096 = vmatprep.subr.bf16.mxu0 0
    %2097 = vmatpush1.bf16.msra.mxu0 0
    %2098 = vmatprep.subr.bf16.mxu0 0
    %2099 = vmatpush1.bf16.msra.mxu0 0
    %2100 = vmatprep.subr.bf16.mxu0 0
    %2101 = vmatpush1.bf16.msra.mxu0 0
    %2102 = vmatprep.subr.bf16.mxu0 0
    %2103 = vmatpush1.bf16.msra.mxu0 0
    %2104 = vmatprep.subr.bf16.mxu0 0
    %2105 = vmatpush1.bf16.msra.mxu0 0
    %2106 = vmatprep.subr.bf16.mxu0 0
    %2107 = vmatpush1.bf16.msra.mxu0 0
    %2108 = vmatprep.subr.bf16.mxu0 0
    %2109 = vmatpush1.bf16.msra.mxu0 0
    %2110 = vmatprep.subr.bf16.mxu0 0
    %2111 = vmatpush1.bf16.msra.mxu0 0
    %2112 = vmatprep.subr.bf16.mxu0 0
    %2113 = vmatpush1.bf16.msra.mxu0 0
    %2114 = vmatprep.subr.bf16.mxu0 0
    %2115 = vmatpush1.bf16.msra.mxu0 0
    %2116 = vmatprep.subr.bf16.mxu0 0
    %2117 = vmatpush1.bf16.msra.mxu0 0
    %2118 = vmatprep.subr.bf16.mxu0 0
    %2119 = vmatpush1.bf16.msra.mxu0 0
    %2120 = vmatprep.subr.bf16.mxu0 0
    %2121 = vmatpush1.bf16.msra.mxu0 0
    %2122 = vmatprep.subr.bf16.mxu0 0
    %2123 = vmatpush1.bf16.msra.mxu0 0
    %2124 = vmatprep.mubr.bf16.mxu0 0
    %2125 = vmatmul.mubr.bf16.gmra.mrb[0].mxu0 %v2073
    %v2126 = vpop.f32.mrb[0].mxu0
    %v2127 = vadd.f32 0.0, %v2126
    %v2128 = vpop.f32.mrb[0].mxu0
    %v2129 = vadd.f32 0.0, %v2128
    %v2130 = vpop.f32.mrb[0].mxu0
    %v2131 = vpop.f32.mrb[0].mxu0
    %2132 = vdwg.mxu0
    %2133 = vmatprep.subr.bf16.mxu0 %v2084
    %2134 = vmatpush1.bf16.msra.mxu0 %v2081
    %2135 = vmatprep.subr.bf16.mxu0 0
    %2136 = vmatpush1.bf16.msra.mxu0 0
    %2137 = vmatprep.subr.bf16.mxu0 0
    %2138 = vmatpush1.bf16.msra.mxu0 0
    %2139 = vmatprep.subr.bf16.mxu0 0
    %2140 = vmatpush1.bf16.msra.mxu0 0
    %2141 = vmatprep.subr.bf16.mxu0 0
    %2142 = vmatpush1.bf16.msra.mxu0 0
    %2143 = vmatprep.subr.bf16.mxu0 0
    %2144 = vmatpush1.bf16.msra.mxu0 0
    %2145 = vmatprep.subr.bf16.mxu0 0
    %2146 = vmatpush1.bf16.msra.mxu0 0
    %2147 = vmatprep.subr.bf16.mxu0 0
    %2148 = vmatpush1.bf16.msra.mxu0 0
    %2149 = vmatprep.subr.bf16.mxu0 0
    %2150 = vmatpush1.bf16.msra.mxu0 0
    %2151 = vmatprep.subr.bf16.mxu0 0
    %2152 = vmatpush1.bf16.msra.mxu0 0
    %2153 = vmatprep.subr.bf16.mxu0 0
    %2154 = vmatpush1.bf16.msra.mxu0 0
    %2155 = vmatprep.subr.bf16.mxu0 0
    %2156 = vmatpush1.bf16.msra.mxu0 0
    %2157 = vmatprep.subr.bf16.mxu0 0
    %2158 = vmatpush1.bf16.msra.mxu0 0
    %2159 = vmatprep.subr.bf16.mxu0 0
    %2160 = vmatpush1.bf16.msra.mxu0 0
    %2161 = vmatprep.subr.bf16.mxu0 0
    %2162 = vmatpush1.bf16.msra.mxu0 0
    %2163 = vmatprep.subr.bf16.mxu0 0
    %2164 = vmatpush1.bf16.msra.mxu0 0
    %2165 = vmatprep.mubr.bf16.mxu0 0
    %2166 = vmatmul.mubr.bf16.gmra.mrb[0].mxu0 %v2073
    %v2167 = vpop.f32.mrb[0].mxu0
    %v2168 = vadd.f32 0.0, %v2167
    %v2169 = vpop.f32.mrb[0].mxu0
    %v2170 = vadd.f32 0.0, %v2169
    %v2171 = vpop.f32.mrb[0].mxu0
    %v2172 = vpop.f32.mrb[0].mxu0
    %2173 = vdwg.mxu0
    %2174 = vmatprep.subr.bf16.mxu0 %v2090
    %2175 = vmatpush1.bf16.msra.mxu0 %v2087
    %2176 = vmatprep.subr.bf16.mxu0 0
    %2177 = vmatpush1.bf16.msra.mxu0 0
    %2178 = vmatprep.subr.bf16.mxu0 0
    %2179 = vmatpush1.bf16.msra.mxu0 0
    %2180 = vmatprep.subr.bf16.mxu0 0
    %2181 = vmatpush1.bf16.msra.mxu0 0
    %2182 = vmatprep.subr.bf16.mxu0 0
    %2183 = vmatpush1.bf16.msra.mxu0 0
    %2184 = vmatprep.subr.bf16.mxu0 0
    %2185 = vmatpush1.bf16.msra.mxu0 0
    %2186 = vmatprep.subr.bf16.mxu0 0
    %2187 = vmatpush1.bf16.msra.mxu0 0
    %2188 = vmatprep.subr.bf16.mxu0 0
    %2189 = vmatpush1.bf16.msra.mxu0 0
    %2190 = vmatprep.subr.bf16.mxu0 0
    %2191 = vmatpush1.bf16.msra.mxu0 0
    %2192 = vmatprep.subr.bf16.mxu0 0
    %2193 = vmatpush1.bf16.msra.mxu0 0
    %2194 = vmatprep.subr.bf16.mxu0 0
    %2195 = vmatpush1.bf16.msra.mxu0 0
    %2196 = vmatprep.subr.bf16.mxu0 0
    %2197 = vmatpush1.bf16.msra.mxu0 0
    %2198 = vmatprep.subr.bf16.mxu0 0
    %2199 = vmatpush1.bf16.msra.mxu0 0
    %2200 = vmatprep.subr.bf16.mxu0 0
    %2201 = vmatpush1.bf16.msra.mxu0 0
    %2202 = vmatprep.subr.bf16.mxu0 0
    %2203 = vmatpush1.bf16.msra.mxu0 0
    %2204 = vmatprep.subr.bf16.mxu0 0
    %2205 = vmatpush1.bf16.msra.mxu0 0
    %2206 = vmatprep.mubr.bf16.mxu0 0
    %2207 = vmatmul.mubr.bf16.gmra.mrb[0].mxu0 %v2073
    %v2208 = vpop.f32.mrb[0].mxu0
    %v2209 = vadd.f32 0.0, %v2208
    %v2210 = vpop.f32.mrb[0].mxu0
    %v2211 = vadd.f32 0.0, %v2210
    %v2212 = vpop.f32.mrb[0].mxu0
    %v2213 = vpop.f32.mrb[0].mxu0
    %2214 = vdwg.mxu0
    %v2215 = vadd.f32 %v1962, %v2127
    %v2216 = vadd.f32 %v1964, %v2129
    %v2217 = vadd.f32 %v2003, %v2168
    %v2218 = vadd.f32 %v2005, %v2170
    %v2219 = vadd.f32 %v2044, %v2209
    %v2220 = vadd.f32 %v2046, %v2211
    %2221 = vrot.lane.b32.xlu0 %v1714, 1
    %v2222 = vpop.permute.xlu0 %2221
    %2223 = vrot.lane.b32.xlu0 %v1709, 1
    %v2224 = vpop.permute.xlu0 %2223
    %2225 = vrot.lane.b32.xlu0 %v1710, 1
    %v2226 = vpop.permute.xlu0 %2225
    %2227 = vrot.lane.b32.xlu0 %v1711, 1
    %v2228 = vpop.permute.xlu0 %2227
    %2229 = vrot.lane.b32.xlu0 %v1712, 1
    %v2230 = vpop.permute.xlu0 %2229
    %2231 = vrot.lane.b32.xlu0 %v1713, 1
    %v2232 = vpop.permute.xlu0 %2231
    %v2233 = vsel %vm576, %v2224, %v2226
    %v2234 = vsel %vm576, %v2226, %v2228
    %v2235 = vsel %vm576, %v2228, %v2230
    %v2236 = vsel %vm576, %v2230, %v2232
    %v2237 = vsel %vm576, %v2232, %v2222
    %v2240 = vsel %vm582, %v2222, %v2224
    %s2241 = scalar_lea.vmem %s5, 6
    %v2242 = vld [vmem:[%s2241] sm:$0x3]
    %v2244 = vsel %vm103, %v2242, 0
    %v2246 = vsel %vm107, %v2240, 0
    %v2249 = vsel %vm107, %v2233, 0
    %v2252 = vsel %vm107, %v2234, 0
    %v2255 = vsel %vm107, %v2235, 0
    %v2258 = vsel %vm107, %v2236, 0
    %v2261 = vsel %vm107, %v2237, 0
    %2263 = vmatprep.subr.bf16.mxu0 %v2249
    %2264 = vmatpush1.bf16.msra.mxu0 %v2246
    %2265 = vmatprep.subr.bf16.mxu0 0
    %2266 = vmatpush1.bf16.msra.mxu0 0
    %2267 = vmatprep.subr.bf16.mxu0 0
    %2268 = vmatpush1.bf16.msra.mxu0 0
    %2269 = vmatprep.subr.bf16.mxu0 0
    %2270 = vmatpush1.bf16.msra.mxu0 0
    %2271 = vmatprep.subr.bf16.mxu0 0
    %2272 = vmatpush1.bf16.msra.mxu0 0
    %2273 = vmatprep.subr.bf16.mxu0 0
    %2274 = vmatpush1.bf16.msra.mxu0 0
    %2275 = vmatprep.subr.bf16.mxu0 0
    %2276 = vmatpush1.bf16.msra.mxu0 0
    %2277 = vmatprep.subr.bf16.mxu0 0
    %2278 = vmatpush1.bf16.msra.mxu0 0
    %2279 = vmatprep.subr.bf16.mxu0 0
    %2280 = vmatpush1.bf16.msra.mxu0 0
    %2281 = vmatprep.subr.bf16.mxu0 0
    %2282 = vmatpush1.bf16.msra.mxu0 0
    %2283 = vmatprep.subr.bf16.mxu0 0
    %2284 = vmatpush1.bf16.msra.mxu0 0
    %2285 = vmatprep.subr.bf16.mxu0 0
    %2286 = vmatpush1.bf16.msra.mxu0 0
    %2287 = vmatprep.subr.bf16.mxu0 0
    %2288 = vmatpush1.bf16.msra.mxu0 0
    %2289 = vmatprep.subr.bf16.mxu0 0
    %2290 = vmatpush1.bf16.msra.mxu0 0
    %2291 = vmatprep.subr.bf16.mxu0 0
    %2292 = vmatpush1.bf16.msra.mxu0 0
    %2293 = vmatprep.subr.bf16.mxu0 0
    %2294 = vmatpush1.bf16.msra.mxu0 0
    %2295 = vmatprep.mubr.bf16.mxu0 0
    %2296 = vmatmul.mubr.bf16.gmra.mrb[0].mxu0 %v2244
    %v2297 = vpop.f32.mrb[0].mxu0
    %v2298 = vadd.f32 0.0, %v2297
    %v2299 = vpop.f32.mrb[0].mxu0
    %v2300 = vadd.f32 0.0, %v2299
    %v2301 = vpop.f32.mrb[0].mxu0
    %v2302 = vpop.f32.mrb[0].mxu0
    %2303 = vdwg.mxu0
    %2304 = vmatprep.subr.bf16.mxu0 %v2255
    %2305 = vmatpush1.bf16.msra.mxu0 %v2252
    %2306 = vmatprep.subr.bf16.mxu0 0
    %2307 = vmatpush1.bf16.msra.mxu0 0
    %2308 = vmatprep.subr.bf16.mxu0 0
    %2309 = vmatpush1.bf16.msra.mxu0 0
    %2310 = vmatprep.subr.bf16.mxu0 0
    %2311 = vmatpush1.bf16.msra.mxu0 0
    %2312 = vmatprep.subr.bf16.mxu0 0
    %2313 = vmatpush1.bf16.msra.mxu0 0
    %2314 = vmatprep.subr.bf16.mxu0 0
    %2315 = vmatpush1.bf16.msra.mxu0 0
    %2316 = vmatprep.subr.bf16.mxu0 0
    %2317 = vmatpush1.bf16.msra.mxu0 0
    %2318 = vmatprep.subr.bf16.mxu0 0
    %2319 = vmatpush1.bf16.msra.mxu0 0
    %2320 = vmatprep.subr.bf16.mxu0 0
    %2321 = vmatpush1.bf16.msra.mxu0 0
    %2322 = vmatprep.subr.bf16.mxu0 0
    %2323 = vmatpush1.bf16.msra.mxu0 0
    %2324 = vmatprep.subr.bf16.mxu0 0
    %2325 = vmatpush1.bf16.msra.mxu0 0
    %2326 = vmatprep.subr.bf16.mxu0 0
    %2327 = vmatpush1.bf16.msra.mxu0 0
    %2328 = vmatprep.subr.bf16.mxu0 0
    %2329 = vmatpush1.bf16.msra.mxu0 0
    %2330 = vmatprep.subr.bf16.mxu0 0
    %2331 = vmatpush1.bf16.msra.mxu0 0
    %2332 = vmatprep.subr.bf16.mxu0 0
    %2333 = vmatpush1.bf16.msra.mxu0 0
    %2334 = vmatprep.subr.bf16.mxu0 0
    %2335 = vmatpush1.bf16.msra.mxu0 0
    %2336 = vmatprep.mubr.bf16.mxu0 0
    %2337 = vmatmul.mubr.bf16.gmra.mrb[0].mxu0 %v2244
    %v2338 = vpop.f32.mrb[0].mxu0
    %v2339 = vadd.f32 0.0, %v2338
    %v2340 = vpop.f32.mrb[0].mxu0
    %v2341 = vadd.f32 0.0, %v2340
    %v2342 = vpop.f32.mrb[0].mxu0
    %v2343 = vpop.f32.mrb[0].mxu0
    %2344 = vdwg.mxu0
    %2345 = vmatprep.subr.bf16.mxu0 %v2261
    %2346 = vmatpush1.bf16.msra.mxu0 %v2258
    %2347 = vmatprep.subr.bf16.mxu0 0
    %2348 = vmatpush1.bf16.msra.mxu0 0
    %2349 = vmatprep.subr.bf16.mxu0 0
    %2350 = vmatpush1.bf16.msra.mxu0 0
    %2351 = vmatprep.subr.bf16.mxu0 0
    %2352 = vmatpush1.bf16.msra.mxu0 0
    %2353 = vmatprep.subr.bf16.mxu0 0
    %2354 = vmatpush1.bf16.msra.mxu0 0
    %2355 = vmatprep.subr.bf16.mxu0 0
    %2356 = vmatpush1.bf16.msra.mxu0 0
    %2357 = vmatprep.subr.bf16.mxu0 0
    %2358 = vmatpush1.bf16.msra.mxu0 0
    %2359 = vmatprep.subr.bf16.mxu0 0
    %2360 = vmatpush1.bf16.msra.mxu0 0
    %2361 = vmatprep.subr.bf16.mxu0 0
    %2362 = vmatpush1.bf16.msra.mxu0 0
    %2363 = vmatprep.subr.bf16.mxu0 0
    %2364 = vmatpush1.bf16.msra.mxu0 0
    %2365 = vmatprep.subr.bf16.mxu0 0
    %2366 = vmatpush1.bf16.msra.mxu0 0
    %2367 = vmatprep.subr.bf16.mxu0 0
    %2368 = vmatpush1.bf16.msra.mxu0 0
    %2369 = vmatprep.subr.bf16.mxu0 0
    %2370 = vmatpush1.bf16.msra.mxu0 0
    %2371 = vmatprep.subr.bf16.mxu0 0
    %2372 = vmatpush1.bf16.msra.mxu0 0
    %2373 = vmatprep.subr.bf16.mxu0 0
    %2374 = vmatpush1.bf16.msra.mxu0 0
    %2375 = vmatprep.subr.bf16.mxu0 0
    %2376 = vmatpush1.bf16.msra.mxu0 0
    %2377 = vmatprep.mubr.bf16.mxu0 0
    %2378 = vmatmul.mubr.bf16.gmra.mrb[0].mxu0 %v2244
    %v2379 = vpop.f32.mrb[0].mxu0
    %v2380 = vadd.f32 0.0, %v2379
    %v2381 = vpop.f32.mrb[0].mxu0
    %v2382 = vadd.f32 0.0, %v2381
    %v2383 = vpop.f32.mrb[0].mxu0
    %v2384 = vpop.f32.mrb[0].mxu0
    %2385 = vdwg.mxu0
    %v2386 = vadd.f32 %v2215, %v2298
    %v2387 = vadd.f32 %v2216, %v2300
    %v2388 = vadd.f32 %v2217, %v2339
    %v2389 = vadd.f32 %v2218, %v2341
    %v2390 = vadd.f32 %v2219, %v2380
    %v2391 = vadd.f32 %v2220, %v2382
    %s2392 = scalar_lea.vmem %s5, 8
    %v2393 = vld [vmem:[%s2392] sm:$0x3]
    %v2395 = vsel %vm103, %v2393, 0
    %v2398 = vsel %vm107, %v1709, 0
    %v2401 = vsel %vm107, %v1710, 0
    %v2404 = vsel %vm107, %v1711, 0
    %v2407 = vsel %vm107, %v1712, 0
    %v2410 = vsel %vm107, %v1713, 0
    %v2413 = vsel %vm107, %v1714, 0
    %2415 = vmatprep.subr.bf16.mxu0 %v2401
    %2416 = vmatpush1.bf16.msra.mxu0 %v2398
    %2417 = vmatprep.subr.bf16.mxu0 0
    %2418 = vmatpush1.bf16.msra.mxu0 0
    %2419 = vmatprep.subr.bf16.mxu0 0
    %2420 = vmatpush1.bf16.msra.mxu0 0
    %2421 = vmatprep.subr.bf16.mxu0 0
    %2422 = vmatpush1.bf16.msra.mxu0 0
    %2423 = vmatprep.subr.bf16.mxu0 0
    %2424 = vmatpush1.bf16.msra.mxu0 0
    %2425 = vmatprep.subr.bf16.mxu0 0
    %2426 = vmatpush1.bf16.msra.mxu0 0
    %2427 = vmatprep.subr.bf16.mxu0 0
    %2428 = vmatpush1.bf16.msra.mxu0 0
    %2429 = vmatprep.subr.bf16.mxu0 0
    %2430 = vmatpush1.bf16.msra.mxu0 0
    %2431 = vmatprep.subr.bf16.mxu0 0
    %2432 = vmatpush1.bf16.msra.mxu0 0
    %2433 = vmatprep.subr.bf16.mxu0 0
    %2434 = vmatpush1.bf16.msra.mxu0 0
    %2435 = vmatprep.subr.bf16.mxu0 0
    %2436 = vmatpush1.bf16.msra.mxu0 0
    %2437 = vmatprep.subr.bf16.mxu0 0
    %2438 = vmatpush1.bf16.msra.mxu0 0
    %2439 = vmatprep.subr.bf16.mxu0 0
    %2440 = vmatpush1.bf16.msra.mxu0 0
    %2441 = vmatprep.subr.bf16.mxu0 0
    %2442 = vmatpush1.bf16.msra.mxu0 0
    %2443 = vmatprep.subr.bf16.mxu0 0
    %2444 = vmatpush1.bf16.msra.mxu0 0
    %2445 = vmatprep.subr.bf16.mxu0 0
    %2446 = vmatpush1.bf16.msra.mxu0 0
    %2447 = vmatprep.mubr.bf16.mxu0 0
    %2448 = vmatmul.mubr.bf16.gmra.mrb[0].mxu0 %v2395
    %v2449 = vpop.f32.mrb[0].mxu0
    %v2450 = vadd.f32 0.0, %v2449
    %v2451 = vpop.f32.mrb[0].mxu0
    %v2452 = vadd.f32 0.0, %v2451
    %v2453 = vpop.f32.mrb[0].mxu0
    %v2454 = vpop.f32.mrb[0].mxu0
    %2455 = vdwg.mxu0
    %2456 = vmatprep.subr.bf16.mxu0 %v2407
    %2457 = vmatpush1.bf16.msra.mxu0 %v2404
    %2458 = vmatprep.subr.bf16.mxu0 0
    %2459 = vmatpush1.bf16.msra.mxu0 0
    %2460 = vmatprep.subr.bf16.mxu0 0
    %2461 = vmatpush1.bf16.msra.mxu0 0
    %2462 = vmatprep.subr.bf16.mxu0 0
    %2463 = vmatpush1.bf16.msra.mxu0 0
    %2464 = vmatprep.subr.bf16.mxu0 0
    %2465 = vmatpush1.bf16.msra.mxu0 0
    %2466 = vmatprep.subr.bf16.mxu0 0
    %2467 = vmatpush1.bf16.msra.mxu0 0
    %2468 = vmatprep.subr.bf16.mxu0 0
    %2469 = vmatpush1.bf16.msra.mxu0 0
    %2470 = vmatprep.subr.bf16.mxu0 0
    %2471 = vmatpush1.bf16.msra.mxu0 0
    %2472 = vmatprep.subr.bf16.mxu0 0
    %2473 = vmatpush1.bf16.msra.mxu0 0
    %2474 = vmatprep.subr.bf16.mxu0 0
    %2475 = vmatpush1.bf16.msra.mxu0 0
    %2476 = vmatprep.subr.bf16.mxu0 0
    %2477 = vmatpush1.bf16.msra.mxu0 0
    %2478 = vmatprep.subr.bf16.mxu0 0
    %2479 = vmatpush1.bf16.msra.mxu0 0
    %2480 = vmatprep.subr.bf16.mxu0 0
    %2481 = vmatpush1.bf16.msra.mxu0 0
    %2482 = vmatprep.subr.bf16.mxu0 0
    %2483 = vmatpush1.bf16.msra.mxu0 0
    %2484 = vmatprep.subr.bf16.mxu0 0
    %2485 = vmatpush1.bf16.msra.mxu0 0
    %2486 = vmatprep.subr.bf16.mxu0 0
    %2487 = vmatpush1.bf16.msra.mxu0 0
    %2488 = vmatprep.mubr.bf16.mxu0 0
    %2489 = vmatmul.mubr.bf16.gmra.mrb[0].mxu0 %v2395
    %v2490 = vpop.f32.mrb[0].mxu0
    %v2491 = vadd.f32 0.0, %v2490
    %v2492 = vpop.f32.mrb[0].mxu0
    %v2493 = vadd.f32 0.0, %v2492
    %v2494 = vpop.f32.mrb[0].mxu0
    %v2495 = vpop.f32.mrb[0].mxu0
    %2496 = vdwg.mxu0
    %2497 = vmatprep.subr.bf16.mxu0 %v2413
    %2498 = vmatpush1.bf16.msra.mxu0 %v2410
    %2499 = vmatprep.subr.bf16.mxu0 0
    %2500 = vmatpush1.bf16.msra.mxu0 0
    %2501 = vmatprep.subr.bf16.mxu0 0
    %2502 = vmatpush1.bf16.msra.mxu0 0
    %2503 = vmatprep.subr.bf16.mxu0 0
    %2504 = vmatpush1.bf16.msra.mxu0 0
    %2505 = vmatprep.subr.bf16.mxu0 0
    %2506 = vmatpush1.bf16.msra.mxu0 0
    %2507 = vmatprep.subr.bf16.mxu0 0
    %2508 = vmatpush1.bf16.msra.mxu0 0
    %2509 = vmatprep.subr.bf16.mxu0 0
    %2510 = vmatpush1.bf16.msra.mxu0 0
    %2511 = vmatprep.subr.bf16.mxu0 0
    %2512 = vmatpush1.bf16.msra.mxu0 0
    %2513 = vmatprep.subr.bf16.mxu0 0
    %2514 = vmatpush1.bf16.msra.mxu0 0
    %2515 = vmatprep.subr.bf16.mxu0 0
    %2516 = vmatpush1.bf16.msra.mxu0 0
    %2517 = vmatprep.subr.bf16.mxu0 0
    %2518 = vmatpush1.bf16.msra.mxu0 0
    %2519 = vmatprep.subr.bf16.mxu0 0
    %2520 = vmatpush1.bf16.msra.mxu0 0
    %2521 = vmatprep.subr.bf16.mxu0 0
    %2522 = vmatpush1.bf16.msra.mxu0 0
    %2523 = vmatprep.subr.bf16.mxu0 0
    %2524 = vmatpush1.bf16.msra.mxu0 0
    %2525 = vmatprep.subr.bf16.mxu0 0
    %2526 = vmatpush1.bf16.msra.mxu0 0
    %2527 = vmatprep.subr.bf16.mxu0 0
    %2528 = vmatpush1.bf16.msra.mxu0 0
    %2529 = vmatprep.mubr.bf16.mxu0 0
    %2530 = vmatmul.mubr.bf16.gmra.mrb[0].mxu0 %v2395
    %v2531 = vpop.f32.mrb[0].mxu0
    %v2532 = vadd.f32 0.0, %v2531
    %v2533 = vpop.f32.mrb[0].mxu0
    %v2534 = vadd.f32 0.0, %v2533
    %v2535 = vpop.f32.mrb[0].mxu0
    %v2536 = vpop.f32.mrb[0].mxu0
    %2537 = vdwg.mxu0
    %v2538 = vadd.f32 %v2386, %v2450
    %v2539 = vadd.f32 %v2387, %v2452
    %v2540 = vadd.f32 %v2388, %v2491
    %v2541 = vadd.f32 %v2389, %v2493
    %v2542 = vadd.f32 %v2390, %v2532
    %v2543 = vadd.f32 %v2391, %v2534
    %2544 = vrot.lane.b32.xlu0 %v1709, 127
    %v2545 = vpop.permute.xlu0 %2544
    %2546 = vrot.lane.b32.xlu0 %v1710, 127
    %v2547 = vpop.permute.xlu0 %2546
    %2548 = vrot.lane.b32.xlu0 %v1711, 127
    %v2549 = vpop.permute.xlu0 %2548
    %2550 = vrot.lane.b32.xlu0 %v1712, 127
    %v2551 = vpop.permute.xlu0 %2550
    %2552 = vrot.lane.b32.xlu0 %v1713, 127
    %v2553 = vpop.permute.xlu0 %2552
    %2554 = vrot.lane.b32.xlu0 %v1714, 127
    %v2555 = vpop.permute.xlu0 %2554
    %v2556 = vsel %vm901, %v2545, %v2547
    %v2557 = vsel %vm901, %v2547, %v2549
    %v2558 = vsel %vm901, %v2549, %v2551
    %v2559 = vsel %vm901, %v2551, %v2553
    %v2560 = vsel %vm901, %v2553, %v2555
    %v2563 = vsel %vm907, %v2555, %v2545
    %s2564 = scalar_lea.vmem %s5, 10
    %v2565 = vld [vmem:[%s2564] sm:$0x3]
    %v2567 = vsel %vm103, %v2565, 0
    %v2570 = vsel %vm107, %v2556, 0
    %v2573 = vsel %vm107, %v2557, 0
    %v2576 = vsel %vm107, %v2558, 0
    %v2579 = vsel %vm107, %v2559, 0
    %v2582 = vsel %vm107, %v2560, 0
    %v2584 = vsel %vm107, %v2563, 0
    %2586 = vmatprep.subr.bf16.mxu0 %v2573
    %2587 = vmatpush1.bf16.msra.mxu0 %v2570
    %2588 = vmatprep.subr.bf16.mxu0 0
    %2589 = vmatpush1.bf16.msra.mxu0 0
    %2590 = vmatprep.subr.bf16.mxu0 0
    %2591 = vmatpush1.bf16.msra.mxu0 0
    %2592 = vmatprep.subr.bf16.mxu0 0
    %2593 = vmatpush1.bf16.msra.mxu0 0
    %2594 = vmatprep.subr.bf16.mxu0 0
    %2595 = vmatpush1.bf16.msra.mxu0 0
    %2596 = vmatprep.subr.bf16.mxu0 0
    %2597 = vmatpush1.bf16.msra.mxu0 0
    %2598 = vmatprep.subr.bf16.mxu0 0
    %2599 = vmatpush1.bf16.msra.mxu0 0
    %2600 = vmatprep.subr.bf16.mxu0 0
    %2601 = vmatpush1.bf16.msra.mxu0 0
    %2602 = vmatprep.subr.bf16.mxu0 0
    %2603 = vmatpush1.bf16.msra.mxu0 0
    %2604 = vmatprep.subr.bf16.mxu0 0
    %2605 = vmatpush1.bf16.msra.mxu0 0
    %2606 = vmatprep.subr.bf16.mxu0 0
    %2607 = vmatpush1.bf16.msra.mxu0 0
    %2608 = vmatprep.subr.bf16.mxu0 0
    %2609 = vmatpush1.bf16.msra.mxu0 0
    %2610 = vmatprep.subr.bf16.mxu0 0
    %2611 = vmatpush1.bf16.msra.mxu0 0
    %2612 = vmatprep.subr.bf16.mxu0 0
    %2613 = vmatpush1.bf16.msra.mxu0 0
    %2614 = vmatprep.subr.bf16.mxu0 0
    %2615 = vmatpush1.bf16.msra.mxu0 0
    %2616 = vmatprep.subr.bf16.mxu0 0
    %2617 = vmatpush1.bf16.msra.mxu0 0
    %2618 = vmatprep.mubr.bf16.mxu0 0
    %2619 = vmatmul.mubr.bf16.gmra.mrb[0].mxu0 %v2567
    %v2620 = vpop.f32.mrb[0].mxu0
    %v2621 = vadd.f32 0.0, %v2620
    %v2622 = vpop.f32.mrb[0].mxu0
    %v2623 = vadd.f32 0.0, %v2622
    %v2624 = vpop.f32.mrb[0].mxu0
    %v2625 = vpop.f32.mrb[0].mxu0
    %2626 = vdwg.mxu0
    %2627 = vmatprep.subr.bf16.mxu0 %v2579
    %2628 = vmatpush1.bf16.msra.mxu0 %v2576
    %2629 = vmatprep.subr.bf16.mxu0 0
    %2630 = vmatpush1.bf16.msra.mxu0 0
    %2631 = vmatprep.subr.bf16.mxu0 0
    %2632 = vmatpush1.bf16.msra.mxu0 0
    %2633 = vmatprep.subr.bf16.mxu0 0
    %2634 = vmatpush1.bf16.msra.mxu0 0
    %2635 = vmatprep.subr.bf16.mxu0 0
    %2636 = vmatpush1.bf16.msra.mxu0 0
    %2637 = vmatprep.subr.bf16.mxu0 0
    %2638 = vmatpush1.bf16.msra.mxu0 0
    %2639 = vmatprep.subr.bf16.mxu0 0
    %2640 = vmatpush1.bf16.msra.mxu0 0
    %2641 = vmatprep.subr.bf16.mxu0 0
    %2642 = vmatpush1.bf16.msra.mxu0 0
    %2643 = vmatprep.subr.bf16.mxu0 0
    %2644 = vmatpush1.bf16.msra.mxu0 0
    %2645 = vmatprep.subr.bf16.mxu0 0
    %2646 = vmatpush1.bf16.msra.mxu0 0
    %2647 = vmatprep.subr.bf16.mxu0 0
    %2648 = vmatpush1.bf16.msra.mxu0 0
    %2649 = vmatprep.subr.bf16.mxu0 0
    %2650 = vmatpush1.bf16.msra.mxu0 0
    %2651 = vmatprep.subr.bf16.mxu0 0
    %2652 = vmatpush1.bf16.msra.mxu0 0
    %2653 = vmatprep.subr.bf16.mxu0 0
    %2654 = vmatpush1.bf16.msra.mxu0 0
    %2655 = vmatprep.subr.bf16.mxu0 0
    %2656 = vmatpush1.bf16.msra.mxu0 0
    %2657 = vmatprep.subr.bf16.mxu0 0
    %2658 = vmatpush1.bf16.msra.mxu0 0
    %2659 = vmatprep.mubr.bf16.mxu0 0
    %2660 = vmatmul.mubr.bf16.gmra.mrb[0].mxu0 %v2567
    %v2661 = vpop.f32.mrb[0].mxu0
    %v2662 = vadd.f32 0.0, %v2661
    %v2663 = vpop.f32.mrb[0].mxu0
    %v2664 = vadd.f32 0.0, %v2663
    %v2665 = vpop.f32.mrb[0].mxu0
    %v2666 = vpop.f32.mrb[0].mxu0
    %2667 = vdwg.mxu0
    %2668 = vmatprep.subr.bf16.mxu0 %v2584
    %2669 = vmatpush1.bf16.msra.mxu0 %v2582
    %2670 = vmatprep.subr.bf16.mxu0 0
    %2671 = vmatpush1.bf16.msra.mxu0 0
    %2672 = vmatprep.subr.bf16.mxu0 0
    %2673 = vmatpush1.bf16.msra.mxu0 0
    %2674 = vmatprep.subr.bf16.mxu0 0
    %2675 = vmatpush1.bf16.msra.mxu0 0
    %2676 = vmatprep.subr.bf16.mxu0 0
    %2677 = vmatpush1.bf16.msra.mxu0 0
    %2678 = vmatprep.subr.bf16.mxu0 0
    %2679 = vmatpush1.bf16.msra.mxu0 0
    %2680 = vmatprep.subr.bf16.mxu0 0
    %2681 = vmatpush1.bf16.msra.mxu0 0
    %2682 = vmatprep.subr.bf16.mxu0 0
    %2683 = vmatpush1.bf16.msra.mxu0 0
    %2684 = vmatprep.subr.bf16.mxu0 0
    %2685 = vmatpush1.bf16.msra.mxu0 0
    %2686 = vmatprep.subr.bf16.mxu0 0
    %2687 = vmatpush1.bf16.msra.mxu0 0
    %2688 = vmatprep.subr.bf16.mxu0 0
    %2689 = vmatpush1.bf16.msra.mxu0 0
    %2690 = vmatprep.subr.bf16.mxu0 0
    %2691 = vmatpush1.bf16.msra.mxu0 0
    %2692 = vmatprep.subr.bf16.mxu0 0
    %2693 = vmatpush1.bf16.msra.mxu0 0
    %2694 = vmatprep.subr.bf16.mxu0 0
    %2695 = vmatpush1.bf16.msra.mxu0 0
    %2696 = vmatprep.subr.bf16.mxu0 0
    %2697 = vmatpush1.bf16.msra.mxu0 0
    %2698 = vmatprep.subr.bf16.mxu0 0
    %2699 = vmatpush1.bf16.msra.mxu0 0
    %2700 = vmatprep.mubr.bf16.mxu0 0
    %2701 = vmatmul.mubr.bf16.gmra.mrb[0].mxu0 %v2567
    %v2702 = vpop.f32.mrb[0].mxu0
    %v2703 = vadd.f32 0.0, %v2702
    %v2704 = vpop.f32.mrb[0].mxu0
    %v2705 = vadd.f32 0.0, %v2704
    %v2706 = vpop.f32.mrb[0].mxu0
    %v2707 = vpop.f32.mrb[0].mxu0
    %2708 = vdwg.mxu0
    %v2709 = vadd.f32 %v2538, %v2621
    %v2710 = vadd.f32 %v2539, %v2623
    %v2711 = vadd.f32 %v2540, %v2662
    %v2712 = vadd.f32 %v2541, %v2664
    %v2713 = vadd.f32 %v2542, %v2703
    %v2714 = vadd.f32 %v2543, %v2705
    %2715 = vrot.lane.b32.xlu0 %v1709, 111
    %v2716 = vpop.permute.xlu0 %2715
    %2717 = vrot.lane.b32.xlu0 %v1710, 111
    %v2718 = vpop.permute.xlu0 %2717
    %2719 = vrot.lane.b32.xlu0 %v1711, 111
    %v2720 = vpop.permute.xlu0 %2719
    %2721 = vrot.lane.b32.xlu0 %v1712, 111
    %v2722 = vpop.permute.xlu0 %2721
    %2723 = vrot.lane.b32.xlu0 %v1713, 111
    %v2724 = vpop.permute.xlu0 %2723
    %2725 = vrot.lane.b32.xlu0 %v1714, 111
    %v2726 = vpop.permute.xlu0 %2725
    %v2727 = vsel %vm1074, %v2716, %v2718
    %v2728 = vsel %vm1074, %v2718, %v2720
    %v2729 = vsel %vm1074, %v2720, %v2722
    %v2730 = vsel %vm1074, %v2722, %v2724
    %v2731 = vsel %vm1074, %v2724, %v2726
    %v2734 = vsel %vm1080, %v2726, %v2716
    %s2735 = scalar_lea.vmem %s5, 12
    %v2736 = vld [vmem:[%s2735] sm:$0x3]
    %v2738 = vsel %vm103, %v2736, 0
    %v2741 = vsel %vm107, %v2727, 0
    %v2744 = vsel %vm107, %v2728, 0
    %v2747 = vsel %vm107, %v2729, 0
    %v2750 = vsel %vm107, %v2730, 0
    %v2753 = vsel %vm107, %v2731, 0
    %v2755 = vsel %vm107, %v2734, 0
    %2757 = vmatprep.subr.bf16.mxu0 %v2744
    %2758 = vmatpush1.bf16.msra.mxu0 %v2741
    %2759 = vmatprep.subr.bf16.mxu0 0
    %2760 = vmatpush1.bf16.msra.mxu0 0
    %2761 = vmatprep.subr.bf16.mxu0 0
    %2762 = vmatpush1.bf16.msra.mxu0 0
    %2763 = vmatprep.subr.bf16.mxu0 0
    %2764 = vmatpush1.bf16.msra.mxu0 0
    %2765 = vmatprep.subr.bf16.mxu0 0
    %2766 = vmatpush1.bf16.msra.mxu0 0
    %2767 = vmatprep.subr.bf16.mxu0 0
    %2768 = vmatpush1.bf16.msra.mxu0 0
    %2769 = vmatprep.subr.bf16.mxu0 0
    %2770 = vmatpush1.bf16.msra.mxu0 0
    %2771 = vmatprep.subr.bf16.mxu0 0
    %2772 = vmatpush1.bf16.msra.mxu0 0
    %2773 = vmatprep.subr.bf16.mxu0 0
    %2774 = vmatpush1.bf16.msra.mxu0 0
    %2775 = vmatprep.subr.bf16.mxu0 0
    %2776 = vmatpush1.bf16.msra.mxu0 0
    %2777 = vmatprep.subr.bf16.mxu0 0
    %2778 = vmatpush1.bf16.msra.mxu0 0
    %2779 = vmatprep.subr.bf16.mxu0 0
    %2780 = vmatpush1.bf16.msra.mxu0 0
    %2781 = vmatprep.subr.bf16.mxu0 0
    %2782 = vmatpush1.bf16.msra.mxu0 0
    %2783 = vmatprep.subr.bf16.mxu0 0
    %2784 = vmatpush1.bf16.msra.mxu0 0
    %2785 = vmatprep.subr.bf16.mxu0 0
    %2786 = vmatpush1.bf16.msra.mxu0 0
    %2787 = vmatprep.subr.bf16.mxu0 0
    %2788 = vmatpush1.bf16.msra.mxu0 0
    %2789 = vmatprep.mubr.bf16.mxu0 0
    %2790 = vmatmul.mubr.bf16.gmra.mrb[0].mxu0 %v2738
    %v2791 = vpop.f32.mrb[0].mxu0
    %v2792 = vadd.f32 0.0, %v2791
    %v2793 = vpop.f32.mrb[0].mxu0
    %v2794 = vadd.f32 0.0, %v2793
    %v2795 = vpop.f32.mrb[0].mxu0
    %v2796 = vpop.f32.mrb[0].mxu0
    %2797 = vdwg.mxu0
    %2798 = vmatprep.subr.bf16.mxu0 %v2750
    %2799 = vmatpush1.bf16.msra.mxu0 %v2747
    %2800 = vmatprep.subr.bf16.mxu0 0
    %2801 = vmatpush1.bf16.msra.mxu0 0
    %2802 = vmatprep.subr.bf16.mxu0 0
    %2803 = vmatpush1.bf16.msra.mxu0 0
    %2804 = vmatprep.subr.bf16.mxu0 0
    %2805 = vmatpush1.bf16.msra.mxu0 0
    %2806 = vmatprep.subr.bf16.mxu0 0
    %2807 = vmatpush1.bf16.msra.mxu0 0
    %2808 = vmatprep.subr.bf16.mxu0 0
    %2809 = vmatpush1.bf16.msra.mxu0 0
    %2810 = vmatprep.subr.bf16.mxu0 0
    %2811 = vmatpush1.bf16.msra.mxu0 0
    %2812 = vmatprep.subr.bf16.mxu0 0
    %2813 = vmatpush1.bf16.msra.mxu0 0
    %2814 = vmatprep.subr.bf16.mxu0 0
    %2815 = vmatpush1.bf16.msra.mxu0 0
    %2816 = vmatprep.subr.bf16.mxu0 0
    %2817 = vmatpush1.bf16.msra.mxu0 0
    %2818 = vmatprep.subr.bf16.mxu0 0
    %2819 = vmatpush1.bf16.msra.mxu0 0
    %2820 = vmatprep.subr.bf16.mxu0 0
    %2821 = vmatpush1.bf16.msra.mxu0 0
    %2822 = vmatprep.subr.bf16.mxu0 0
    %2823 = vmatpush1.bf16.msra.mxu0 0
    %2824 = vmatprep.subr.bf16.mxu0 0
    %2825 = vmatpush1.bf16.msra.mxu0 0
    %2826 = vmatprep.subr.bf16.mxu0 0
    %2827 = vmatpush1.bf16.msra.mxu0 0
    %2828 = vmatprep.subr.bf16.mxu0 0
    %2829 = vmatpush1.bf16.msra.mxu0 0
    %2830 = vmatprep.mubr.bf16.mxu0 0
    %2831 = vmatmul.mubr.bf16.gmra.mrb[0].mxu0 %v2738
    %v2832 = vpop.f32.mrb[0].mxu0
    %v2833 = vadd.f32 0.0, %v2832
    %v2834 = vpop.f32.mrb[0].mxu0
    %v2835 = vadd.f32 0.0, %v2834
    %v2836 = vpop.f32.mrb[0].mxu0
    %v2837 = vpop.f32.mrb[0].mxu0
    %2838 = vdwg.mxu0
    %2839 = vmatprep.subr.bf16.mxu0 %v2755
    %2840 = vmatpush1.bf16.msra.mxu0 %v2753
    %2841 = vmatprep.subr.bf16.mxu0 0
    %2842 = vmatpush1.bf16.msra.mxu0 0
    %2843 = vmatprep.subr.bf16.mxu0 0
    %2844 = vmatpush1.bf16.msra.mxu0 0
    %2845 = vmatprep.subr.bf16.mxu0 0
    %2846 = vmatpush1.bf16.msra.mxu0 0
    %2847 = vmatprep.subr.bf16.mxu0 0
    %2848 = vmatpush1.bf16.msra.mxu0 0
    %2849 = vmatprep.subr.bf16.mxu0 0
    %2850 = vmatpush1.bf16.msra.mxu0 0
    %2851 = vmatprep.subr.bf16.mxu0 0
    %2852 = vmatpush1.bf16.msra.mxu0 0
    %2853 = vmatprep.subr.bf16.mxu0 0
    %2854 = vmatpush1.bf16.msra.mxu0 0
    %2855 = vmatprep.subr.bf16.mxu0 0
    %2856 = vmatpush1.bf16.msra.mxu0 0
    %2857 = vmatprep.subr.bf16.mxu0 0
    %2858 = vmatpush1.bf16.msra.mxu0 0
    %2859 = vmatprep.subr.bf16.mxu0 0
    %2860 = vmatpush1.bf16.msra.mxu0 0
    %2861 = vmatprep.subr.bf16.mxu0 0
    %2862 = vmatpush1.bf16.msra.mxu0 0
    %2863 = vmatprep.subr.bf16.mxu0 0
    %2864 = vmatpush1.bf16.msra.mxu0 0
    %2865 = vmatprep.subr.bf16.mxu0 0
    %2866 = vmatpush1.bf16.msra.mxu0 0
    %2867 = vmatprep.subr.bf16.mxu0 0
    %2868 = vmatpush1.bf16.msra.mxu0 0
    %2869 = vmatprep.subr.bf16.mxu0 0
    %2870 = vmatpush1.bf16.msra.mxu0 0
    %2871 = vmatprep.mubr.bf16.mxu0 0
    %2872 = vmatmul.mubr.bf16.gmra.mrb[0].mxu0 %v2738
    %v2873 = vpop.f32.mrb[0].mxu0
    %v2874 = vadd.f32 0.0, %v2873
    %v2875 = vpop.f32.mrb[0].mxu0
    %v2876 = vadd.f32 0.0, %v2875
    %v2877 = vpop.f32.mrb[0].mxu0
    %v2878 = vpop.f32.mrb[0].mxu0
    %2879 = vdwg.mxu0
    %v2880 = vadd.f32 %v2709, %v2792
    %v2881 = vadd.f32 %v2710, %v2794
    %v2882 = vadd.f32 %v2711, %v2833
    %v2883 = vadd.f32 %v2712, %v2835
    %v2884 = vadd.f32 %v2713, %v2874
    %v2885 = vadd.f32 %v2714, %v2876
    %2886 = vrot.lane.b32.xlu0 %v1709, 110
    %v2887 = vpop.permute.xlu0 %2886
    %2888 = vrot.lane.b32.xlu0 %v1710, 110
    %v2889 = vpop.permute.xlu0 %2888
    %2890 = vrot.lane.b32.xlu0 %v1711, 110
    %v2891 = vpop.permute.xlu0 %2890
    %2892 = vrot.lane.b32.xlu0 %v1712, 110
    %v2893 = vpop.permute.xlu0 %2892
    %2894 = vrot.lane.b32.xlu0 %v1713, 110
    %v2895 = vpop.permute.xlu0 %2894
    %2896 = vrot.lane.b32.xlu0 %v1714, 110
    %v2897 = vpop.permute.xlu0 %2896
    %v2898 = vsel %vm1247, %v2887, %v2889
    %v2899 = vsel %vm1247, %v2889, %v2891
    %v2900 = vsel %vm1247, %v2891, %v2893
    %v2901 = vsel %vm1247, %v2893, %v2895
    %v2902 = vsel %vm1247, %v2895, %v2897
    %v2905 = vsel %vm1253, %v2897, %v2887
    %s2906 = scalar_lea.vmem %s5, 14
    %v2907 = vld [vmem:[%s2906] sm:$0x3]
    %v2909 = vsel %vm103, %v2907, 0
    %v2912 = vsel %vm107, %v2898, 0
    %v2915 = vsel %vm107, %v2899, 0
    %v2918 = vsel %vm107, %v2900, 0
    %v2921 = vsel %vm107, %v2901, 0
    %v2924 = vsel %vm107, %v2902, 0
    %v2926 = vsel %vm107, %v2905, 0
    %2928 = vmatprep.subr.bf16.mxu0 %v2915
    %2929 = vmatpush1.bf16.msra.mxu0 %v2912
    %2930 = vmatprep.subr.bf16.mxu0 0
    %2931 = vmatpush1.bf16.msra.mxu0 0
    %2932 = vmatprep.subr.bf16.mxu0 0
    %2933 = vmatpush1.bf16.msra.mxu0 0
    %2934 = vmatprep.subr.bf16.mxu0 0
    %2935 = vmatpush1.bf16.msra.mxu0 0
    %2936 = vmatprep.subr.bf16.mxu0 0
    %2937 = vmatpush1.bf16.msra.mxu0 0
    %2938 = vmatprep.subr.bf16.mxu0 0
    %2939 = vmatpush1.bf16.msra.mxu0 0
    %2940 = vmatprep.subr.bf16.mxu0 0
    %2941 = vmatpush1.bf16.msra.mxu0 0
    %2942 = vmatprep.subr.bf16.mxu0 0
    %2943 = vmatpush1.bf16.msra.mxu0 0
    %2944 = vmatprep.subr.bf16.mxu0 0
    %2945 = vmatpush1.bf16.msra.mxu0 0
    %2946 = vmatprep.subr.bf16.mxu0 0
    %2947 = vmatpush1.bf16.msra.mxu0 0
    %2948 = vmatprep.subr.bf16.mxu0 0
    %2949 = vmatpush1.bf16.msra.mxu0 0
    %2950 = vmatprep.subr.bf16.mxu0 0
    %2951 = vmatpush1.bf16.msra.mxu0 0
    %2952 = vmatprep.subr.bf16.mxu0 0
    %2953 = vmatpush1.bf16.msra.mxu0 0
    %2954 = vmatprep.subr.bf16.mxu0 0
    %2955 = vmatpush1.bf16.msra.mxu0 0
    %2956 = vmatprep.subr.bf16.mxu0 0
    %2957 = vmatpush1.bf16.msra.mxu0 0
    %2958 = vmatprep.subr.bf16.mxu0 0
    %2959 = vmatpush1.bf16.msra.mxu0 0
    %2960 = vmatprep.mubr.bf16.mxu0 0
    %2961 = vmatmul.mubr.bf16.gmra.mrb[0].mxu0 %v2909
    %v2962 = vpop.f32.mrb[0].mxu0
    %v2963 = vadd.f32 0.0, %v2962
    %v2964 = vpop.f32.mrb[0].mxu0
    %v2965 = vadd.f32 0.0, %v2964
    %v2966 = vpop.f32.mrb[0].mxu0
    %v2967 = vpop.f32.mrb[0].mxu0
    %2968 = vdwg.mxu0
    %2969 = vmatprep.subr.bf16.mxu0 %v2921
    %2970 = vmatpush1.bf16.msra.mxu0 %v2918
    %2971 = vmatprep.subr.bf16.mxu0 0
    %2972 = vmatpush1.bf16.msra.mxu0 0
    %2973 = vmatprep.subr.bf16.mxu0 0
    %2974 = vmatpush1.bf16.msra.mxu0 0
    %2975 = vmatprep.subr.bf16.mxu0 0
    %2976 = vmatpush1.bf16.msra.mxu0 0
    %2977 = vmatprep.subr.bf16.mxu0 0
    %2978 = vmatpush1.bf16.msra.mxu0 0
    %2979 = vmatprep.subr.bf16.mxu0 0
    %2980 = vmatpush1.bf16.msra.mxu0 0
    %2981 = vmatprep.subr.bf16.mxu0 0
    %2982 = vmatpush1.bf16.msra.mxu0 0
    %2983 = vmatprep.subr.bf16.mxu0 0
    %2984 = vmatpush1.bf16.msra.mxu0 0
    %2985 = vmatprep.subr.bf16.mxu0 0
    %2986 = vmatpush1.bf16.msra.mxu0 0
    %2987 = vmatprep.subr.bf16.mxu0 0
    %2988 = vmatpush1.bf16.msra.mxu0 0
    %2989 = vmatprep.subr.bf16.mxu0 0
    %2990 = vmatpush1.bf16.msra.mxu0 0
    %2991 = vmatprep.subr.bf16.mxu0 0
    %2992 = vmatpush1.bf16.msra.mxu0 0
    %2993 = vmatprep.subr.bf16.mxu0 0
    %2994 = vmatpush1.bf16.msra.mxu0 0
    %2995 = vmatprep.subr.bf16.mxu0 0
    %2996 = vmatpush1.bf16.msra.mxu0 0
    %2997 = vmatprep.subr.bf16.mxu0 0
    %2998 = vmatpush1.bf16.msra.mxu0 0
    %2999 = vmatprep.subr.bf16.mxu0 0
    %3000 = vmatpush1.bf16.msra.mxu0 0
    %3001 = vmatprep.mubr.bf16.mxu0 0
    %3002 = vmatmul.mubr.bf16.gmra.mrb[0].mxu0 %v2909
    %v3003 = vpop.f32.mrb[0].mxu0
    %v3004 = vadd.f32 0.0, %v3003
    %v3005 = vpop.f32.mrb[0].mxu0
    %v3006 = vadd.f32 0.0, %v3005
    %v3007 = vpop.f32.mrb[0].mxu0
    %v3008 = vpop.f32.mrb[0].mxu0
    %3009 = vdwg.mxu0
    %3010 = vmatprep.subr.bf16.mxu0 %v2926
    %3011 = vmatpush1.bf16.msra.mxu0 %v2924
    %3012 = vmatprep.subr.bf16.mxu0 0
    %3013 = vmatpush1.bf16.msra.mxu0 0
    %3014 = vmatprep.subr.bf16.mxu0 0
    %3015 = vmatpush1.bf16.msra.mxu0 0
    %3016 = vmatprep.subr.bf16.mxu0 0
    %3017 = vmatpush1.bf16.msra.mxu0 0
    %3018 = vmatprep.subr.bf16.mxu0 0
    %3019 = vmatpush1.bf16.msra.mxu0 0
    %3020 = vmatprep.subr.bf16.mxu0 0
    %3021 = vmatpush1.bf16.msra.mxu0 0
    %3022 = vmatprep.subr.bf16.mxu0 0
    %3023 = vmatpush1.bf16.msra.mxu0 0
    %3024 = vmatprep.subr.bf16.mxu0 0
    %3025 = vmatpush1.bf16.msra.mxu0 0
    %3026 = vmatprep.subr.bf16.mxu0 0
    %3027 = vmatpush1.bf16.msra.mxu0 0
    %3028 = vmatprep.subr.bf16.mxu0 0
    %3029 = vmatpush1.bf16.msra.mxu0 0
    %3030 = vmatprep.subr.bf16.mxu0 0
    %3031 = vmatpush1.bf16.msra.mxu0 0
    %3032 = vmatprep.subr.bf16.mxu0 0
    %3033 = vmatpush1.bf16.msra.mxu0 0
    %3034 = vmatprep.subr.bf16.mxu0 0
    %3035 = vmatpush1.bf16.msra.mxu0 0
    %3036 = vmatprep.subr.bf16.mxu0 0
    %3037 = vmatpush1.bf16.msra.mxu0 0
    %3038 = vmatprep.subr.bf16.mxu0 0
    %3039 = vmatpush1.bf16.msra.mxu0 0
    %3040 = vmatprep.subr.bf16.mxu0 0
    %3041 = vmatpush1.bf16.msra.mxu0 0
    %3042 = vmatprep.mubr.bf16.mxu0 0
    %3043 = vmatmul.mubr.bf16.gmra.mrb[0].mxu0 %v2909
    %v3044 = vpop.f32.mrb[0].mxu0
    %v3045 = vadd.f32 0.0, %v3044
    %v3046 = vpop.f32.mrb[0].mxu0
    %v3047 = vadd.f32 0.0, %v3046
    %v3048 = vpop.f32.mrb[0].mxu0
    %v3049 = vpop.f32.mrb[0].mxu0
    %3050 = vdwg.mxu0
    %v3051 = vadd.f32 %v2880, %v2963
    %v3052 = vadd.f32 %v2881, %v2965
    %v3053 = vadd.f32 %v2882, %v3004
    %v3054 = vadd.f32 %v2883, %v3006
    %v3055 = vadd.f32 %v2884, %v3045
    %v3056 = vadd.f32 %v2885, %v3047
    %3057 = vrot.lane.b32.xlu0 %v1709, 109
    %v3058 = vpop.permute.xlu0 %3057
    %3059 = vrot.lane.b32.xlu0 %v1710, 109
    %v3060 = vpop.permute.xlu0 %3059
    %3061 = vrot.lane.b32.xlu0 %v1711, 109
    %v3062 = vpop.permute.xlu0 %3061
    %3063 = vrot.lane.b32.xlu0 %v1712, 109
    %v3064 = vpop.permute.xlu0 %3063
    %3065 = vrot.lane.b32.xlu0 %v1713, 109
    %v3066 = vpop.permute.xlu0 %3065
    %3067 = vrot.lane.b32.xlu0 %v1714, 109
    %v3068 = vpop.permute.xlu0 %3067
    %v3069 = vsel %vm1420, %v3058, %v3060
    %v3070 = vsel %vm1420, %v3060, %v3062
    %v3071 = vsel %vm1420, %v3062, %v3064
    %v3072 = vsel %vm1420, %v3064, %v3066
    %v3073 = vsel %vm1420, %v3066, %v3068
    %v3076 = vsel %vm1426, %v3068, %v3058
    %s3077 = scalar_lea.vmem %s5, 16
    %v3078 = vld [vmem:[%s3077] sm:$0x3]
    %v3080 = vsel %vm103, %v3078, 0
    %v3083 = vsel %vm107, %v3069, 0
    %v3086 = vsel %vm107, %v3070, 0
    %v3089 = vsel %vm107, %v3071, 0
    %v3092 = vsel %vm107, %v3072, 0
    %v3095 = vsel %vm107, %v3073, 0
    %v3097 = vsel %vm107, %v3076, 0
    %3099 = vmatprep.subr.bf16.mxu0 %v3086
    %3100 = vmatpush1.bf16.msra.mxu0 %v3083
    %3101 = vmatprep.subr.bf16.mxu0 0
    %3102 = vmatpush1.bf16.msra.mxu0 0
    %3103 = vmatprep.subr.bf16.mxu0 0
    %3104 = vmatpush1.bf16.msra.mxu0 0
    %3105 = vmatprep.subr.bf16.mxu0 0
    %3106 = vmatpush1.bf16.msra.mxu0 0
    %3107 = vmatprep.subr.bf16.mxu0 0
    %3108 = vmatpush1.bf16.msra.mxu0 0
    %3109 = vmatprep.subr.bf16.mxu0 0
    %3110 = vmatpush1.bf16.msra.mxu0 0
    %3111 = vmatprep.subr.bf16.mxu0 0
    %3112 = vmatpush1.bf16.msra.mxu0 0
    %3113 = vmatprep.subr.bf16.mxu0 0
    %3114 = vmatpush1.bf16.msra.mxu0 0
    %3115 = vmatprep.subr.bf16.mxu0 0
    %3116 = vmatpush1.bf16.msra.mxu0 0
    %3117 = vmatprep.subr.bf16.mxu0 0
    %3118 = vmatpush1.bf16.msra.mxu0 0
    %3119 = vmatprep.subr.bf16.mxu0 0
    %3120 = vmatpush1.bf16.msra.mxu0 0
    %3121 = vmatprep.subr.bf16.mxu0 0
    %3122 = vmatpush1.bf16.msra.mxu0 0
    %3123 = vmatprep.subr.bf16.mxu0 0
    %3124 = vmatpush1.bf16.msra.mxu0 0
    %3125 = vmatprep.subr.bf16.mxu0 0
    %3126 = vmatpush1.bf16.msra.mxu0 0
    %3127 = vmatprep.subr.bf16.mxu0 0
    %3128 = vmatpush1.bf16.msra.mxu0 0
    %3129 = vmatprep.subr.bf16.mxu0 0
    %3130 = vmatpush1.bf16.msra.mxu0 0
    %3131 = vmatprep.mubr.bf16.mxu0 0
    %3132 = vmatmul.mubr.bf16.gmra.mrb[0].mxu0 %v3080
    %v3133 = vpop.f32.mrb[0].mxu0
    %v3134 = vadd.f32 0.0, %v3133
    %v3135 = vpop.f32.mrb[0].mxu0
    %v3136 = vadd.f32 0.0, %v3135
    %v3137 = vpop.f32.mrb[0].mxu0
    %v3138 = vpop.f32.mrb[0].mxu0
    %3139 = vdwg.mxu0
    %3140 = vmatprep.subr.bf16.mxu0 %v3092
    %3141 = vmatpush1.bf16.msra.mxu0 %v3089
    %3142 = vmatprep.subr.bf16.mxu0 0
    %3143 = vmatpush1.bf16.msra.mxu0 0
    %3144 = vmatprep.subr.bf16.mxu0 0
    %3145 = vmatpush1.bf16.msra.mxu0 0
    %3146 = vmatprep.subr.bf16.mxu0 0
    %3147 = vmatpush1.bf16.msra.mxu0 0
    %3148 = vmatprep.subr.bf16.mxu0 0
    %3149 = vmatpush1.bf16.msra.mxu0 0
    %3150 = vmatprep.subr.bf16.mxu0 0
    %3151 = vmatpush1.bf16.msra.mxu0 0
    %3152 = vmatprep.subr.bf16.mxu0 0
    %3153 = vmatpush1.bf16.msra.mxu0 0
    %3154 = vmatprep.subr.bf16.mxu0 0
    %3155 = vmatpush1.bf16.msra.mxu0 0
    %3156 = vmatprep.subr.bf16.mxu0 0
    %3157 = vmatpush1.bf16.msra.mxu0 0
    %3158 = vmatprep.subr.bf16.mxu0 0
    %3159 = vmatpush1.bf16.msra.mxu0 0
    %3160 = vmatprep.subr.bf16.mxu0 0
    %3161 = vmatpush1.bf16.msra.mxu0 0
    %3162 = vmatprep.subr.bf16.mxu0 0
    %3163 = vmatpush1.bf16.msra.mxu0 0
    %3164 = vmatprep.subr.bf16.mxu0 0
    %3165 = vmatpush1.bf16.msra.mxu0 0
    %3166 = vmatprep.subr.bf16.mxu0 0
    %3167 = vmatpush1.bf16.msra.mxu0 0
    %3168 = vmatprep.subr.bf16.mxu0 0
    %3169 = vmatpush1.bf16.msra.mxu0 0
    %3170 = vmatprep.subr.bf16.mxu0 0
    %3171 = vmatpush1.bf16.msra.mxu0 0
    %3172 = vmatprep.mubr.bf16.mxu0 0
    %3173 = vmatmul.mubr.bf16.gmra.mrb[0].mxu0 %v3080
    %v3174 = vpop.f32.mrb[0].mxu0
    %v3175 = vadd.f32 0.0, %v3174
    %v3176 = vpop.f32.mrb[0].mxu0
    %v3177 = vadd.f32 0.0, %v3176
    %v3178 = vpop.f32.mrb[0].mxu0
    %v3179 = vpop.f32.mrb[0].mxu0
    %3180 = vdwg.mxu0
    %3181 = vmatprep.subr.bf16.mxu0 %v3097
    %3182 = vmatpush1.bf16.msra.mxu0 %v3095
    %3183 = vmatprep.subr.bf16.mxu0 0
    %3184 = vmatpush1.bf16.msra.mxu0 0
    %3185 = vmatprep.subr.bf16.mxu0 0
    %3186 = vmatpush1.bf16.msra.mxu0 0
    %3187 = vmatprep.subr.bf16.mxu0 0
    %3188 = vmatpush1.bf16.msra.mxu0 0
    %3189 = vmatprep.subr.bf16.mxu0 0
    %3190 = vmatpush1.bf16.msra.mxu0 0
    %3191 = vmatprep.subr.bf16.mxu0 0
    %3192 = vmatpush1.bf16.msra.mxu0 0
    %3193 = vmatprep.subr.bf16.mxu0 0
    %3194 = vmatpush1.bf16.msra.mxu0 0
    %3195 = vmatprep.subr.bf16.mxu0 0
    %3196 = vmatpush1.bf16.msra.mxu0 0
    %3197 = vmatprep.subr.bf16.mxu0 0
    %3198 = vmatpush1.bf16.msra.mxu0 0
    %3199 = vmatprep.subr.bf16.mxu0 0
    %3200 = vmatpush1.bf16.msra.mxu0 0
    %3201 = vmatprep.subr.bf16.mxu0 0
    %3202 = vmatpush1.bf16.msra.mxu0 0
    %3203 = vmatprep.subr.bf16.mxu0 0
    %3204 = vmatpush1.bf16.msra.mxu0 0
    %3205 = vmatprep.subr.bf16.mxu0 0
    %3206 = vmatpush1.bf16.msra.mxu0 0
    %3207 = vmatprep.subr.bf16.mxu0 0
    %3208 = vmatpush1.bf16.msra.mxu0 0
    %3209 = vmatprep.subr.bf16.mxu0 0
    %3210 = vmatpush1.bf16.msra.mxu0 0
    %3211 = vmatprep.subr.bf16.mxu0 0
    %3212 = vmatpush1.bf16.msra.mxu0 0
    %3213 = vmatprep.mubr.bf16.mxu0 0
    %3214 = vmatmul.mubr.bf16.gmra.mrb[0].mxu0 %v3080
    %v3215 = vpop.f32.mrb[0].mxu0
    %v3216 = vadd.f32 0.0, %v3215
    %v3217 = vpop.f32.mrb[0].mxu0
    %v3218 = vadd.f32 0.0, %v3217
    %v3219 = vpop.f32.mrb[0].mxu0
    %v3220 = vpop.f32.mrb[0].mxu0
    %3221 = vdwg.mxu0
    %v3222 = vadd.f32 %v3051, %v3134
    %v3223 = vadd.f32 %v3052, %v3136
    %v3224 = vadd.f32 %v3053, %v3175
    %v3225 = vadd.f32 %v3054, %v3177
    %v3226 = vadd.f32 %v3055, %v3216
    %v3227 = vadd.f32 %v3056, %v3218
    %v3228 = vld [vmem:[%s6] sm:$0xf]
    %v3229 = vld [vmem:[%s7] sm:$0xf]
    %v3230 = vmul.f32 %v3222, %v1587
    %v3231 = vmul.f32 %v3223, %v1591
    %v3232 = vmul.f32 %v3224, %v1595
    %v3233 = vmul.f32 %v3225, %v1599
    %v3234 = vmul.f32 %v3226, %v1603
    %v3235 = vmul.f32 %v3227, %v1607
    %v3236 = vsel %vm1620, %v3230, 0.0
    %v3237 = vsel %vm1620, %v3231, 0.0
    %v3238 = vadd.f32 %v3236, %v3237
    %v3239 = vsel %vm1620, %v3232, 0.0
    %v3240 = vadd.f32 %v3238, %v3239
    %v3241 = vsel %vm1620, %v3233, 0.0
    %v3242 = vadd.f32 %v3240, %v3241
    %v3243 = vsel %vm1620, %v3234, 0.0
    %v3244 = vadd.f32 %v3242, %v3243
    %v3245 = vsel %vm1620, %v3235, 0.0
    %v3246 = vadd.f32 %v3244, %v3245
    %3247 = vadd.xlane.f32.xlu0 %v3246
    %v3248 = vpop.xlane.xlu0 %3247
    %v3249 = vmul.f32 %v3248, 0.001953125
    %v3250 = vsub.f32 %v3222, %v3249
    %v3251 = vsub.f32 %v3223, %v3249
    %v3252 = vsub.f32 %v3224, %v3249
    %v3253 = vsub.f32 %v3225, %v3249
    %v3254 = vsub.f32 %v3226, %v3249
    %v3255 = vsub.f32 %v3227, %v3249
    %v3256 = vmul.f32 %v3250, %v1587
    %v3257 = vmul.f32 %v3251, %v1591
    %v3258 = vmul.f32 %v3252, %v1595
    %v3259 = vmul.f32 %v3253, %v1599
    %v3260 = vmul.f32 %v3254, %v1603
    %v3261 = vmul.f32 %v3255, %v1607
    %v3262 = vmul.f32 %v3256, %v3256
    %v3263 = vmul.f32 %v3257, %v3257
    %v3264 = vmul.f32 %v3258, %v3258
    %v3265 = vmul.f32 %v3259, %v3259
    %v3266 = vmul.f32 %v3260, %v3260
    %v3267 = vmul.f32 %v3261, %v3261
    %v3268 = vsel %vm1620, %v3262, 0.0
    %v3269 = vsel %vm1620, %v3263, 0.0
    %v3270 = vadd.f32 %v3268, %v3269
    %v3271 = vsel %vm1620, %v3264, 0.0
    %v3272 = vadd.f32 %v3270, %v3271
    %v3273 = vsel %vm1620, %v3265, 0.0
    %v3274 = vadd.f32 %v3272, %v3273
    %v3275 = vsel %vm1620, %v3266, 0.0
    %v3276 = vadd.f32 %v3274, %v3275
    %v3277 = vsel %vm1620, %v3267, 0.0
    %v3278 = vadd.f32 %v3276, %v3277
    %3279 = vadd.xlane.f32.xlu0 %v3278
    %v3280 = vpop.xlane.xlu0 %3279
    %v3281 = vmul.f32 %v3280, 0.001953125
    %v3282 = vadd.f32 %v3281, 1e-05
    %v3283 = vrsqrt.pop %v3282
    %v3284 = vmul.f32 %v3250, %v3283
    %v3285 = vmul.f32 %v3251, %v3283
    %v3286 = vmul.f32 %v3252, %v3283
    %v3287 = vmul.f32 %v3253, %v3283
    %v3288 = vmul.f32 %v3254, %v3283
    %v3289 = vmul.f32 %v3255, %v3283
    %3291 = vset.pattern.permute.xlu0 0
    %3292 = vperm.xlu0 %3291, %v3228
    %v3293 = vpop.permute.xlu0 %3292
    %v3295 = vmul.f32 %v3284, %v3293
    %v3296 = vmul.f32 %v3285, %v3293
    %v3297 = vmul.f32 %v3286, %v3293
    %v3298 = vmul.f32 %v3287, %v3293
    %v3299 = vmul.f32 %v3288, %v3293
    %v3300 = vmul.f32 %v3289, %v3293
    %3302 = vset.pattern.permute.xlu0 0
    %3303 = vperm.xlu0 %3302, %v3229
    %v3304 = vpop.permute.xlu0 %3303
    %v3306 = vadd.f32 %v3295, %v3304
    %v3307 = vadd.f32 %v3296, %v3304
    %v3308 = vadd.f32 %v3297, %v3304
    %v3309 = vadd.f32 %v3298, %v3304
    %v3310 = vadd.f32 %v3299, %v3304
    %v3311 = vadd.f32 %v3300, %v3304
    %v3312 = vadd.f32 %v3306, %v32
    %v3313 = vadd.f32 %v3307, %v38
    %v3314 = vadd.f32 %v3308, %v33
    %v3315 = vadd.f32 %v3309, %v39
    %v3316 = vadd.f32 %v3310, %v34
    %v3317 = vadd.f32 %v3311, %v40
    %v3318 = vmax.f32 %v3312, 0.0
    %v3319 = vmax.f32 %v3313, 0.0
    %v3320 = vmax.f32 %v3314, 0.0
    %v3321 = vmax.f32 %v3315, 0.0
    %v3322 = vmax.f32 %v3316, 0.0
    %v3323 = vmax.f32 %v3317, 0.0
    %v3330 = vcombine.low %v3318, %v3319
    %v3331 = vcombine.low %v3320, %v3321
    %v3332 = vcombine.low %v3322, %v3323
    %3336 = vst [vmem:[#allocation2] sm:$0xff] %v3330
    %3337 = vst [vmem:[#allocation2 + $0x8] sm:$0xff] %v3331
    %3338 = vst [vmem:[#allocation2 + $0x10] sm:$0xff] %v3332
    // Predicated region
    $region34: #{tpu_custom_call.1} parent=1 // pred_check
      _
    $region35: #{tpu_custom_call.1} parent=1 // pred_check_branch
      %3340 = sbr.rel (0) target = $region37
    $region36: #{tpu_custom_call.1} parent=1 // pred_region
      %s3342 = ssub.s32 384, 384
      %3343 = vsyncadd [#allocation3], %s3342
      %s3345 = sshll.u32 [#allocation2], 4
      %s3346 = int_to_ptr.vmem [resolvable:$true] %s3345
      %3348 = dma.vmem_to_hbm [thread:$0]  %s3346, 384, %s8, [#allocation3]
    $region37: #{tpu_custom_call.1} parent=1 // pred_fallthru
      _
    // Predicated region
    $region38: #{tpu_custom_call.1} parent=1 // pred_check
      _
    $region39: #{tpu_custom_call.1} parent=1 // pred_check_branch
      %3350 = sbr.rel (0) target = $region41
    $region40: #{tpu_custom_call.1} parent=1 // pred_region
      %3351 = dma.done [#allocation3], 384
    $region41: #{tpu_custom_call.1} parent=1 // pred_fallthru
      _
    %3352 = vsyncpa [#allocation3], 1

</llo_original>
